<compile_context>
chip_gen: v7x
topology: tpu7x:2x2x1
jax: 0.10.0
libtpu: 0.0.40
codegen_flags: <defaults>
</compile_context>

<pallas_src>
import numpy as np
import jax
import jax.numpy as jnp
from jax.experimental import pallas as pl
from jax.experimental.pallas import tpu as pltpu

MAX_LABELS = 8            # label ids are 0 .. MAX_LABELS-1 (0 = background)
N_CLASSES = 3             # label_type == 'both'
PRUNE_FACTOR = 2
LIGHT_RANGE = (1.9, 2.0)
DARK_RANGE = (0.0, 0.1)
LABEL_DTYPE = jnp.int8    # ids fit in int8 -> 4x less HBM read traffic
ONEHOT_DTYPE = jnp.bfloat16  # values are exactly 0/1 -> bit-exact, 2x less HBM write traffic
                             # TODO(synk): PyTorch module returns float32 onehot; bf16 kept
                             # per perf review (values exactly representable).
MAX_TILE_ROWS = 2048      # f32 2048x128 out tile: ~6.5 MiB total VMEM incl. double-buffering
MIN_GRID_STEPS = 8        # keep both v7x TensorCores busy + allow DMA/compute overlap
ROW_ALIGN = 32            # int8 sublane packing (32,128); also covers bf16 (16) and f32 (8)


def _vessel_lut_kernel(value_ref, chan_ref, labels_ref, scaling_ref, onehot_ref, chan_vmem):
    """Per-voxel label -> (intensity, channel) lookup.

    value_ref / chan_ref: (MAX_LABELS,) tables resident in SMEM (scalar reads).
    labels_ref: (tile_rows, 128) int8 tile.  Outputs: scaling (tile_rows,128) f32 and
    onehot (N_CLASSES, tile_rows, 128) bf16.  chan_vmem: (tile_rows,128) i32 scratch.
    The LUT is an unrolled, scalar-gated chain of VPU selects (mirrors masked_fill_).
    """
    lbl = labels_ref[...].astype(jnp.int32)              # unpack i8 once per tile
    scaling_ref[...] = jnp.ones(lbl.shape, jnp.float32)  # background / hidden -> 1.0
    chan_vmem[...] = jnp.zeros(lbl.shape, jnp.int32)     # background / hidden -> channel 0
    # Hidden/background ids map exactly to the init values, so skipping them
    # (chan_table[id] == 0) is exact and prunes >= half of the compare/select chain.
    for i in range(1, MAX_LABELS):
        @pl.when(chan_ref[i] != 0)
        def _(i=i):
            eq = lbl == i
            scaling_ref[...] = jnp.where(eq, value_ref[i], scaling_ref[...])
            chan_vmem[...] = jnp.where(eq, chan_ref[i], chan_vmem[...])
    ch = chan_vmem[...]
    for c in range(N_CLASSES):
        onehot_ref[c, :, :] = (ch == c).astype(ONEHOT_DTYPE)


def _random_flips(labels, key, n_rounds=3):
    """3x RandomFlipTransform collapsed into at most one flip pass per spatial axis.

    TODO(synk): cornucopia fov.RandomFlipTransform's exact axis-subset sampling is not
    reproduced; an independent Bernoulli(0.5) flip per spatial axis per round is used,
    XOR-folded into a single net flip parity per axis (identical distribution of results).
    """
    flips = jax.random.bernoulli(key, 0.5, (n_rounds, 3))
    parity = (jnp.sum(flips, axis=0) % 2) == 1
    for ax in range(3):
        labels = jnp.where(parity[ax], jnp.flip(labels, axis=ax + 1), labels)
    return labels


def _build_label_tables(key, max_labels, light_range, dark_range):
    """Reproduce _prune_labels + _sample_label_intensity as dense per-label tables.

    TODO(synk): torch.unique of the actual volume is data-dependent; we assume label ids
    0..max_labels-1 (the demo constructs inputs that way), matching the module's behavior
    when all ids are present.
    """
    k_hide, k_perm, k_choice, k_dark, k_light = jax.random.split(key, 5)
    n_unique = max_labels
    # n_labels_to_hide ~ randint(n//2, n-1)  (high exclusive, as in torch.randint)
    n_hide = jax.random.randint(k_hide, (), n_unique // PRUNE_FACTOR, n_unique - 1)
    perm = jax.random.permutation(k_perm, n_unique)
    hidden = jnp.zeros((n_unique,), bool).at[perm].set(jnp.arange(n_unique) < n_hide)
    keep = (~hidden) & (jnp.arange(n_unique) != 0)

    # 'both': random.choice between (dark, channel 1) and (light, channel 2)
    is_dark = jax.random.bernoulli(k_choice, 0.5, (n_unique,))
    dark_vals = jax.random.uniform(k_dark, (n_unique,),
                                   minval=dark_range[0], maxval=dark_range[1])
    light_vals = jax.random.uniform(k_light, (n_unique,),
                                    minval=light_range[0], maxval=light_range[1])
    vals = jnp.where(is_dark, dark_vals, light_vals)
    chans = jnp.where(is_dark, 1, 2)

    value_table = jnp.where(keep, vals, 1.0).astype(jnp.float32)
    chan_table = jnp.where(keep, chans, 0).astype(jnp.int32)
    return value_table, chan_table


def _choose_tile_rows(rows):
    """Tile rows: aim for >= MIN_GRID_STEPS grid steps, cap at MAX_TILE_ROWS, align to 32."""
    target = max(ROW_ALIGN, (rows + MIN_GRID_STEPS - 1) // MIN_GRID_STEPS)
    tile = min(MAX_TILE_ROWS, target)
    tile = ((tile + ROW_ALIGN - 1) // ROW_ALIGN) * ROW_ALIGN
    return min(tile, MAX_TILE_ROWS)


def add_vessels(vessel_labels, key, *, light_range=LIGHT_RANGE, dark_range=DARK_RANGE,
                max_labels=MAX_LABELS, interpret=False):
    """AddVessels.forward: returns (scaling_tensor, onehot) for a [1, D, H, W] label volume."""
    shape = vessel_labels.shape
    k_flip, k_tables = jax.random.split(key)

    # TODO(synk): label ids outside [0, max_labels) silently map to background.
    labels = _random_flips(vessel_labels.astype(LABEL_DTYPE), k_flip)
    value_table, chan_table = _build_label_tables(k_tables, max_labels,
                                                  light_range, dark_range)

    total = int(np.prod(shape))
    assert total % 128 == 0, "total element count must be a multiple of 128 lanes"
    rows = total // 128
    labels2d = labels.reshape(rows, 128)          # lane-dense slab: last dim -> 128 lanes

    tile_rows = _choose_tile_rows(rows)
    grid = (pl.cdiv(rows, tile_rows),)            # partial last block handled by Pallas

    # HBM traffic: 1B label read + 4B scaling write + 3*2B onehot write per voxel.
    bytes_accessed = total * (1 + 4 + N_CLASSES * 2)

    scaling2d, onehot2d = pl.pallas_call(
        _vessel_lut_kernel,
        out_shape=(
            jax.ShapeDtypeStruct((rows, 128), jnp.float32),
            jax.ShapeDtypeStruct((N_CLASSES, rows, 128), ONEHOT_DTYPE),
        ),
        grid=grid,
        in_specs=[
            pl.BlockSpec(memory_space=pltpu.MemorySpace.SMEM),   # value_table (scalar reads)
            pl.BlockSpec(memory_space=pltpu.MemorySpace.SMEM),   # chan_table
            pl.BlockSpec((tile_rows, 128), lambda i: (i, 0)),    # labels tile (int8)
        ],
        out_specs=(
            pl.BlockSpec((tile_rows, 128), lambda i: (i, 0)),
            pl.BlockSpec((N_CLASSES, tile_rows, 128), lambda i: (0, i, 0)),
        ),
        scratch_shapes=[pltpu.VMEM((tile_rows, 128), jnp.int32)],  # per-voxel channel scratch
        # No cross-step accumulator -> fully parallel grid (uses both TCs on v7x).
        compiler_params=pltpu.CompilerParams(dimension_semantics=("parallel",)),
        cost_estimate=pl.CostEstimate(flops=0, transcendentals=0,
                                      bytes_accessed=bytes_accessed),
        interpret=interpret,
    )(value_table, chan_table, labels2d)

    scaling = scaling2d.reshape(shape)
    onehot = onehot2d.reshape((N_CLASSES,) + shape)
    return scaling, onehot


if __name__ == "__main__":
    key = jax.random.PRNGKey(0)
    k_labels, k_fwd = jax.random.split(key)

    # Small demo volume [1, D, H, W]; W=128 keeps the flattened slab lane-dense.
    shape = (1, 32, 64, 128)
    vessel_labels = jax.random.randint(k_labels, shape, 0, MAX_LABELS, dtype=jnp.int32)

    scaling, onehot = add_vessels(vessel_labels, k_fwd)
    scaling = jax.block_until_ready(scaling)
    onehot = jax.block_until_ready(onehot)

    # Pure-JAX reference using the *same* random stream / tables.
    k_flip, k_tab = jax.random.split(k_fwd)
    lbl_ref = _random_flips(vessel_labels.astype(LABEL_DTYPE), k_flip).astype(jnp.int32)
    vtab, ctab = _build_label_tables(k_tab, MAX_LABELS, LIGHT_RANGE, DARK_RANGE)
    scaling_ref = jnp.take(vtab, lbl_ref)
    chan_ref = jnp.take(ctab, lbl_ref)
    onehot_ref = (chan_ref[None] ==
                  jnp.arange(N_CLASSES).reshape(N_CLASSES, 1, 1, 1, 1)).astype(ONEHOT_DTYPE)

    assert scaling.shape == shape and scaling.dtype == jnp.float32
    assert onehot.shape == (N_CLASSES,) + shape and onehot.dtype == ONEHOT_DTYPE
    np.testing.assert_array_equal(np.asarray(scaling).astype(np.float32),
                                  np.asarray(scaling_ref).astype(np.float32))
    np.testing.assert_array_equal(np.asarray(onehot).astype(np.float32),
                                  np.asarray(onehot_ref).astype(np.float32))

    print("KERNEL_OK")
</pallas_src>

<mosaic_0001>
module attributes {stable_mosaic.version = 11 : i64} {
  func.func @_vessel_lut_kernel(%arg0: i32, %arg1: memref<8xf32, #tpu.memory_space<smem>>, %arg2: memref<8xi32, #tpu.memory_space<smem>>, %arg3: memref<256x128xi8, #tpu.memory_space<vmem>>, %arg4: memref<256x128xf32, #tpu.memory_space<vmem>>, %arg5: memref<3x256x128xbf16, #tpu.memory_space<vmem>>, %arg6: memref<256x128xi32, #tpu.memory_space<vmem>>) attributes {dimension_semantics = [#tpu.dimension_semantics<parallel>], iteration_bounds = array<i64: 8>, scalar_prefetch = 0 : i64, scratch_operands = 1 : i64, tpu.core_type = #tpu.core_type<tc>, window_params = [{transform_indices = @transform_0, window_bounds = array<i64: 8>}, {transform_indices = @transform_1, window_bounds = array<i64: 8>}, {transform_indices = @transform_2, window_bounds = array<i64: 256, 128>}, {transform_indices = @transform_3, window_bounds = array<i64: 256, 128>}, {transform_indices = @transform_4, window_bounds = array<i64: 3, 256, 128>}]} {
    %c0 = arith.constant 0 : index
    %c0_0 = arith.constant 0 : index
    %0 = vector.load %arg3[%c0, %c0_0] : memref<256x128xi8, #tpu.memory_space<vmem>>, vector<256x128xi8>
    %1 = arith.extsi %0 : vector<256x128xi8> to vector<256x128xi32>
    %cst = arith.constant 1.000000e+00 : f32
    %2 = vector.broadcast %cst : f32 to vector<256x128xf32>
    %c0_1 = arith.constant 0 : index
    %c0_2 = arith.constant 0 : index
    %3 = vector.load %arg4[%c0_1, %c0_2] : memref<256x128xf32, #tpu.memory_space<vmem>>, vector<256x128xf32>
    tpu.vector_store %arg4[%c0_1, %c0_2], %2 {strides = array<i32>} : memref<256x128xf32, #tpu.memory_space<vmem>>, vector<256x128xf32>,
    %c0_i32 = arith.constant 0 : i32
    %4 = vector.broadcast %c0_i32 : i32 to vector<256x128xi32>
    %c0_3 = arith.constant 0 : index
    %c0_4 = arith.constant 0 : index
    %5 = vector.load %arg6[%c0_3, %c0_4] : memref<256x128xi32, #tpu.memory_space<vmem>>, vector<256x128xi32>
    tpu.vector_store %arg6[%c0_3, %c0_4], %4 {strides = array<i32>} : memref<256x128xi32, #tpu.memory_space<vmem>>, vector<256x128xi32>,
    %c1 = arith.constant 1 : index
    %6 = memref.load %arg2[%c1] : memref<8xi32, #tpu.memory_space<smem>>
    %c0_i32_5 = arith.constant 0 : i32
    %7 = arith.cmpi ne, %6, %c0_i32_5 : i32
    %8 = arith.extui %7 : i1 to i32
    %c0_i32_6 = arith.constant 0 : i32
    %9 = arith.cmpi ne, %8, %c0_i32_6 : i32
    scf.if %9 {
      %c1_i32_31 = arith.constant 1 : i32
      %59 = vector.broadcast %c1_i32_31 : i32 to vector<256x128xi32>
      %60 = arith.cmpi eq, %1, %59 : vector<256x128xi32>
      %c1_32 = arith.constant 1 : index
      %61 = memref.load %arg1[%c1_32] : memref<8xf32, #tpu.memory_space<smem>>
      %c0_33 = arith.constant 0 : index
      %c0_34 = arith.constant 0 : index
      %62 = vector.load %arg4[%c0_33, %c0_34] : memref<256x128xf32, #tpu.memory_space<vmem>>, vector<256x128xf32>
      %63 = vector.broadcast %61 : f32 to vector<256x128xf32>
      %64 = arith.select %60, %63, %62 : vector<256x128xi1>, vector<256x128xf32>
      %c0_35 = arith.constant 0 : index
      %c0_36 = arith.constant 0 : index
      %65 = vector.load %arg4[%c0_35, %c0_36] : memref<256x128xf32, #tpu.memory_space<vmem>>, vector<256x128xf32>
      tpu.vector_store %arg4[%c0_35, %c0_36], %64 {strides = array<i32>} : memref<256x128xf32, #tpu.memory_space<vmem>>, vector<256x128xf32>,
      %c1_37 = arith.constant 1 : index
      %66 = memref.load %arg2[%c1_37] : memref<8xi32, #tpu.memory_space<smem>>
      %c0_38 = arith.constant 0 : index
      %c0_39 = arith.constant 0 : index
      %67 = vector.load %arg6[%c0_38, %c0_39] : memref<256x128xi32, #tpu.memory_space<vmem>>, vector<256x128xi32>
      %68 = vector.broadcast %66 : i32 to vector<256x128xi32>
      %69 = arith.select %60, %68, %67 : vector<256x128xi1>, vector<256x128xi32>
      %c0_40 = arith.constant 0 : index
      %c0_41 = arith.constant 0 : index
      %70 = vector.load %arg6[%c0_40, %c0_41] : memref<256x128xi32, #tpu.memory_space<vmem>>, vector<256x128xi32>
      tpu.vector_store %arg6[%c0_40, %c0_41], %69 {strides = array<i32>} : memref<256x128xi32, #tpu.memory_space<vmem>>, vector<256x128xi32>,
    } else {
    }
    %c2 = arith.constant 2 : index
    %10 = memref.load %arg2[%c2] : memref<8xi32, #tpu.memory_space<smem>>
    %c0_i32_7 = arith.constant 0 : i32
    %11 = arith.cmpi ne, %10, %c0_i32_7 : i32
    %12 = arith.extui %11 : i1 to i32
    %c0_i32_8 = arith.constant 0 : i32
    %13 = arith.cmpi ne, %12, %c0_i32_8 : i32
    scf.if %13 {
      %c2_i32_31 = arith.constant 2 : i32
      %59 = vector.broadcast %c2_i32_31 : i32 to vector<256x128xi32>
      %60 = arith.cmpi eq, %1, %59 : vector<256x128xi32>
      %c2_32 = arith.constant 2 : index
      %61 = memref.load %arg1[%c2_32] : memref<8xf32, #tpu.memory_space<smem>>
      %c0_33 = arith.constant 0 : index
      %c0_34 = arith.constant 0 : index
      %62 = vector.load %arg4[%c0_33, %c0_34] : memref<256x128xf32, #tpu.memory_space<vmem>>, vector<256x128xf32>
      %63 = vector.broadcast %61 : f32 to vector<256x128xf32>
      %64 = arith.select %60, %63, %62 : vector<256x128xi1>, vector<256x128xf32>
      %c0_35 = arith.constant 0 : index
      %c0_36 = arith.constant 0 : index
      %65 = vector.load %arg4[%c0_35, %c0_36] : memref<256x128xf32, #tpu.memory_space<vmem>>, vector<256x128xf32>
      tpu.vector_store %arg4[%c0_35, %c0_36], %64 {strides = array<i32>} : memref<256x128xf32, #tpu.memory_space<vmem>>, vector<256x128xf32>,
      %c2_37 = arith.constant 2 : index
      %66 = memref.load %arg2[%c2_37] : memref<8xi32, #tpu.memory_space<smem>>
      %c0_38 = arith.constant 0 : index
      %c0_39 = arith.constant 0 : index
      %67 = vector.load %arg6[%c0_38, %c0_39] : memref<256x128xi32, #tpu.memory_space<vmem>>, vector<256x128xi32>
      %68 = vector.broadcast %66 : i32 to vector<256x128xi32>
      %69 = arith.select %60, %68, %67 : vector<256x128xi1>, vector<256x128xi32>
      %c0_40 = arith.constant 0 : index
      %c0_41 = arith.constant 0 : index
      %70 = vector.load %arg6[%c0_40, %c0_41] : memref<256x128xi32, #tpu.memory_space<vmem>>, vector<256x128xi32>
      tpu.vector_store %arg6[%c0_40, %c0_41], %69 {strides = array<i32>} : memref<256x128xi32, #tpu.memory_space<vmem>>, vector<256x128xi32>,
    } else {
    }
    %c3 = arith.constant 3 : index
    %14 = memref.load %arg2[%c3] : memref<8xi32, #tpu.memory_space<smem>>
    %c0_i32_9 = arith.constant 0 : i32
    %15 = arith.cmpi ne, %14, %c0_i32_9 : i32
    %16 = arith.extui %15 : i1 to i32
    %c0_i32_10 = arith.constant 0 : i32
    %17 = arith.cmpi ne, %16, %c0_i32_10 : i32
    scf.if %17 {
      %c3_i32 = arith.constant 3 : i32
      %59 = vector.broadcast %c3_i32 : i32 to vector<256x128xi32>
      %60 = arith.cmpi eq, %1, %59 : vector<256x128xi32>
      %c3_31 = arith.constant 3 : index
      %61 = memref.load %arg1[%c3_31] : memref<8xf32, #tpu.memory_space<smem>>
      %c0_32 = arith.constant 0 : index
      %c0_33 = arith.constant 0 : index
      %62 = vector.load %arg4[%c0_32, %c0_33] : memref<256x128xf32, #tpu.memory_space<vmem>>, vector<256x128xf32>
      %63 = vector.broadcast %61 : f32 to vector<256x128xf32>
      %64 = arith.select %60, %63, %62 : vector<256x128xi1>, vector<256x128xf32>
      %c0_34 = arith.constant 0 : index
      %c0_35 = arith.constant 0 : index
      %65 = vector.load %arg4[%c0_34, %c0_35] : memref<256x128xf32, #tpu.memory_space<vmem>>, vector<256x128xf32>
      tpu.vector_store %arg4[%c0_34, %c0_35], %64 {strides = array<i32>} : memref<256x128xf32, #tpu.memory_space<vmem>>, vector<256x128xf32>,
      %c3_36 = arith.constant 3 : index
      %66 = memref.load %arg2[%c3_36] : memref<8xi32, #tpu.memory_space<smem>>
      %c0_37 = arith.constant 0 : index
      %c0_38 = arith.constant 0 : index
      %67 = vector.load %arg6[%c0_37, %c0_38] : memref<256x128xi32, #tpu.memory_space<vmem>>, vector<256x128xi32>
      %68 = vector.broadcast %66 : i32 to vector<256x128xi32>
      %69 = arith.select %60, %68, %67 : vector<256x128xi1>, vector<256x128xi32>
      %c0_39 = arith.constant 0 : index
      %c0_40 = arith.constant 0 : index
      %70 = vector.load %arg6[%c0_39, %c0_40] : memref<256x128xi32, #tpu.memory_space<vmem>>, vector<256x128xi32>
      tpu.vector_store %arg6[%c0_39, %c0_40], %69 {strides = array<i32>} : memref<256x128xi32, #tpu.memory_space<vmem>>, vector<256x128xi32>,
    } else {
    }
    %c4 = arith.constant 4 : index
    %18 = memref.load %arg2[%c4] : memref<8xi32, #tpu.memory_space<smem>>
    %c0_i32_11 = arith.constant 0 : i32
    %19 = arith.cmpi ne, %18, %c0_i32_11 : i32
    %20 = arith.extui %19 : i1 to i32
    %c0_i32_12 = arith.constant 0 : i32
    %21 = arith.cmpi ne, %20, %c0_i32_12 : i32
    scf.if %21 {
      %c4_i32 = arith.constant 4 : i32
      %59 = vector.broadcast %c4_i32 : i32 to vector<256x128xi32>
      %60 = arith.cmpi eq, %1, %59 : vector<256x128xi32>
      %c4_31 = arith.constant 4 : index
      %61 = memref.load %arg1[%c4_31] : memref<8xf32, #tpu.memory_space<smem>>
      %c0_32 = arith.constant 0 : index
      %c0_33 = arith.constant 0 : index
      %62 = vector.load %arg4[%c0_32, %c0_33] : memref<256x128xf32, #tpu.memory_space<vmem>>, vector<256x128xf32>
      %63 = vector.broadcast %61 : f32 to vector<256x128xf32>
      %64 = arith.select %60, %63, %62 : vector<256x128xi1>, vector<256x128xf32>
      %c0_34 = arith.constant 0 : index
      %c0_35 = arith.constant 0 : index
      %65 = vector.load %arg4[%c0_34, %c0_35] : memref<256x128xf32, #tpu.memory_space<vmem>>, vector<256x128xf32>
      tpu.vector_store %arg4[%c0_34, %c0_35], %64 {strides = array<i32>} : memref<256x128xf32, #tpu.memory_space<vmem>>, vector<256x128xf32>,
      %c4_36 = arith.constant 4 : index
      %66 = memref.load %arg2[%c4_36] : memref<8xi32, #tpu.memory_space<smem>>
      %c0_37 = arith.constant 0 : index
      %c0_38 = arith.constant 0 : index
      %67 = vector.load %arg6[%c0_37, %c0_38] : memref<256x128xi32, #tpu.memory_space<vmem>>, vector<256x128xi32>
      %68 = vector.broadcast %66 : i32 to vector<256x128xi32>
      %69 = arith.select %60, %68, %67 : vector<256x128xi1>, vector<256x128xi32>
      %c0_39 = arith.constant 0 : index
      %c0_40 = arith.constant 0 : index
      %70 = vector.load %arg6[%c0_39, %c0_40] : memref<256x128xi32, #tpu.memory_space<vmem>>, vector<256x128xi32>
      tpu.vector_store %arg6[%c0_39, %c0_40], %69 {strides = array<i32>} : memref<256x128xi32, #tpu.memory_space<vmem>>, vector<256x128xi32>,
    } else {
    }
    %c5 = arith.constant 5 : index
    %22 = memref.load %arg2[%c5] : memref<8xi32, #tpu.memory_space<smem>>
    %c0_i32_13 = arith.constant 0 : i32
    %23 = arith.cmpi ne, %22, %c0_i32_13 : i32
    %24 = arith.extui %23 : i1 to i32
    %c0_i32_14 = arith.constant 0 : i32
    %25 = arith.cmpi ne, %24, %c0_i32_14 : i32
    scf.if %25 {
      %c5_i32 = arith.constant 5 : i32
      %59 = vector.broadcast %c5_i32 : i32 to vector<256x128xi32>
      %60 = arith.cmpi eq, %1, %59 : vector<256x128xi32>
      %c5_31 = arith.constant 5 : index
      %61 = memref.load %arg1[%c5_31] : memref<8xf32, #tpu.memory_space<smem>>
      %c0_32 = arith.constant 0 : index
      %c0_33 = arith.constant 0 : index
      %62 = vector.load %arg4[%c0_32, %c0_33] : memref<256x128xf32, #tpu.memory_space<vmem>>, vector<256x128xf32>
      %63 = vector.broadcast %61 : f32 to vector<256x128xf32>
      %64 = arith.select %60, %63, %62 : vector<256x128xi1>, vector<256x128xf32>
      %c0_34 = arith.constant 0 : index
      %c0_35 = arith.constant 0 : index
      %65 = vector.load %arg4[%c0_34, %c0_35] : memref<256x128xf32, #tpu.memory_space<vmem>>, vector<256x128xf32>
      tpu.vector_store %arg4[%c0_34, %c0_35], %64 {strides = array<i32>} : memref<256x128xf32, #tpu.memory_space<vmem>>, vector<256x128xf32>,
      %c5_36 = arith.constant 5 : index
      %66 = memref.load %arg2[%c5_36] : memref<8xi32, #tpu.memory_space<smem>>
      %c0_37 = arith.constant 0 : index
      %c0_38 = arith.constant 0 : index
      %67 = vector.load %arg6[%c0_37, %c0_38] : memref<256x128xi32, #tpu.memory_space<vmem>>, vector<256x128xi32>
      %68 = vector.broadcast %66 : i32 to vector<256x128xi32>
      %69 = arith.select %60, %68, %67 : vector<256x128xi1>, vector<256x128xi32>
      %c0_39 = arith.constant 0 : index
      %c0_40 = arith.constant 0 : index
      %70 = vector.load %arg6[%c0_39, %c0_40] : memref<256x128xi32, #tpu.memory_space<vmem>>, vector<256x128xi32>
      tpu.vector_store %arg6[%c0_39, %c0_40], %69 {strides = array<i32>} : memref<256x128xi32, #tpu.memory_space<vmem>>, vector<256x128xi32>,
    } else {
    }
    %c6 = arith.constant 6 : index
    %26 = memref.load %arg2[%c6] : memref<8xi32, #tpu.memory_space<smem>>
    %c0_i32_15 = arith.constant 0 : i32
    %27 = arith.cmpi ne, %26, %c0_i32_15 : i32
    %28 = arith.extui %27 : i1 to i32
    %c0_i32_16 = arith.constant 0 : i32
    %29 = arith.cmpi ne, %28, %c0_i32_16 : i32
    scf.if %29 {
      %c6_i32 = arith.constant 6 : i32
      %59 = vector.broadcast %c6_i32 : i32 to vector<256x128xi32>
      %60 = arith.cmpi eq, %1, %59 : vector<256x128xi32>
      %c6_31 = arith.constant 6 : index
      %61 = memref.load %arg1[%c6_31] : memref<8xf32, #tpu.memory_space<smem>>
      %c0_32 = arith.constant 0 : index
      %c0_33 = arith.constant 0 : index
      %62 = vector.load %arg4[%c0_32, %c0_33] : memref<256x128xf32, #tpu.memory_space<vmem>>, vector<256x128xf32>
      %63 = vector.broadcast %61 : f32 to vector<256x128xf32>
      %64 = arith.select %60, %63, %62 : vector<256x128xi1>, vector<256x128xf32>
      %c0_34 = arith.constant 0 : index
      %c0_35 = arith.constant 0 : index
      %65 = vector.load %arg4[%c0_34, %c0_35] : memref<256x128xf32, #tpu.memory_space<vmem>>, vector<256x128xf32>
      tpu.vector_store %arg4[%c0_34, %c0_35], %64 {strides = array<i32>} : memref<256x128xf32, #tpu.memory_space<vmem>>, vector<256x128xf32>,
      %c6_36 = arith.constant 6 : index
      %66 = memref.load %arg2[%c6_36] : memref<8xi32, #tpu.memory_space<smem>>
      %c0_37 = arith.constant 0 : index
      %c0_38 = arith.constant 0 : index
      %67 = vector.load %arg6[%c0_37, %c0_38] : memref<256x128xi32, #tpu.memory_space<vmem>>, vector<256x128xi32>
      %68 = vector.broadcast %66 : i32 to vector<256x128xi32>
      %69 = arith.select %60, %68, %67 : vector<256x128xi1>, vector<256x128xi32>
      %c0_39 = arith.constant 0 : index
      %c0_40 = arith.constant 0 : index
      %70 = vector.load %arg6[%c0_39, %c0_40] : memref<256x128xi32, #tpu.memory_space<vmem>>, vector<256x128xi32>
      tpu.vector_store %arg6[%c0_39, %c0_40], %69 {strides = array<i32>} : memref<256x128xi32, #tpu.memory_space<vmem>>, vector<256x128xi32>,
    } else {
    }
    %c7 = arith.constant 7 : index
    %30 = memref.load %arg2[%c7] : memref<8xi32, #tpu.memory_space<smem>>
    %c0_i32_17 = arith.constant 0 : i32
    %31 = arith.cmpi ne, %30, %c0_i32_17 : i32
    %32 = arith.extui %31 : i1 to i32
    %c0_i32_18 = arith.constant 0 : i32
    %33 = arith.cmpi ne, %32, %c0_i32_18 : i32
    scf.if %33 {
      %c7_i32 = arith.constant 7 : i32
      %59 = vector.broadcast %c7_i32 : i32 to vector<256x128xi32>
      %60 = arith.cmpi eq, %1, %59 : vector<256x128xi32>
      %c7_31 = arith.constant 7 : index
      %61 = memref.load %arg1[%c7_31] : memref<8xf32, #tpu.memory_space<smem>>
      %c0_32 = arith.constant 0 : index
      %c0_33 = arith.constant 0 : index
      %62 = vector.load %arg4[%c0_32, %c0_33] : memref<256x128xf32, #tpu.memory_space<vmem>>, vector<256x128xf32>
      %63 = vector.broadcast %61 : f32 to vector<256x128xf32>
      %64 = arith.select %60, %63, %62 : vector<256x128xi1>, vector<256x128xf32>
      %c0_34 = arith.constant 0 : index
      %c0_35 = arith.constant 0 : index
      %65 = vector.load %arg4[%c0_34, %c0_35] : memref<256x128xf32, #tpu.memory_space<vmem>>, vector<256x128xf32>
      tpu.vector_store %arg4[%c0_34, %c0_35], %64 {strides = array<i32>} : memref<256x128xf32, #tpu.memory_space<vmem>>, vector<256x128xf32>,
      %c7_36 = arith.constant 7 : index
      %66 = memref.load %arg2[%c7_36] : memref<8xi32, #tpu.memory_space<smem>>
      %c0_37 = arith.constant 0 : index
      %c0_38 = arith.constant 0 : index
      %67 = vector.load %arg6[%c0_37, %c0_38] : memref<256x128xi32, #tpu.memory_space<vmem>>, vector<256x128xi32>
      %68 = vector.broadcast %66 : i32 to vector<256x128xi32>
      %69 = arith.select %60, %68, %67 : vector<256x128xi1>, vector<256x128xi32>
      %c0_39 = arith.constant 0 : index
      %c0_40 = arith.constant 0 : index
      %70 = vector.load %arg6[%c0_39, %c0_40] : memref<256x128xi32, #tpu.memory_space<vmem>>, vector<256x128xi32>
      tpu.vector_store %arg6[%c0_39, %c0_40], %69 {strides = array<i32>} : memref<256x128xi32, #tpu.memory_space<vmem>>, vector<256x128xi32>,
    } else {
    }
    %c0_19 = arith.constant 0 : index
    %c0_20 = arith.constant 0 : index
    %34 = vector.load %arg6[%c0_19, %c0_20] : memref<256x128xi32, #tpu.memory_space<vmem>>, vector<256x128xi32>
    %c0_i32_21 = arith.constant 0 : i32
    %35 = vector.broadcast %c0_i32_21 : i32 to vector<256x128xi32>
    %36 = arith.cmpi eq, %34, %35 : vector<256x128xi32>
    %37 = arith.extui %36 : vector<256x128xi1> to vector<256x128xi32>
    %38 = arith.sitofp %37 : vector<256x128xi32> to vector<256x128xf32>
    %39 = arith.truncf %38 : vector<256x128xf32> to vector<256x128xbf16>
    %c0_22 = arith.constant 0 : index
    %c0_23 = arith.constant 0 : index
    %c0_24 = arith.constant 0 : index
    %40 = vector.load %arg5[%c0_22, %c0_23, %c0_24] : memref<3x256x128xbf16, #tpu.memory_space<vmem>>, vector<1x256x128xbf16>
    %41 = vector.shape_cast %40 : vector<1x256x128xbf16> to vector<256x128xbf16>
    %42 = vector.shape_cast %39 : vector<256x128xbf16> to vector<1x256x128xbf16>
    tpu.vector_store %arg5[%c0_22, %c0_23, %c0_24], %42 {strides = array<i32>} : memref<3x256x128xbf16, #tpu.memory_space<vmem>>, vector<1x256x128xbf16>,
    %c1_i32 = arith.constant 1 : i32
    %43 = vector.broadcast %c1_i32 : i32 to vector<256x128xi32>
    %44 = arith.cmpi eq, %34, %43 : vector<256x128xi32>
    %45 = arith.extui %44 : vector<256x128xi1> to vector<256x128xi32>
    %46 = arith.sitofp %45 : vector<256x128xi32> to vector<256x128xf32>
    %47 = arith.truncf %46 : vector<256x128xf32> to vector<256x128xbf16>
    %c1_25 = arith.constant 1 : index
    %c0_26 = arith.constant 0 : index
    %c0_27 = arith.constant 0 : index
    %48 = vector.load %arg5[%c1_25, %c0_26, %c0_27] : memref<3x256x128xbf16, #tpu.memory_space<vmem>>, vector<1x256x128xbf16>
    %49 = vector.shape_cast %48 : vector<1x256x128xbf16> to vector<256x128xbf16>
    %50 = vector.shape_cast %47 : vector<256x128xbf16> to vector<1x256x128xbf16>
    tpu.vector_store %arg5[%c1_25, %c0_26, %c0_27], %50 {strides = array<i32>} : memref<3x256x128xbf16, #tpu.memory_space<vmem>>, vector<1x256x128xbf16>,
    %c2_i32 = arith.constant 2 : i32
    %51 = vector.broadcast %c2_i32 : i32 to vector<256x128xi32>
    %52 = arith.cmpi eq, %34, %51 : vector<256x128xi32>
    %53 = arith.extui %52 : vector<256x128xi1> to vector<256x128xi32>
    %54 = arith.sitofp %53 : vector<256x128xi32> to vector<256x128xf32>
    %55 = arith.truncf %54 : vector<256x128xf32> to vector<256x128xbf16>
    %c2_28 = arith.constant 2 : index
    %c0_29 = arith.constant 0 : index
    %c0_30 = arith.constant 0 : index
    %56 = vector.load %arg5[%c2_28, %c0_29, %c0_30] : memref<3x256x128xbf16, #tpu.memory_space<vmem>>, vector<1x256x128xbf16>
    %57 = vector.shape_cast %56 : vector<1x256x128xbf16> to vector<256x128xbf16>
    %58 = vector.shape_cast %55 : vector<256x128xbf16> to vector<1x256x128xbf16>
    tpu.vector_store %arg5[%c2_28, %c0_29, %c0_30], %58 {strides = array<i32>} : memref<3x256x128xbf16, #tpu.memory_space<vmem>>, vector<1x256x128xbf16>,
    return
  }
  func.func @transform_0(%arg0: i32) -> i32 {
    %c0_i32 = arith.constant 0 : i32
    %c0_i32_0 = arith.constant 0 : i32
    return %c0_i32 : i32
  }
  func.func @transform_1(%arg0: i32) -> i32 {
    %c0_i32 = arith.constant 0 : i32
    %c0_i32_0 = arith.constant 0 : i32
    return %c0_i32 : i32
  }
  func.func @transform_2(%arg0: i32) -> (i32, i32) {
    %c0_i32 = arith.constant 0 : i32
    %c0_i32_0 = arith.constant 0 : i32
    return %arg0, %c0_i32 : i32, i32
  }
  func.func @transform_3(%arg0: i32) -> (i32, i32) {
    %c0_i32 = arith.constant 0 : i32
    %c0_i32_0 = arith.constant 0 : i32
    return %arg0, %c0_i32 : i32, i32
  }
  func.func @transform_4(%arg0: i32) -> (i32, i32, i32) {
    %c0_i32 = arith.constant 0 : i32
    %c0_i32_0 = arith.constant 0 : i32
    %c0_i32_1 = arith.constant 0 : i32
    return %c0_i32, %arg0, %c0_i32_0 : i32, i32, i32
  }
}

</mosaic_0001>

<llo_original>
// kernel: tpu_custom_call.1
$region0: #{tpu_custom_call.1}
  #allocation0 [shape = 'u32[]', space=smem, size = 0x4, offset = 0x4, fixed_abs, tag = 'smem constant byte address 0x4 - core index']
  #allocation1 [shape = 'u32[144,128]{1,0:T(1,128)}', space=vmem, size = 0x12000, scoped, tag = 'internal scratch']
  #allocation2 [shape = 's32[256,128]{1,0:T(8,128)}', space=vmem, size = 0x20000, scoped, tag = 'scratch operand']
  #allocation13 [shape = 's32[]', space=sflag, size = 0x4, offset = 0, fixed_abs, tag = 'sflag constant byte address 0x0 - dummy sync flag']
  %s0 = inlined_call_operand.hbm [shape: f32[8], index: 0, kind: input, shape index: {}]
  %s1 = inlined_call_operand.hbm [shape: s32[8], index: 1, kind: input, shape index: {}]
  %s2 = inlined_call_operand.hbm [shape: s8[2048,128], index: 2, kind: input, shape index: {}]
  %s3 = inlined_call_operand.hbm [shape: f32[2048,128], index: 3, kind: output, shape index: {0}]
  %s4 = inlined_call_operand.hbm [shape: bf16[3,2048,128], index: 4, kind: output, shape index: {1}]
  %5 = xla_tuple %s3, %s4
  %s6 = sld [smem:[#allocation0]]
  $region93: #{tpu_custom_call.1} parent=0
    _
  %s8 = ssub.s32 1, %s6
  %s9 = scalar_select 0, %s8, %s6
  $region1: #{tpu_custom_call.1} parent=0
    #allocation3 [shape = 'u8[512]{0}', space=smem, size = 0x200, scoped, tag = 'input window, operand 0, single buffered']
    #allocation4 [shape = 's32[2]{0}', space=sflag, size = 0x8, scoped, tag = 'scoped memory for tpu_custom_call.1']
    #allocation5 [shape = 's32[2]{0}', space=sflag, size = 0x8, scoped, tag = 'scoped memory for tpu_custom_call.1']
    #allocation6 [shape = 's32[2]{0}', space=sflag, size = 0x8, scoped, tag = 'scoped memory for tpu_custom_call.1']
    #allocation7 [shape = 'u8[512]{0}', space=smem, size = 0x200, scoped, tag = 'input window, operand 1, single buffered']
    #allocation8 [shape = 's32[1]{0}', space=sflag, size = 0x4, scoped, tag = 'scoped memory for tpu_custom_call.1']
    #allocation9 [shape = 'u8[65536]{0}', space=vmem, size = 0x10000, scoped, tag = 'input window, operand 2']
    #allocation10 [shape = 'u8[262144]{0}', space=vmem, size = 0x40000, scoped, tag = 'output window, operand 0']
    #allocation11 [shape = 'u8[393216]{0}', space=vmem, size = 0x60000, scoped, tag = 'output window, operand 1']
    #allocation12 [shape = 's32[2]{0}', space=sflag, size = 0x8, scoped, tag = 'scoped memory for tpu_custom_call.1']
    %10 = vsyncpa [#allocation6], 0
    %11 = vsyncpa [#allocation8], 0
    %12 = vsyncpa [#allocation4], 0
    %s13 = scalar_lea.sflag [#allocation4], 1
    %14 = vsyncpa %s13, 0
    %15 = vsyncpa [#allocation5], 0
    %s16 = scalar_lea.sflag [#allocation5], 1
    %17 = vsyncpa %s16, 0
    %18 = vsyncpa [#allocation12], 0
    %s19 = scalar_lea.sflag [#allocation12], 1
    %20 = vsyncpa %s19, 0
    loop: start=0, step=1, limit=10
    $region2: #{tpu_custom_call.1} parent=1 // loop_pre_header
      _
    $region3: #{tpu_custom_call.1} parent=1 // loop_header
      %s22 = sphi 0, %s26
      %p23 = scmp.ge.s32.totalorder %s22, 10
      %s30 = sphi 0, %s30
      %s32 = sphi 0, %s30
      %s33 = sphi 0, %s32
      %s47 = sphi 0, %s33
      %s51 = sphi 0, %s51
      %s53 = sphi 0, %s51
      %s54 = sphi 0, %s53
      %s68 = sphi 0, %s54
      %s74 = sphi 0, %s76
      %s77 = sphi 0, %s74
      %s78 = sphi 0, %s77
      %s94 = sphi 0, %s78
      %s100 = sphi 0, %s102
      %s103 = sphi 0, %s100
      %s104 = sphi 0, %s103
      %s120 = sphi 0, %s104
      %s126 = sphi 0, %s128
      %s129 = sphi 0, %s126
      %s130 = sphi 0, %s129
      %s146 = sphi 0, %s130
    $region4: #{tpu_custom_call.1} parent=1 // loop_header_branch
      %25 = sbr.rel (%p23) target = $region8
    $region5: #{tpu_custom_call.1} parent=1 // loop_body
      %s27 = ssub.s32 %s22, 1
      %s28 = ssub.s32 %s22, 2
      %s29 = sadd.s32 %s22, 1
      %s31 = sadd.s32 %s30, 1
      %p34 = scmp.eq.s32.totalorder %s22, 7
      %p35 = scmp.ne.s32.totalorder %s30, %s32
      %p36 = scmp.eq.s32.totalorder %s22, 0
      %p37 = por %p35, %p36
      %p38 = scmp.ne.s32.totalorder %s30, %s32
      %p39 = scmp.eq.s32.totalorder %s27, 7
      %p40 = por %p38, %p39
      %p41 = scmp.ne.s32.totalorder %s32, %s33
      %p42 = scmp.eq.s32.totalorder %s27, 0
      %p43 = por %p41, %p42
      %p44 = scmp.ne.s32.totalorder %s32, %s33
      %p45 = scmp.eq.s32.totalorder %s28, 7
      %p46 = por %p44, %p45
      %p48 = scmp.ne.s32.totalorder %s33, %s47
      %p49 = scmp.eq.s32.totalorder %s28, 0
      %p50 = por %p48, %p49
      %s52 = sadd.s32 %s51, 1
      %p55 = scmp.eq.s32.totalorder %s22, 7
      %p56 = scmp.ne.s32.totalorder %s51, %s53
      %p57 = scmp.eq.s32.totalorder %s22, 0
      %p58 = por %p56, %p57
      %p59 = scmp.ne.s32.totalorder %s51, %s53
      %p60 = scmp.eq.s32.totalorder %s27, 7
      %p61 = por %p59, %p60
      %p62 = scmp.ne.s32.totalorder %s53, %s54
      %p63 = scmp.eq.s32.totalorder %s27, 0
      %p64 = por %p62, %p63
      %p65 = scmp.ne.s32.totalorder %s53, %s54
      %p66 = scmp.eq.s32.totalorder %s28, 7
      %p67 = por %p65, %p66
      %p69 = scmp.ne.s32.totalorder %s54, %s68
      %p70 = scmp.eq.s32.totalorder %s28, 0
      %p71 = por %p69, %p70
      %s72 = ssub.s32 %s22, %s29
      %p73 = scmp.eq.s32.totalorder %s72, 0
      %s75 = sadd.s32 %s74, 1
      %s76 = scalar_select %p73, %s74, %s75
      %p79 = pneg %p73
      %p80 = scmp.eq.s32.totalorder %s22, 7
      %p81 = por %p79, %p80
      %p82 = scmp.ne.s32.totalorder %s74, %s77
      %p83 = scmp.eq.s32.totalorder %s22, 0
      %p84 = por %p82, %p83
      %p85 = scmp.ne.s32.totalorder %s74, %s77
      %p86 = scmp.eq.s32.totalorder %s27, 7
      %p87 = por %p85, %p86
      %p88 = scmp.ne.s32.totalorder %s77, %s78
      %p89 = scmp.eq.s32.totalorder %s27, 0
      %p90 = por %p88, %p89
      %p91 = scmp.ne.s32.totalorder %s77, %s78
      %p92 = scmp.eq.s32.totalorder %s28, 7
      %p93 = por %p91, %p92
      %p95 = scmp.ne.s32.totalorder %s78, %s94
      %p96 = scmp.eq.s32.totalorder %s28, 0
      %p97 = por %p95, %p96
      %s98 = ssub.s32 %s22, %s29
      %p99 = scmp.eq.s32.totalorder %s98, 0
      %s101 = sadd.s32 %s100, 1
      %s102 = scalar_select %p99, %s100, %s101
      %p105 = pneg %p99
      %p106 = scmp.eq.s32.totalorder %s22, 7
      %p107 = por %p105, %p106
      %p108 = scmp.ne.s32.totalorder %s100, %s103
      %p109 = scmp.eq.s32.totalorder %s22, 0
      %p110 = por %p108, %p109
      %p111 = scmp.ne.s32.totalorder %s100, %s103
      %p112 = scmp.eq.s32.totalorder %s27, 7
      %p113 = por %p111, %p112
      %p114 = scmp.ne.s32.totalorder %s103, %s104
      %p115 = scmp.eq.s32.totalorder %s27, 0
      %p116 = por %p114, %p115
      %p117 = scmp.ne.s32.totalorder %s103, %s104
      %p118 = scmp.eq.s32.totalorder %s28, 7
      %p119 = por %p117, %p118
      %p121 = scmp.ne.s32.totalorder %s104, %s120
      %p122 = scmp.eq.s32.totalorder %s28, 0
      %p123 = por %p121, %p122
      %s124 = ssub.s32 %s22, %s29
      %p125 = scmp.eq.s32.totalorder %s124, 0
      %s127 = sadd.s32 %s126, 1
      %s128 = scalar_select %p125, %s126, %s127
      %p131 = pneg %p125
      %p132 = scmp.eq.s32.totalorder %s22, 7
      %p133 = por %p131, %p132
      %p134 = scmp.ne.s32.totalorder %s126, %s129
      %p135 = scmp.eq.s32.totalorder %s22, 0
      %p136 = por %p134, %p135
      %p137 = scmp.ne.s32.totalorder %s126, %s129
      %p138 = scmp.eq.s32.totalorder %s27, 7
      %p139 = por %p137, %p138
      %p140 = scmp.ne.s32.totalorder %s129, %s130
      %p141 = scmp.eq.s32.totalorder %s27, 0
      %p142 = por %p140, %p141
      %p143 = scmp.ne.s32.totalorder %s129, %s130
      %p144 = scmp.eq.s32.totalorder %s28, 7
      %p145 = por %p143, %p144
      %p147 = scmp.ne.s32.totalorder %s130, %s146
      %p148 = scmp.eq.s32.totalorder %s28, 0
      %p149 = por %p147, %p148
      %p150 = scmp.le.s32.totalorder 1, %s22
      %p151 = scmp.lt.s32.totalorder %s22, 9
      %p152 = pnand %p150, %p151
      %p153 = pneg %p152
      // Predicated region
      $region9: #{tpu_custom_call.1} parent=5 // pred_check
        _
      $region10: #{tpu_custom_call.1} parent=5 // pred_check_branch
        %155 = sbr.rel (%p152) target = $region12
      $region11: #{tpu_custom_call.1} parent=5 // pred_region
        %s156 = ssub.s32 %s22, 1
        // Predicated region
        $region13: #{tpu_custom_call.1} parent=11 // pred_check
          %p157 = pneg %p43
        $region14: #{tpu_custom_call.1} parent=11 // pred_check_branch
          %159 = sbr.rel (%p157) target = $region16
        $region15: #{tpu_custom_call.1} parent=11 // pred_region
          %s161 = ssub.s32 16, 16
          %162 = vsyncadd [#allocation6], %s161
          %165 = dma.hbm_to_smem %s0, 16, [#allocation3], [#allocation6]
        $region16: #{tpu_custom_call.1} parent=11 // pred_fallthru
          _
        // Predicated region
        $region17: #{tpu_custom_call.1} parent=11 // pred_check
          %p166 = pneg %p64
        $region18: #{tpu_custom_call.1} parent=11 // pred_check_branch
          %168 = sbr.rel (%p166) target = $region20
        $region19: #{tpu_custom_call.1} parent=11 // pred_region
          %s170 = ssub.s32 16, 16
          %171 = vsyncadd [#allocation8], %s170
          %174 = dma.hbm_to_smem %s1, 16, [#allocation7], [#allocation8]
        $region20: #{tpu_custom_call.1} parent=11 // pred_fallthru
          _
      $region12: #{tpu_custom_call.1} parent=5 // pred_fallthru
        _
      %p175 = scmp.lt.s32.totalorder %s22, 8
      // Predicated region
      $region21: #{tpu_custom_call.1} parent=5 // pred_check
        %p176 = pneg %p175
      $region22: #{tpu_custom_call.1} parent=5 // pred_check_branch
        %178 = sbr.rel (%p176) target = $region24
      $region23: #{tpu_custom_call.1} parent=5 // pred_region
        // Predicated region
        $region25: #{tpu_custom_call.1} parent=23 // pred_check
          %p179 = pneg %p84
        $region26: #{tpu_custom_call.1} parent=23 // pred_check_branch
          %181 = sbr.rel (%p179) target = $region28
        $region27: #{tpu_custom_call.1} parent=23 // pred_region
          %s182 = sand.u32 %s74, 1
          %s183 = scalar_lea.sflag [#allocation4], %s182
          %s184 = sand.u32 %s74, 1
          %s185 = smul.addr %s184, 64
          %s186 = scalar_lea.vmem [#allocation9], %s185
          %s187 = smul.u32 8, %s22
          %s189 = ssub.s32 1024, 1024
          %190 = vsyncadd %s183, %s189
          %s191 = smul.addr %s187, 128
          %s192 = scalar_lea.hbm %s2, %s191
          %s193 = sshll.u32 %s186, 4
          %s194 = int_to_ptr.vmem [resolvable:$true] %s193
          %199 = dma.hbm_to_vmem [thread:$0]  %s192, 1024, %s194, %s183, 128, 128, 8
        $region28: #{tpu_custom_call.1} parent=23 // pred_fallthru
          _
      $region24: #{tpu_custom_call.1} parent=5 // pred_fallthru
        _
      %p200 = scmp.le.s32.totalorder 1, %s22
      %p201 = scmp.lt.s32.totalorder %s22, 9
      %p202 = pnand %p200, %p201
      %p203 = pneg %p202
      // Predicated region
      $region29: #{tpu_custom_call.1} parent=5 // pred_check
        _
      $region30: #{tpu_custom_call.1} parent=5 // pred_check_branch
        %205 = sbr.rel (%p202) target = $region32
      $region31: #{tpu_custom_call.1} parent=5 // pred_region
        %s206 = ssub.s32 %s22, 1
        // Predicated region
        $region33: #{tpu_custom_call.1} parent=31 // pred_check
          %p207 = pneg %p43
        $region34: #{tpu_custom_call.1} parent=31 // pred_check_branch
          %209 = sbr.rel (%p207) target = $region36
        $region35: #{tpu_custom_call.1} parent=31 // pred_region
          %210 = dma.done [#allocation6], 16
        $region36: #{tpu_custom_call.1} parent=31 // pred_fallthru
          _
        // Predicated region
        $region37: #{tpu_custom_call.1} parent=31 // pred_check
          %p211 = pneg %p64
        $region38: #{tpu_custom_call.1} parent=31 // pred_check_branch
          %213 = sbr.rel (%p211) target = $region40
        $region39: #{tpu_custom_call.1} parent=31 // pred_region
          %214 = dma.done [#allocation8], 16
        $region40: #{tpu_custom_call.1} parent=31 // pred_fallthru
          _
        %s215 = sand.u32 %s77, 1
        %s216 = scalar_lea.sflag [#allocation4], %s215
        %s217 = sand.u32 %s77, 1
        %s218 = smul.addr %s217, 64
        %s219 = scalar_lea.vmem [#allocation9], %s218
        // Predicated region
        $region41: #{tpu_custom_call.1} parent=31 // pred_check
          %p220 = pneg %p90
        $region42: #{tpu_custom_call.1} parent=31 // pred_check_branch
          %222 = sbr.rel (%p220) target = $region44
        $region43: #{tpu_custom_call.1} parent=31 // pred_region
          %223 = dma.done %s216, 1024
        $region44: #{tpu_custom_call.1} parent=31 // pred_fallthru
          _
        %224 = sfence
        %p225 = pneg %p43
        %p226 = pneg %p40
        %p227 = pneg %p64
        %p228 = pneg %p61
        %s229 = sand.u32 %s77, 1
        %s230 = scalar_lea.sflag [#allocation4], %s229
        %s231 = sand.u32 %s77, 1
        %s232 = smul.addr %s231, 64
        %s233 = scalar_lea.vmem [#allocation9], %s232
        %p234 = pneg %p90
        %p235 = pneg %p87
        %p236 = pneg %p116
        %p237 = pneg %p113
        %s238 = sand.u32 %s103, 1
        %s239 = scalar_lea.sflag [#allocation5], %s238
        %s240 = sand.u32 %s103, 1
        %s241 = smul.addr %s240, 256
        %s242 = scalar_lea.vmem [#allocation10], %s241
        %p243 = pneg %p142
        %p244 = pneg %p139
        %s245 = sand.u32 %s129, 1
        %s246 = scalar_lea.sflag [#allocation12], %s245
        %s247 = sand.u32 %s129, 1
        %s248 = smul.addr %s247, 384
        %s249 = scalar_lea.vmem [#allocation11], %s248
        %s250 = smul.u32 8, %s27
        %s251 = smul.u32 32, %s27
        %s252 = smul.u32 32, %s27
        %v253 = vld [vmem:[%s219] sm:$0xff]
        %v254 = vld [vmem:[%s219 + $0x8] sm:$0xff]
        %v255 = vld [vmem:[%s219 + $0x10] sm:$0xff]
        %v256 = vld [vmem:[%s219 + $0x18] sm:$0xff]
        %v257 = vld [vmem:[%s219 + $0x20] sm:$0xff]
        %v258 = vld [vmem:[%s219 + $0x28] sm:$0xff]
        %v259 = vld [vmem:[%s219 + $0x30] sm:$0xff]
        %v260 = vld [vmem:[%s219 + $0x38] sm:$0xff]
        %v261 = vunpack.c.0.s8 %v253
        %v262 = vunpack.c.1.s8 %v253
        %v263 = vunpack.c.2.s8 %v253
        %v264 = vunpack.c.3.s8 %v253
        %v265 = vunpack.c.0.s8 %v254
        %v266 = vunpack.c.1.s8 %v254
        %v267 = vunpack.c.2.s8 %v254
        %v268 = vunpack.c.3.s8 %v254
        %v269 = vunpack.c.0.s8 %v255
        %v270 = vunpack.c.1.s8 %v255
        %v271 = vunpack.c.2.s8 %v255
        %v272 = vunpack.c.3.s8 %v255
        %v273 = vunpack.c.0.s8 %v256
        %v274 = vunpack.c.1.s8 %v256
        %v275 = vunpack.c.2.s8 %v256
        %v276 = vunpack.c.3.s8 %v256
        %v277 = vunpack.c.0.s8 %v257
        %v278 = vunpack.c.1.s8 %v257
        %v279 = vunpack.c.2.s8 %v257
        %v280 = vunpack.c.3.s8 %v257
        %v281 = vunpack.c.0.s8 %v258
        %v282 = vunpack.c.1.s8 %v258
        %v283 = vunpack.c.2.s8 %v258
        %v284 = vunpack.c.3.s8 %v258
        %v285 = vunpack.c.0.s8 %v259
        %v286 = vunpack.c.1.s8 %v259
        %v287 = vunpack.c.2.s8 %v259
        %v288 = vunpack.c.3.s8 %v259
        %v289 = vunpack.c.0.s8 %v260
        %v290 = vunpack.c.1.s8 %v260
        %v291 = vunpack.c.2.s8 %v260
        %v292 = vunpack.c.3.s8 %v260
        %293 = vst [vmem:[%s242] sm:$0xff] 1.0
        %294 = vst [vmem:[%s242 + $0x8] sm:$0xff] 1.0
        %295 = vst [vmem:[%s242 + $0x10] sm:$0xff] 1.0
        %296 = vst [vmem:[%s242 + $0x18] sm:$0xff] 1.0
        %297 = vst [vmem:[%s242 + $0x20] sm:$0xff] 1.0
        %298 = vst [vmem:[%s242 + $0x28] sm:$0xff] 1.0
        %299 = vst [vmem:[%s242 + $0x30] sm:$0xff] 1.0
        %300 = vst [vmem:[%s242 + $0x38] sm:$0xff] 1.0
        %301 = vst [vmem:[%s242 + $0x40] sm:$0xff] 1.0
        %302 = vst [vmem:[%s242 + $0x48] sm:$0xff] 1.0
        %303 = vst [vmem:[%s242 + $0x50] sm:$0xff] 1.0
        %304 = vst [vmem:[%s242 + $0x58] sm:$0xff] 1.0
        %305 = vst [vmem:[%s242 + $0x60] sm:$0xff] 1.0
        %306 = vst [vmem:[%s242 + $0x68] sm:$0xff] 1.0
        %307 = vst [vmem:[%s242 + $0x70] sm:$0xff] 1.0
        %308 = vst [vmem:[%s242 + $0x78] sm:$0xff] 1.0
        %309 = vst [vmem:[%s242 + $0x80] sm:$0xff] 1.0
        %310 = vst [vmem:[%s242 + $0x88] sm:$0xff] 1.0
        %311 = vst [vmem:[%s242 + $0x90] sm:$0xff] 1.0
        %312 = vst [vmem:[%s242 + $0x98] sm:$0xff] 1.0
        %313 = vst [vmem:[%s242 + $0xa0] sm:$0xff] 1.0
        %314 = vst [vmem:[%s242 + $0xa8] sm:$0xff] 1.0
        %315 = vst [vmem:[%s242 + $0xb0] sm:$0xff] 1.0
        %316 = vst [vmem:[%s242 + $0xb8] sm:$0xff] 1.0
        %317 = vst [vmem:[%s242 + $0xc0] sm:$0xff] 1.0
        %318 = vst [vmem:[%s242 + $0xc8] sm:$0xff] 1.0
        %319 = vst [vmem:[%s242 + $0xd0] sm:$0xff] 1.0
        %320 = vst [vmem:[%s242 + $0xd8] sm:$0xff] 1.0
        %321 = vst [vmem:[%s242 + $0xe0] sm:$0xff] 1.0
        %322 = vst [vmem:[%s242 + $0xe8] sm:$0xff] 1.0
        %323 = vst [vmem:[%s242 + $0xf0] sm:$0xff] 1.0
        %324 = vst [vmem:[%s242 + $0xf8] sm:$0xff] 1.0
        %325 = vst [vmem:[#allocation2] sm:$0xff] 0
        %326 = vst [vmem:[#allocation2 + $0x8] sm:$0xff] 0
        %327 = vst [vmem:[#allocation2 + $0x10] sm:$0xff] 0
        %328 = vst [vmem:[#allocation2 + $0x18] sm:$0xff] 0
        %329 = vst [vmem:[#allocation2 + $0x20] sm:$0xff] 0
        %330 = vst [vmem:[#allocation2 + $0x28] sm:$0xff] 0
        %331 = vst [vmem:[#allocation2 + $0x30] sm:$0xff] 0
        %332 = vst [vmem:[#allocation2 + $0x38] sm:$0xff] 0
        %333 = vst [vmem:[#allocation2 + $0x40] sm:$0xff] 0
        %334 = vst [vmem:[#allocation2 + $0x48] sm:$0xff] 0
        %335 = vst [vmem:[#allocation2 + $0x50] sm:$0xff] 0
        %336 = vst [vmem:[#allocation2 + $0x58] sm:$0xff] 0
        %337 = vst [vmem:[#allocation2 + $0x60] sm:$0xff] 0
        %338 = vst [vmem:[#allocation2 + $0x68] sm:$0xff] 0
        %339 = vst [vmem:[#allocation2 + $0x70] sm:$0xff] 0
        %340 = vst [vmem:[#allocation2 + $0x78] sm:$0xff] 0
        %341 = vst [vmem:[#allocation2 + $0x80] sm:$0xff] 0
        %342 = vst [vmem:[#allocation2 + $0x88] sm:$0xff] 0
        %343 = vst [vmem:[#allocation2 + $0x90] sm:$0xff] 0
        %344 = vst [vmem:[#allocation2 + $0x98] sm:$0xff] 0
        %345 = vst [vmem:[#allocation2 + $0xa0] sm:$0xff] 0
        %346 = vst [vmem:[#allocation2 + $0xa8] sm:$0xff] 0
        %347 = vst [vmem:[#allocation2 + $0xb0] sm:$0xff] 0
        %348 = vst [vmem:[#allocation2 + $0xb8] sm:$0xff] 0
        %349 = vst [vmem:[#allocation2 + $0xc0] sm:$0xff] 0
        %350 = vst [vmem:[#allocation2 + $0xc8] sm:$0xff] 0
        %351 = vst [vmem:[#allocation2 + $0xd0] sm:$0xff] 0
        %352 = vst [vmem:[#allocation2 + $0xd8] sm:$0xff] 0
        %353 = vst [vmem:[#allocation2 + $0xe0] sm:$0xff] 0
        %354 = vst [vmem:[#allocation2 + $0xe8] sm:$0xff] 0
        %355 = vst [vmem:[#allocation2 + $0xf0] sm:$0xff] 0
        %356 = vst [vmem:[#allocation2 + $0xf8] sm:$0xff] 0
        %s357 = sld [smem:[#allocation7 + $0x1]]
        %p358 = scmp.ne.s32.totalorder %s357, 0
        // Predicated region
        $region45: #{tpu_custom_call.1} parent=31 // pred_check
          %p359 = pneg %p358
        $region46: #{tpu_custom_call.1} parent=31 // pred_check_branch
          %361 = sbr.rel (%p359) target = $region48
        $region47: #{tpu_custom_call.1} parent=31 // pred_region
          %vm362 = vcmp.eq.s32.totalorder %v261, 1
          %vm363 = vcmp.eq.s32.totalorder %v262, 1
          %vm364 = vcmp.eq.s32.totalorder %v263, 1
          %vm365 = vcmp.eq.s32.totalorder %v264, 1
          %vm366 = vcmp.eq.s32.totalorder %v265, 1
          %vm367 = vcmp.eq.s32.totalorder %v266, 1
          %vm368 = vcmp.eq.s32.totalorder %v267, 1
          %vm369 = vcmp.eq.s32.totalorder %v268, 1
          %vm370 = vcmp.eq.s32.totalorder %v269, 1
          %vm371 = vcmp.eq.s32.totalorder %v270, 1
          %vm372 = vcmp.eq.s32.totalorder %v271, 1
          %vm373 = vcmp.eq.s32.totalorder %v272, 1
          %vm374 = vcmp.eq.s32.totalorder %v273, 1
          %vm375 = vcmp.eq.s32.totalorder %v274, 1
          %vm376 = vcmp.eq.s32.totalorder %v275, 1
          %vm377 = vcmp.eq.s32.totalorder %v276, 1
          %vm378 = vcmp.eq.s32.totalorder %v277, 1
          %vm379 = vcmp.eq.s32.totalorder %v278, 1
          %vm380 = vcmp.eq.s32.totalorder %v279, 1
          %vm381 = vcmp.eq.s32.totalorder %v280, 1
          %vm382 = vcmp.eq.s32.totalorder %v281, 1
          %vm383 = vcmp.eq.s32.totalorder %v282, 1
          %vm384 = vcmp.eq.s32.totalorder %v283, 1
          %vm385 = vcmp.eq.s32.totalorder %v284, 1
          %vm386 = vcmp.eq.s32.totalorder %v285, 1
          %vm387 = vcmp.eq.s32.totalorder %v286, 1
          %vm388 = vcmp.eq.s32.totalorder %v287, 1
          %vm389 = vcmp.eq.s32.totalorder %v288, 1
          %vm390 = vcmp.eq.s32.totalorder %v289, 1
          %vm391 = vcmp.eq.s32.totalorder %v290, 1
          %vm392 = vcmp.eq.s32.totalorder %v291, 1
          %vm393 = vcmp.eq.s32.totalorder %v292, 1
          %s394 = sld [smem:[#allocation3 + $0x1]]
          %v395 = vld [vmem:[%s242] sm:$0xff]
          %v396 = vld [vmem:[%s242 + $0x8] sm:$0xff]
          %v397 = vld [vmem:[%s242 + $0x10] sm:$0xff]
          %v398 = vld [vmem:[%s242 + $0x18] sm:$0xff]
          %v399 = vld [vmem:[%s242 + $0x20] sm:$0xff]
          %v400 = vld [vmem:[%s242 + $0x28] sm:$0xff]
          %v401 = vld [vmem:[%s242 + $0x30] sm:$0xff]
          %v402 = vld [vmem:[%s242 + $0x38] sm:$0xff]
          %v403 = vld [vmem:[%s242 + $0x40] sm:$0xff]
          %v404 = vld [vmem:[%s242 + $0x48] sm:$0xff]
          %v405 = vld [vmem:[%s242 + $0x50] sm:$0xff]
          %v406 = vld [vmem:[%s242 + $0x58] sm:$0xff]
          %v407 = vld [vmem:[%s242 + $0x60] sm:$0xff]
          %v408 = vld [vmem:[%s242 + $0x68] sm:$0xff]
          %v409 = vld [vmem:[%s242 + $0x70] sm:$0xff]
          %v410 = vld [vmem:[%s242 + $0x78] sm:$0xff]
          %v411 = vld [vmem:[%s242 + $0x80] sm:$0xff]
          %v412 = vld [vmem:[%s242 + $0x88] sm:$0xff]
          %v413 = vld [vmem:[%s242 + $0x90] sm:$0xff]
          %v414 = vld [vmem:[%s242 + $0x98] sm:$0xff]
          %v415 = vld [vmem:[%s242 + $0xa0] sm:$0xff]
          %v416 = vld [vmem:[%s242 + $0xa8] sm:$0xff]
          %v417 = vld [vmem:[%s242 + $0xb0] sm:$0xff]
          %v418 = vld [vmem:[%s242 + $0xb8] sm:$0xff]
          %v419 = vld [vmem:[%s242 + $0xc0] sm:$0xff]
          %v420 = vld [vmem:[%s242 + $0xc8] sm:$0xff]
          %v421 = vld [vmem:[%s242 + $0xd0] sm:$0xff]
          %v422 = vld [vmem:[%s242 + $0xd8] sm:$0xff]
          %v423 = vld [vmem:[%s242 + $0xe0] sm:$0xff]
          %v424 = vld [vmem:[%s242 + $0xe8] sm:$0xff]
          %v425 = vld [vmem:[%s242 + $0xf0] sm:$0xff]
          %v426 = vld [vmem:[%s242 + $0xf8] sm:$0xff]
          %v427 = vstv %s394
          %v428 = vsel %vm362, %v427, %v395
          %v429 = vsel %vm363, %v427, %v396
          %v430 = vsel %vm364, %v427, %v397
          %v431 = vsel %vm365, %v427, %v398
          %v432 = vsel %vm366, %v427, %v399
          %v433 = vsel %vm367, %v427, %v400
          %v434 = vsel %vm368, %v427, %v401
          %v435 = vsel %vm369, %v427, %v402
          %v436 = vsel %vm370, %v427, %v403
          %v437 = vsel %vm371, %v427, %v404
          %v438 = vsel %vm372, %v427, %v405
          %v439 = vsel %vm373, %v427, %v406
          %v440 = vsel %vm374, %v427, %v407
          %v441 = vsel %vm375, %v427, %v408
          %v442 = vsel %vm376, %v427, %v409
          %v443 = vsel %vm377, %v427, %v410
          %v444 = vsel %vm378, %v427, %v411
          %v445 = vsel %vm379, %v427, %v412
          %v446 = vsel %vm380, %v427, %v413
          %v447 = vsel %vm381, %v427, %v414
          %v448 = vsel %vm382, %v427, %v415
          %v449 = vsel %vm383, %v427, %v416
          %v450 = vsel %vm384, %v427, %v417
          %v451 = vsel %vm385, %v427, %v418
          %v452 = vsel %vm386, %v427, %v419
          %v453 = vsel %vm387, %v427, %v420
          %v454 = vsel %vm388, %v427, %v421
          %v455 = vsel %vm389, %v427, %v422
          %v456 = vsel %vm390, %v427, %v423
          %v457 = vsel %vm391, %v427, %v424
          %v458 = vsel %vm392, %v427, %v425
          %v459 = vsel %vm393, %v427, %v426
          %460 = vst [vmem:[%s242] sm:$0xff] %v428
          %461 = vst [vmem:[%s242 + $0x8] sm:$0xff] %v429
          %462 = vst [vmem:[%s242 + $0x10] sm:$0xff] %v430
          %463 = vst [vmem:[%s242 + $0x18] sm:$0xff] %v431
          %464 = vst [vmem:[%s242 + $0x20] sm:$0xff] %v432
          %465 = vst [vmem:[%s242 + $0x28] sm:$0xff] %v433
          %466 = vst [vmem:[%s242 + $0x30] sm:$0xff] %v434
          %467 = vst [vmem:[%s242 + $0x38] sm:$0xff] %v435
          %468 = vst [vmem:[%s242 + $0x40] sm:$0xff] %v436
          %469 = vst [vmem:[%s242 + $0x48] sm:$0xff] %v437
          %470 = vst [vmem:[%s242 + $0x50] sm:$0xff] %v438
          %471 = vst [vmem:[%s242 + $0x58] sm:$0xff] %v439
          %472 = vst [vmem:[%s242 + $0x60] sm:$0xff] %v440
          %473 = vst [vmem:[%s242 + $0x68] sm:$0xff] %v441
          %474 = vst [vmem:[%s242 + $0x70] sm:$0xff] %v442
          %475 = vst [vmem:[%s242 + $0x78] sm:$0xff] %v443
          %476 = vst [vmem:[%s242 + $0x80] sm:$0xff] %v444
          %477 = vst [vmem:[%s242 + $0x88] sm:$0xff] %v445
          %478 = vst [vmem:[%s242 + $0x90] sm:$0xff] %v446
          %479 = vst [vmem:[%s242 + $0x98] sm:$0xff] %v447
          %480 = vst [vmem:[%s242 + $0xa0] sm:$0xff] %v448
          %481 = vst [vmem:[%s242 + $0xa8] sm:$0xff] %v449
          %482 = vst [vmem:[%s242 + $0xb0] sm:$0xff] %v450
          %483 = vst [vmem:[%s242 + $0xb8] sm:$0xff] %v451
          %484 = vst [vmem:[%s242 + $0xc0] sm:$0xff] %v452
          %485 = vst [vmem:[%s242 + $0xc8] sm:$0xff] %v453
          %486 = vst [vmem:[%s242 + $0xd0] sm:$0xff] %v454
          %487 = vst [vmem:[%s242 + $0xd8] sm:$0xff] %v455
          %488 = vst [vmem:[%s242 + $0xe0] sm:$0xff] %v456
          %489 = vst [vmem:[%s242 + $0xe8] sm:$0xff] %v457
          %490 = vst [vmem:[%s242 + $0xf0] sm:$0xff] %v458
          %491 = vst [vmem:[%s242 + $0xf8] sm:$0xff] %v459
          %s492 = sld [smem:[#allocation7 + $0x1]]
          %v493 = vld [vmem:[#allocation2] sm:$0xff]
          %v494 = vld [vmem:[#allocation2 + $0x8] sm:$0xff]
          %v495 = vld [vmem:[#allocation2 + $0x10] sm:$0xff]
          %v496 = vld [vmem:[#allocation2 + $0x18] sm:$0xff]
          %v497 = vld [vmem:[#allocation2 + $0x20] sm:$0xff]
          %v498 = vld [vmem:[#allocation2 + $0x28] sm:$0xff]
          %v499 = vld [vmem:[#allocation2 + $0x30] sm:$0xff]
          %v500 = vld [vmem:[#allocation2 + $0x38] sm:$0xff]
          %v501 = vld [vmem:[#allocation2 + $0x40] sm:$0xff]
          %v502 = vld [vmem:[#allocation2 + $0x48] sm:$0xff]
          %v503 = vld [vmem:[#allocation2 + $0x50] sm:$0xff]
          %v504 = vld [vmem:[#allocation2 + $0x58] sm:$0xff]
          %v505 = vld [vmem:[#allocation2 + $0x60] sm:$0xff]
          %v506 = vld [vmem:[#allocation2 + $0x68] sm:$0xff]
          %v507 = vld [vmem:[#allocation2 + $0x70] sm:$0xff]
          %v508 = vld [vmem:[#allocation2 + $0x78] sm:$0xff]
          %v509 = vld [vmem:[#allocation2 + $0x80] sm:$0xff]
          %v510 = vld [vmem:[#allocation2 + $0x88] sm:$0xff]
          %v511 = vld [vmem:[#allocation2 + $0x90] sm:$0xff]
          %v512 = vld [vmem:[#allocation2 + $0x98] sm:$0xff]
          %v513 = vld [vmem:[#allocation2 + $0xa0] sm:$0xff]
          %v514 = vld [vmem:[#allocation2 + $0xa8] sm:$0xff]
          %v515 = vld [vmem:[#allocation2 + $0xb0] sm:$0xff]
          %v516 = vld [vmem:[#allocation2 + $0xb8] sm:$0xff]
          %v517 = vld [vmem:[#allocation2 + $0xc0] sm:$0xff]
          %v518 = vld [vmem:[#allocation2 + $0xc8] sm:$0xff]
          %v519 = vld [vmem:[#allocation2 + $0xd0] sm:$0xff]
          %v520 = vld [vmem:[#allocation2 + $0xd8] sm:$0xff]
          %v521 = vld [vmem:[#allocation2 + $0xe0] sm:$0xff]
          %v522 = vld [vmem:[#allocation2 + $0xe8] sm:$0xff]
          %v523 = vld [vmem:[#allocation2 + $0xf0] sm:$0xff]
          %v524 = vld [vmem:[#allocation2 + $0xf8] sm:$0xff]
          %v525 = vstv %s492
          %v526 = vsel %vm362, %v525, %v493
          %v527 = vsel %vm363, %v525, %v494
          %v528 = vsel %vm364, %v525, %v495
          %v529 = vsel %vm365, %v525, %v496
          %v530 = vsel %vm366, %v525, %v497
          %v531 = vsel %vm367, %v525, %v498
          %v532 = vsel %vm368, %v525, %v499
          %v533 = vsel %vm369, %v525, %v500
          %v534 = vsel %vm370, %v525, %v501
          %v535 = vsel %vm371, %v525, %v502
          %v536 = vsel %vm372, %v525, %v503
          %v537 = vsel %vm373, %v525, %v504
          %v538 = vsel %vm374, %v525, %v505
          %v539 = vsel %vm375, %v525, %v506
          %v540 = vsel %vm376, %v525, %v507
          %v541 = vsel %vm377, %v525, %v508
          %v542 = vsel %vm378, %v525, %v509
          %v543 = vsel %vm379, %v525, %v510
          %v544 = vsel %vm380, %v525, %v511
          %v545 = vsel %vm381, %v525, %v512
          %v546 = vsel %vm382, %v525, %v513
          %v547 = vsel %vm383, %v525, %v514
          %v548 = vsel %vm384, %v525, %v515
          %v549 = vsel %vm385, %v525, %v516
          %v550 = vsel %vm386, %v525, %v517
          %v551 = vsel %vm387, %v525, %v518
          %v552 = vsel %vm388, %v525, %v519
          %v553 = vsel %vm389, %v525, %v520
          %v554 = vsel %vm390, %v525, %v521
          %v555 = vsel %vm391, %v525, %v522
          %v556 = vsel %vm392, %v525, %v523
          %v557 = vsel %vm393, %v525, %v524
          %558 = vst [vmem:[#allocation2] sm:$0xff] %v526
          %559 = vst [vmem:[#allocation2 + $0x8] sm:$0xff] %v527
          %560 = vst [vmem:[#allocation2 + $0x10] sm:$0xff] %v528
          %561 = vst [vmem:[#allocation2 + $0x18] sm:$0xff] %v529
          %562 = vst [vmem:[#allocation2 + $0x20] sm:$0xff] %v530
          %563 = vst [vmem:[#allocation2 + $0x28] sm:$0xff] %v531
          %564 = vst [vmem:[#allocation2 + $0x30] sm:$0xff] %v532
          %565 = vst [vmem:[#allocation2 + $0x38] sm:$0xff] %v533
          %566 = vst [vmem:[#allocation2 + $0x40] sm:$0xff] %v534
          %567 = vst [vmem:[#allocation2 + $0x48] sm:$0xff] %v535
          %568 = vst [vmem:[#allocation2 + $0x50] sm:$0xff] %v536
          %569 = vst [vmem:[#allocation2 + $0x58] sm:$0xff] %v537
          %570 = vst [vmem:[#allocation2 + $0x60] sm:$0xff] %v538
          %571 = vst [vmem:[#allocation2 + $0x68] sm:$0xff] %v539
          %572 = vst [vmem:[#allocation2 + $0x70] sm:$0xff] %v540
          %573 = vst [vmem:[#allocation2 + $0x78] sm:$0xff] %v541
          %574 = vst [vmem:[#allocation2 + $0x80] sm:$0xff] %v542
          %575 = vst [vmem:[#allocation2 + $0x88] sm:$0xff] %v543
          %576 = vst [vmem:[#allocation2 + $0x90] sm:$0xff] %v544
          %577 = vst [vmem:[#allocation2 + $0x98] sm:$0xff] %v545
          %578 = vst [vmem:[#allocation2 + $0xa0] sm:$0xff] %v546
          %579 = vst [vmem:[#allocation2 + $0xa8] sm:$0xff] %v547
          %580 = vst [vmem:[#allocation2 + $0xb0] sm:$0xff] %v548
          %581 = vst [vmem:[#allocation2 + $0xb8] sm:$0xff] %v549
          %582 = vst [vmem:[#allocation2 + $0xc0] sm:$0xff] %v550
          %583 = vst [vmem:[#allocation2 + $0xc8] sm:$0xff] %v551
          %584 = vst [vmem:[#allocation2 + $0xd0] sm:$0xff] %v552
          %585 = vst [vmem:[#allocation2 + $0xd8] sm:$0xff] %v553
          %586 = vst [vmem:[#allocation2 + $0xe0] sm:$0xff] %v554
          %587 = vst [vmem:[#allocation2 + $0xe8] sm:$0xff] %v555
          %588 = vst [vmem:[#allocation2 + $0xf0] sm:$0xff] %v556
          %589 = vst [vmem:[#allocation2 + $0xf8] sm:$0xff] %v557
        $region48: #{tpu_custom_call.1} parent=31 // pred_fallthru
          _
        %s590 = sld [smem:[#allocation7 + $0x2]]
        %p591 = scmp.ne.s32.totalorder %s590, 0
        // Predicated region
        $region49: #{tpu_custom_call.1} parent=31 // pred_check
          %p592 = pneg %p591
        $region50: #{tpu_custom_call.1} parent=31 // pred_check_branch
          %594 = sbr.rel (%p592) target = $region52
        $region51: #{tpu_custom_call.1} parent=31 // pred_region
          %vm595 = vcmp.eq.s32.totalorder %v261, 2
          %vm596 = vcmp.eq.s32.totalorder %v262, 2
          %vm597 = vcmp.eq.s32.totalorder %v263, 2
          %vm598 = vcmp.eq.s32.totalorder %v264, 2
          %vm599 = vcmp.eq.s32.totalorder %v265, 2
          %vm600 = vcmp.eq.s32.totalorder %v266, 2
          %vm601 = vcmp.eq.s32.totalorder %v267, 2
          %vm602 = vcmp.eq.s32.totalorder %v268, 2
          %vm603 = vcmp.eq.s32.totalorder %v269, 2
          %vm604 = vcmp.eq.s32.totalorder %v270, 2
          %vm605 = vcmp.eq.s32.totalorder %v271, 2
          %vm606 = vcmp.eq.s32.totalorder %v272, 2
          %vm607 = vcmp.eq.s32.totalorder %v273, 2
          %vm608 = vcmp.eq.s32.totalorder %v274, 2
          %vm609 = vcmp.eq.s32.totalorder %v275, 2
          %vm610 = vcmp.eq.s32.totalorder %v276, 2
          %vm611 = vcmp.eq.s32.totalorder %v277, 2
          %vm612 = vcmp.eq.s32.totalorder %v278, 2
          %vm613 = vcmp.eq.s32.totalorder %v279, 2
          %vm614 = vcmp.eq.s32.totalorder %v280, 2
          %vm615 = vcmp.eq.s32.totalorder %v281, 2
          %vm616 = vcmp.eq.s32.totalorder %v282, 2
          %vm617 = vcmp.eq.s32.totalorder %v283, 2
          %vm618 = vcmp.eq.s32.totalorder %v284, 2
          %vm619 = vcmp.eq.s32.totalorder %v285, 2
          %vm620 = vcmp.eq.s32.totalorder %v286, 2
          %vm621 = vcmp.eq.s32.totalorder %v287, 2
          %vm622 = vcmp.eq.s32.totalorder %v288, 2
          %vm623 = vcmp.eq.s32.totalorder %v289, 2
          %vm624 = vcmp.eq.s32.totalorder %v290, 2
          %vm625 = vcmp.eq.s32.totalorder %v291, 2
          %vm626 = vcmp.eq.s32.totalorder %v292, 2
          %s627 = sld [smem:[#allocation3 + $0x2]]
          %v628 = vld [vmem:[%s242] sm:$0xff]
          %v629 = vld [vmem:[%s242 + $0x8] sm:$0xff]
          %v630 = vld [vmem:[%s242 + $0x10] sm:$0xff]
          %v631 = vld [vmem:[%s242 + $0x18] sm:$0xff]
          %v632 = vld [vmem:[%s242 + $0x20] sm:$0xff]
          %v633 = vld [vmem:[%s242 + $0x28] sm:$0xff]
          %v634 = vld [vmem:[%s242 + $0x30] sm:$0xff]
          %v635 = vld [vmem:[%s242 + $0x38] sm:$0xff]
          %v636 = vld [vmem:[%s242 + $0x40] sm:$0xff]
          %v637 = vld [vmem:[%s242 + $0x48] sm:$0xff]
          %v638 = vld [vmem:[%s242 + $0x50] sm:$0xff]
          %v639 = vld [vmem:[%s242 + $0x58] sm:$0xff]
          %v640 = vld [vmem:[%s242 + $0x60] sm:$0xff]
          %v641 = vld [vmem:[%s242 + $0x68] sm:$0xff]
          %v642 = vld [vmem:[%s242 + $0x70] sm:$0xff]
          %v643 = vld [vmem:[%s242 + $0x78] sm:$0xff]
          %v644 = vld [vmem:[%s242 + $0x80] sm:$0xff]
          %v645 = vld [vmem:[%s242 + $0x88] sm:$0xff]
          %v646 = vld [vmem:[%s242 + $0x90] sm:$0xff]
          %v647 = vld [vmem:[%s242 + $0x98] sm:$0xff]
          %v648 = vld [vmem:[%s242 + $0xa0] sm:$0xff]
          %v649 = vld [vmem:[%s242 + $0xa8] sm:$0xff]
          %v650 = vld [vmem:[%s242 + $0xb0] sm:$0xff]
          %v651 = vld [vmem:[%s242 + $0xb8] sm:$0xff]
          %v652 = vld [vmem:[%s242 + $0xc0] sm:$0xff]
          %v653 = vld [vmem:[%s242 + $0xc8] sm:$0xff]
          %v654 = vld [vmem:[%s242 + $0xd0] sm:$0xff]
          %v655 = vld [vmem:[%s242 + $0xd8] sm:$0xff]
          %v656 = vld [vmem:[%s242 + $0xe0] sm:$0xff]
          %v657 = vld [vmem:[%s242 + $0xe8] sm:$0xff]
          %v658 = vld [vmem:[%s242 + $0xf0] sm:$0xff]
          %v659 = vld [vmem:[%s242 + $0xf8] sm:$0xff]
          %v660 = vstv %s627
          %v661 = vsel %vm595, %v660, %v628
          %v662 = vsel %vm596, %v660, %v629
          %v663 = vsel %vm597, %v660, %v630
          %v664 = vsel %vm598, %v660, %v631
          %v665 = vsel %vm599, %v660, %v632
          %v666 = vsel %vm600, %v660, %v633
          %v667 = vsel %vm601, %v660, %v634
          %v668 = vsel %vm602, %v660, %v635
          %v669 = vsel %vm603, %v660, %v636
          %v670 = vsel %vm604, %v660, %v637
          %v671 = vsel %vm605, %v660, %v638
          %v672 = vsel %vm606, %v660, %v639
          %v673 = vsel %vm607, %v660, %v640
          %v674 = vsel %vm608, %v660, %v641
          %v675 = vsel %vm609, %v660, %v642
          %v676 = vsel %vm610, %v660, %v643
          %v677 = vsel %vm611, %v660, %v644
          %v678 = vsel %vm612, %v660, %v645
          %v679 = vsel %vm613, %v660, %v646
          %v680 = vsel %vm614, %v660, %v647
          %v681 = vsel %vm615, %v660, %v648
          %v682 = vsel %vm616, %v660, %v649
          %v683 = vsel %vm617, %v660, %v650
          %v684 = vsel %vm618, %v660, %v651
          %v685 = vsel %vm619, %v660, %v652
          %v686 = vsel %vm620, %v660, %v653
          %v687 = vsel %vm621, %v660, %v654
          %v688 = vsel %vm622, %v660, %v655
          %v689 = vsel %vm623, %v660, %v656
          %v690 = vsel %vm624, %v660, %v657
          %v691 = vsel %vm625, %v660, %v658
          %v692 = vsel %vm626, %v660, %v659
          %693 = vst [vmem:[%s242] sm:$0xff] %v661
          %694 = vst [vmem:[%s242 + $0x8] sm:$0xff] %v662
          %695 = vst [vmem:[%s242 + $0x10] sm:$0xff] %v663
          %696 = vst [vmem:[%s242 + $0x18] sm:$0xff] %v664
          %697 = vst [vmem:[%s242 + $0x20] sm:$0xff] %v665
          %698 = vst [vmem:[%s242 + $0x28] sm:$0xff] %v666
          %699 = vst [vmem:[%s242 + $0x30] sm:$0xff] %v667
          %700 = vst [vmem:[%s242 + $0x38] sm:$0xff] %v668
          %701 = vst [vmem:[%s242 + $0x40] sm:$0xff] %v669
          %702 = vst [vmem:[%s242 + $0x48] sm:$0xff] %v670
          %703 = vst [vmem:[%s242 + $0x50] sm:$0xff] %v671
          %704 = vst [vmem:[%s242 + $0x58] sm:$0xff] %v672
          %705 = vst [vmem:[%s242 + $0x60] sm:$0xff] %v673
          %706 = vst [vmem:[%s242 + $0x68] sm:$0xff] %v674
          %707 = vst [vmem:[%s242 + $0x70] sm:$0xff] %v675
          %708 = vst [vmem:[%s242 + $0x78] sm:$0xff] %v676
          %709 = vst [vmem:[%s242 + $0x80] sm:$0xff] %v677
          %710 = vst [vmem:[%s242 + $0x88] sm:$0xff] %v678
          %711 = vst [vmem:[%s242 + $0x90] sm:$0xff] %v679
          %712 = vst [vmem:[%s242 + $0x98] sm:$0xff] %v680
          %713 = vst [vmem:[%s242 + $0xa0] sm:$0xff] %v681
          %714 = vst [vmem:[%s242 + $0xa8] sm:$0xff] %v682
          %715 = vst [vmem:[%s242 + $0xb0] sm:$0xff] %v683
          %716 = vst [vmem:[%s242 + $0xb8] sm:$0xff] %v684
          %717 = vst [vmem:[%s242 + $0xc0] sm:$0xff] %v685
          %718 = vst [vmem:[%s242 + $0xc8] sm:$0xff] %v686
          %719 = vst [vmem:[%s242 + $0xd0] sm:$0xff] %v687
          %720 = vst [vmem:[%s242 + $0xd8] sm:$0xff] %v688
          %721 = vst [vmem:[%s242 + $0xe0] sm:$0xff] %v689
          %722 = vst [vmem:[%s242 + $0xe8] sm:$0xff] %v690
          %723 = vst [vmem:[%s242 + $0xf0] sm:$0xff] %v691
          %724 = vst [vmem:[%s242 + $0xf8] sm:$0xff] %v692
          %s725 = sld [smem:[#allocation7 + $0x2]]
          %v726 = vld [vmem:[#allocation2] sm:$0xff]
          %v727 = vld [vmem:[#allocation2 + $0x8] sm:$0xff]
          %v728 = vld [vmem:[#allocation2 + $0x10] sm:$0xff]
          %v729 = vld [vmem:[#allocation2 + $0x18] sm:$0xff]
          %v730 = vld [vmem:[#allocation2 + $0x20] sm:$0xff]
          %v731 = vld [vmem:[#allocation2 + $0x28] sm:$0xff]
          %v732 = vld [vmem:[#allocation2 + $0x30] sm:$0xff]
          %v733 = vld [vmem:[#allocation2 + $0x38] sm:$0xff]
          %v734 = vld [vmem:[#allocation2 + $0x40] sm:$0xff]
          %v735 = vld [vmem:[#allocation2 + $0x48] sm:$0xff]
          %v736 = vld [vmem:[#allocation2 + $0x50] sm:$0xff]
          %v737 = vld [vmem:[#allocation2 + $0x58] sm:$0xff]
          %v738 = vld [vmem:[#allocation2 + $0x60] sm:$0xff]
          %v739 = vld [vmem:[#allocation2 + $0x68] sm:$0xff]
          %v740 = vld [vmem:[#allocation2 + $0x70] sm:$0xff]
          %v741 = vld [vmem:[#allocation2 + $0x78] sm:$0xff]
          %v742 = vld [vmem:[#allocation2 + $0x80] sm:$0xff]
          %v743 = vld [vmem:[#allocation2 + $0x88] sm:$0xff]
          %v744 = vld [vmem:[#allocation2 + $0x90] sm:$0xff]
          %v745 = vld [vmem:[#allocation2 + $0x98] sm:$0xff]
          %v746 = vld [vmem:[#allocation2 + $0xa0] sm:$0xff]
          %v747 = vld [vmem:[#allocation2 + $0xa8] sm:$0xff]
          %v748 = vld [vmem:[#allocation2 + $0xb0] sm:$0xff]
          %v749 = vld [vmem:[#allocation2 + $0xb8] sm:$0xff]
          %v750 = vld [vmem:[#allocation2 + $0xc0] sm:$0xff]
          %v751 = vld [vmem:[#allocation2 + $0xc8] sm:$0xff]
          %v752 = vld [vmem:[#allocation2 + $0xd0] sm:$0xff]
          %v753 = vld [vmem:[#allocation2 + $0xd8] sm:$0xff]
          %v754 = vld [vmem:[#allocation2 + $0xe0] sm:$0xff]
          %v755 = vld [vmem:[#allocation2 + $0xe8] sm:$0xff]
          %v756 = vld [vmem:[#allocation2 + $0xf0] sm:$0xff]
          %v757 = vld [vmem:[#allocation2 + $0xf8] sm:$0xff]
          %v758 = vstv %s725
          %v759 = vsel %vm595, %v758, %v726
          %v760 = vsel %vm596, %v758, %v727
          %v761 = vsel %vm597, %v758, %v728
          %v762 = vsel %vm598, %v758, %v729
          %v763 = vsel %vm599, %v758, %v730
          %v764 = vsel %vm600, %v758, %v731
          %v765 = vsel %vm601, %v758, %v732
          %v766 = vsel %vm602, %v758, %v733
          %v767 = vsel %vm603, %v758, %v734
          %v768 = vsel %vm604, %v758, %v735
          %v769 = vsel %vm605, %v758, %v736
          %v770 = vsel %vm606, %v758, %v737
          %v771 = vsel %vm607, %v758, %v738
          %v772 = vsel %vm608, %v758, %v739
          %v773 = vsel %vm609, %v758, %v740
          %v774 = vsel %vm610, %v758, %v741
          %v775 = vsel %vm611, %v758, %v742
          %v776 = vsel %vm612, %v758, %v743
          %v777 = vsel %vm613, %v758, %v744
          %v778 = vsel %vm614, %v758, %v745
          %v779 = vsel %vm615, %v758, %v746
          %v780 = vsel %vm616, %v758, %v747
          %v781 = vsel %vm617, %v758, %v748
          %v782 = vsel %vm618, %v758, %v749
          %v783 = vsel %vm619, %v758, %v750
          %v784 = vsel %vm620, %v758, %v751
          %v785 = vsel %vm621, %v758, %v752
          %v786 = vsel %vm622, %v758, %v753
          %v787 = vsel %vm623, %v758, %v754
          %v788 = vsel %vm624, %v758, %v755
          %v789 = vsel %vm625, %v758, %v756
          %v790 = vsel %vm626, %v758, %v757
          %791 = vst [vmem:[#allocation2] sm:$0xff] %v759
          %792 = vst [vmem:[#allocation2 + $0x8] sm:$0xff] %v760
          %793 = vst [vmem:[#allocation2 + $0x10] sm:$0xff] %v761
          %794 = vst [vmem:[#allocation2 + $0x18] sm:$0xff] %v762
          %795 = vst [vmem:[#allocation2 + $0x20] sm:$0xff] %v763
          %796 = vst [vmem:[#allocation2 + $0x28] sm:$0xff] %v764
          %797 = vst [vmem:[#allocation2 + $0x30] sm:$0xff] %v765
          %798 = vst [vmem:[#allocation2 + $0x38] sm:$0xff] %v766
          %799 = vst [vmem:[#allocation2 + $0x40] sm:$0xff] %v767
          %800 = vst [vmem:[#allocation2 + $0x48] sm:$0xff] %v768
          %801 = vst [vmem:[#allocation2 + $0x50] sm:$0xff] %v769
          %802 = vst [vmem:[#allocation2 + $0x58] sm:$0xff] %v770
          %803 = vst [vmem:[#allocation2 + $0x60] sm:$0xff] %v771
          %804 = vst [vmem:[#allocation2 + $0x68] sm:$0xff] %v772
          %805 = vst [vmem:[#allocation2 + $0x70] sm:$0xff] %v773
          %806 = vst [vmem:[#allocation2 + $0x78] sm:$0xff] %v774
          %807 = vst [vmem:[#allocation2 + $0x80] sm:$0xff] %v775
          %808 = vst [vmem:[#allocation2 + $0x88] sm:$0xff] %v776
          %809 = vst [vmem:[#allocation2 + $0x90] sm:$0xff] %v777
          %810 = vst [vmem:[#allocation2 + $0x98] sm:$0xff] %v778
          %811 = vst [vmem:[#allocation2 + $0xa0] sm:$0xff] %v779
          %812 = vst [vmem:[#allocation2 + $0xa8] sm:$0xff] %v780
          %813 = vst [vmem:[#allocation2 + $0xb0] sm:$0xff] %v781
          %814 = vst [vmem:[#allocation2 + $0xb8] sm:$0xff] %v782
          %815 = vst [vmem:[#allocation2 + $0xc0] sm:$0xff] %v783
          %816 = vst [vmem:[#allocation2 + $0xc8] sm:$0xff] %v784
          %817 = vst [vmem:[#allocation2 + $0xd0] sm:$0xff] %v785
          %818 = vst [vmem:[#allocation2 + $0xd8] sm:$0xff] %v786
          %819 = vst [vmem:[#allocation2 + $0xe0] sm:$0xff] %v787
          %820 = vst [vmem:[#allocation2 + $0xe8] sm:$0xff] %v788
          %821 = vst [vmem:[#allocation2 + $0xf0] sm:$0xff] %v789
          %822 = vst [vmem:[#allocation2 + $0xf8] sm:$0xff] %v790
        $region52: #{tpu_custom_call.1} parent=31 // pred_fallthru
          _
        %s823 = sld [smem:[#allocation7 + $0x3]]
        %p824 = scmp.ne.s32.totalorder %s823, 0
        // Predicated region
        $region53: #{tpu_custom_call.1} parent=31 // pred_check
          %p825 = pneg %p824
        $region54: #{tpu_custom_call.1} parent=31 // pred_check_branch
          %827 = sbr.rel (%p825) target = $region56
        $region55: #{tpu_custom_call.1} parent=31 // pred_region
          %vm828 = vcmp.eq.s32.totalorder %v261, 3
          %vm829 = vcmp.eq.s32.totalorder %v262, 3
          %vm830 = vcmp.eq.s32.totalorder %v263, 3
          %vm831 = vcmp.eq.s32.totalorder %v264, 3
          %vm832 = vcmp.eq.s32.totalorder %v265, 3
          %vm833 = vcmp.eq.s32.totalorder %v266, 3
          %vm834 = vcmp.eq.s32.totalorder %v267, 3
          %vm835 = vcmp.eq.s32.totalorder %v268, 3
          %vm836 = vcmp.eq.s32.totalorder %v269, 3
          %vm837 = vcmp.eq.s32.totalorder %v270, 3
          %vm838 = vcmp.eq.s32.totalorder %v271, 3
          %vm839 = vcmp.eq.s32.totalorder %v272, 3
          %vm840 = vcmp.eq.s32.totalorder %v273, 3
          %vm841 = vcmp.eq.s32.totalorder %v274, 3
          %vm842 = vcmp.eq.s32.totalorder %v275, 3
          %vm843 = vcmp.eq.s32.totalorder %v276, 3
          %vm844 = vcmp.eq.s32.totalorder %v277, 3
          %vm845 = vcmp.eq.s32.totalorder %v278, 3
          %vm846 = vcmp.eq.s32.totalorder %v279, 3
          %vm847 = vcmp.eq.s32.totalorder %v280, 3
          %vm848 = vcmp.eq.s32.totalorder %v281, 3
          %vm849 = vcmp.eq.s32.totalorder %v282, 3
          %vm850 = vcmp.eq.s32.totalorder %v283, 3
          %vm851 = vcmp.eq.s32.totalorder %v284, 3
          %vm852 = vcmp.eq.s32.totalorder %v285, 3
          %vm853 = vcmp.eq.s32.totalorder %v286, 3
          %vm854 = vcmp.eq.s32.totalorder %v287, 3
          %vm855 = vcmp.eq.s32.totalorder %v288, 3
          %vm856 = vcmp.eq.s32.totalorder %v289, 3
          %vm857 = vcmp.eq.s32.totalorder %v290, 3
          %vm858 = vcmp.eq.s32.totalorder %v291, 3
          %vm859 = vcmp.eq.s32.totalorder %v292, 3
          %s860 = sld [smem:[#allocation3 + $0x3]]
          %v861 = vld [vmem:[%s242] sm:$0xff]
          %v862 = vld [vmem:[%s242 + $0x8] sm:$0xff]
          %v863 = vld [vmem:[%s242 + $0x10] sm:$0xff]
          %v864 = vld [vmem:[%s242 + $0x18] sm:$0xff]
          %v865 = vld [vmem:[%s242 + $0x20] sm:$0xff]
          %v866 = vld [vmem:[%s242 + $0x28] sm:$0xff]
          %v867 = vld [vmem:[%s242 + $0x30] sm:$0xff]
          %v868 = vld [vmem:[%s242 + $0x38] sm:$0xff]
          %v869 = vld [vmem:[%s242 + $0x40] sm:$0xff]
          %v870 = vld [vmem:[%s242 + $0x48] sm:$0xff]
          %v871 = vld [vmem:[%s242 + $0x50] sm:$0xff]
          %v872 = vld [vmem:[%s242 + $0x58] sm:$0xff]
          %v873 = vld [vmem:[%s242 + $0x60] sm:$0xff]
          %v874 = vld [vmem:[%s242 + $0x68] sm:$0xff]
          %v875 = vld [vmem:[%s242 + $0x70] sm:$0xff]
          %v876 = vld [vmem:[%s242 + $0x78] sm:$0xff]
          %v877 = vld [vmem:[%s242 + $0x80] sm:$0xff]
          %v878 = vld [vmem:[%s242 + $0x88] sm:$0xff]
          %v879 = vld [vmem:[%s242 + $0x90] sm:$0xff]
          %v880 = vld [vmem:[%s242 + $0x98] sm:$0xff]
          %v881 = vld [vmem:[%s242 + $0xa0] sm:$0xff]
          %v882 = vld [vmem:[%s242 + $0xa8] sm:$0xff]
          %v883 = vld [vmem:[%s242 + $0xb0] sm:$0xff]
          %v884 = vld [vmem:[%s242 + $0xb8] sm:$0xff]
          %v885 = vld [vmem:[%s242 + $0xc0] sm:$0xff]
          %v886 = vld [vmem:[%s242 + $0xc8] sm:$0xff]
          %v887 = vld [vmem:[%s242 + $0xd0] sm:$0xff]
          %v888 = vld [vmem:[%s242 + $0xd8] sm:$0xff]
          %v889 = vld [vmem:[%s242 + $0xe0] sm:$0xff]
          %v890 = vld [vmem:[%s242 + $0xe8] sm:$0xff]
          %v891 = vld [vmem:[%s242 + $0xf0] sm:$0xff]
          %v892 = vld [vmem:[%s242 + $0xf8] sm:$0xff]
          %v893 = vstv %s860
          %v894 = vsel %vm828, %v893, %v861
          %v895 = vsel %vm829, %v893, %v862
          %v896 = vsel %vm830, %v893, %v863
          %v897 = vsel %vm831, %v893, %v864
          %v898 = vsel %vm832, %v893, %v865
          %v899 = vsel %vm833, %v893, %v866
          %v900 = vsel %vm834, %v893, %v867
          %v901 = vsel %vm835, %v893, %v868
          %v902 = vsel %vm836, %v893, %v869
          %v903 = vsel %vm837, %v893, %v870
          %v904 = vsel %vm838, %v893, %v871
          %v905 = vsel %vm839, %v893, %v872
          %v906 = vsel %vm840, %v893, %v873
          %v907 = vsel %vm841, %v893, %v874
          %v908 = vsel %vm842, %v893, %v875
          %v909 = vsel %vm843, %v893, %v876
          %v910 = vsel %vm844, %v893, %v877
          %v911 = vsel %vm845, %v893, %v878
          %v912 = vsel %vm846, %v893, %v879
          %v913 = vsel %vm847, %v893, %v880
          %v914 = vsel %vm848, %v893, %v881
          %v915 = vsel %vm849, %v893, %v882
          %v916 = vsel %vm850, %v893, %v883
          %v917 = vsel %vm851, %v893, %v884
          %v918 = vsel %vm852, %v893, %v885
          %v919 = vsel %vm853, %v893, %v886
          %v920 = vsel %vm854, %v893, %v887
          %v921 = vsel %vm855, %v893, %v888
          %v922 = vsel %vm856, %v893, %v889
          %v923 = vsel %vm857, %v893, %v890
          %v924 = vsel %vm858, %v893, %v891
          %v925 = vsel %vm859, %v893, %v892
          %926 = vst [vmem:[%s242] sm:$0xff] %v894
          %927 = vst [vmem:[%s242 + $0x8] sm:$0xff] %v895
          %928 = vst [vmem:[%s242 + $0x10] sm:$0xff] %v896
          %929 = vst [vmem:[%s242 + $0x18] sm:$0xff] %v897
          %930 = vst [vmem:[%s242 + $0x20] sm:$0xff] %v898
          %931 = vst [vmem:[%s242 + $0x28] sm:$0xff] %v899
          %932 = vst [vmem:[%s242 + $0x30] sm:$0xff] %v900
          %933 = vst [vmem:[%s242 + $0x38] sm:$0xff] %v901
          %934 = vst [vmem:[%s242 + $0x40] sm:$0xff] %v902
          %935 = vst [vmem:[%s242 + $0x48] sm:$0xff] %v903
          %936 = vst [vmem:[%s242 + $0x50] sm:$0xff] %v904
          %937 = vst [vmem:[%s242 + $0x58] sm:$0xff] %v905
          %938 = vst [vmem:[%s242 + $0x60] sm:$0xff] %v906
          %939 = vst [vmem:[%s242 + $0x68] sm:$0xff] %v907
          %940 = vst [vmem:[%s242 + $0x70] sm:$0xff] %v908
          %941 = vst [vmem:[%s242 + $0x78] sm:$0xff] %v909
          %942 = vst [vmem:[%s242 + $0x80] sm:$0xff] %v910
          %943 = vst [vmem:[%s242 + $0x88] sm:$0xff] %v911
          %944 = vst [vmem:[%s242 + $0x90] sm:$0xff] %v912
          %945 = vst [vmem:[%s242 + $0x98] sm:$0xff] %v913
          %946 = vst [vmem:[%s242 + $0xa0] sm:$0xff] %v914
          %947 = vst [vmem:[%s242 + $0xa8] sm:$0xff] %v915
          %948 = vst [vmem:[%s242 + $0xb0] sm:$0xff] %v916
          %949 = vst [vmem:[%s242 + $0xb8] sm:$0xff] %v917
          %950 = vst [vmem:[%s242 + $0xc0] sm:$0xff] %v918
          %951 = vst [vmem:[%s242 + $0xc8] sm:$0xff] %v919
          %952 = vst [vmem:[%s242 + $0xd0] sm:$0xff] %v920
          %953 = vst [vmem:[%s242 + $0xd8] sm:$0xff] %v921
          %954 = vst [vmem:[%s242 + $0xe0] sm:$0xff] %v922
          %955 = vst [vmem:[%s242 + $0xe8] sm:$0xff] %v923
          %956 = vst [vmem:[%s242 + $0xf0] sm:$0xff] %v924
          %957 = vst [vmem:[%s242 + $0xf8] sm:$0xff] %v925
          %s958 = sld [smem:[#allocation7 + $0x3]]
          %v959 = vld [vmem:[#allocation2] sm:$0xff]
          %v960 = vld [vmem:[#allocation2 + $0x8] sm:$0xff]
          %v961 = vld [vmem:[#allocation2 + $0x10] sm:$0xff]
          %v962 = vld [vmem:[#allocation2 + $0x18] sm:$0xff]
          %v963 = vld [vmem:[#allocation2 + $0x20] sm:$0xff]
          %v964 = vld [vmem:[#allocation2 + $0x28] sm:$0xff]
          %v965 = vld [vmem:[#allocation2 + $0x30] sm:$0xff]
          %v966 = vld [vmem:[#allocation2 + $0x38] sm:$0xff]
          %v967 = vld [vmem:[#allocation2 + $0x40] sm:$0xff]
          %v968 = vld [vmem:[#allocation2 + $0x48] sm:$0xff]
          %v969 = vld [vmem:[#allocation2 + $0x50] sm:$0xff]
          %v970 = vld [vmem:[#allocation2 + $0x58] sm:$0xff]
          %v971 = vld [vmem:[#allocation2 + $0x60] sm:$0xff]
          %v972 = vld [vmem:[#allocation2 + $0x68] sm:$0xff]
          %v973 = vld [vmem:[#allocation2 + $0x70] sm:$0xff]
          %v974 = vld [vmem:[#allocation2 + $0x78] sm:$0xff]
          %v975 = vld [vmem:[#allocation2 + $0x80] sm:$0xff]
          %v976 = vld [vmem:[#allocation2 + $0x88] sm:$0xff]
          %v977 = vld [vmem:[#allocation2 + $0x90] sm:$0xff]
          %v978 = vld [vmem:[#allocation2 + $0x98] sm:$0xff]
          %v979 = vld [vmem:[#allocation2 + $0xa0] sm:$0xff]
          %v980 = vld [vmem:[#allocation2 + $0xa8] sm:$0xff]
          %v981 = vld [vmem:[#allocation2 + $0xb0] sm:$0xff]
          %v982 = vld [vmem:[#allocation2 + $0xb8] sm:$0xff]
          %v983 = vld [vmem:[#allocation2 + $0xc0] sm:$0xff]
          %v984 = vld [vmem:[#allocation2 + $0xc8] sm:$0xff]
          %v985 = vld [vmem:[#allocation2 + $0xd0] sm:$0xff]
          %v986 = vld [vmem:[#allocation2 + $0xd8] sm:$0xff]
          %v987 = vld [vmem:[#allocation2 + $0xe0] sm:$0xff]
          %v988 = vld [vmem:[#allocation2 + $0xe8] sm:$0xff]
          %v989 = vld [vmem:[#allocation2 + $0xf0] sm:$0xff]
          %v990 = vld [vmem:[#allocation2 + $0xf8] sm:$0xff]
          %v991 = vstv %s958
          %v992 = vsel %vm828, %v991, %v959
          %v993 = vsel %vm829, %v991, %v960
          %v994 = vsel %vm830, %v991, %v961
          %v995 = vsel %vm831, %v991, %v962
          %v996 = vsel %vm832, %v991, %v963
          %v997 = vsel %vm833, %v991, %v964
          %v998 = vsel %vm834, %v991, %v965
          %v999 = vsel %vm835, %v991, %v966
          %v1000 = vsel %vm836, %v991, %v967
          %v1001 = vsel %vm837, %v991, %v968
          %v1002 = vsel %vm838, %v991, %v969
          %v1003 = vsel %vm839, %v991, %v970
          %v1004 = vsel %vm840, %v991, %v971
          %v1005 = vsel %vm841, %v991, %v972
          %v1006 = vsel %vm842, %v991, %v973
          %v1007 = vsel %vm843, %v991, %v974
          %v1008 = vsel %vm844, %v991, %v975
          %v1009 = vsel %vm845, %v991, %v976
          %v1010 = vsel %vm846, %v991, %v977
          %v1011 = vsel %vm847, %v991, %v978
          %v1012 = vsel %vm848, %v991, %v979
          %v1013 = vsel %vm849, %v991, %v980
          %v1014 = vsel %vm850, %v991, %v981
          %v1015 = vsel %vm851, %v991, %v982
          %v1016 = vsel %vm852, %v991, %v983
          %v1017 = vsel %vm853, %v991, %v984
          %v1018 = vsel %vm854, %v991, %v985
          %v1019 = vsel %vm855, %v991, %v986
          %v1020 = vsel %vm856, %v991, %v987
          %v1021 = vsel %vm857, %v991, %v988
          %v1022 = vsel %vm858, %v991, %v989
          %v1023 = vsel %vm859, %v991, %v990
          %1024 = vst [vmem:[#allocation2] sm:$0xff] %v992
          %1025 = vst [vmem:[#allocation2 + $0x8] sm:$0xff] %v993
          %1026 = vst [vmem:[#allocation2 + $0x10] sm:$0xff] %v994
          %1027 = vst [vmem:[#allocation2 + $0x18] sm:$0xff] %v995
          %1028 = vst [vmem:[#allocation2 + $0x20] sm:$0xff] %v996
          %1029 = vst [vmem:[#allocation2 + $0x28] sm:$0xff] %v997
          %1030 = vst [vmem:[#allocation2 + $0x30] sm:$0xff] %v998
          %1031 = vst [vmem:[#allocation2 + $0x38] sm:$0xff] %v999
          %1032 = vst [vmem:[#allocation2 + $0x40] sm:$0xff] %v1000
          %1033 = vst [vmem:[#allocation2 + $0x48] sm:$0xff] %v1001
          %1034 = vst [vmem:[#allocation2 + $0x50] sm:$0xff] %v1002
          %1035 = vst [vmem:[#allocation2 + $0x58] sm:$0xff] %v1003
          %1036 = vst [vmem:[#allocation2 + $0x60] sm:$0xff] %v1004
          %1037 = vst [vmem:[#allocation2 + $0x68] sm:$0xff] %v1005
          %1038 = vst [vmem:[#allocation2 + $0x70] sm:$0xff] %v1006
          %1039 = vst [vmem:[#allocation2 + $0x78] sm:$0xff] %v1007
          %1040 = vst [vmem:[#allocation2 + $0x80] sm:$0xff] %v1008
          %1041 = vst [vmem:[#allocation2 + $0x88] sm:$0xff] %v1009
          %1042 = vst [vmem:[#allocation2 + $0x90] sm:$0xff] %v1010
          %1043 = vst [vmem:[#allocation2 + $0x98] sm:$0xff] %v1011
          %1044 = vst [vmem:[#allocation2 + $0xa0] sm:$0xff] %v1012
          %1045 = vst [vmem:[#allocation2 + $0xa8] sm:$0xff] %v1013
          %1046 = vst [vmem:[#allocation2 + $0xb0] sm:$0xff] %v1014
          %1047 = vst [vmem:[#allocation2 + $0xb8] sm:$0xff] %v1015
          %1048 = vst [vmem:[#allocation2 + $0xc0] sm:$0xff] %v1016
          %1049 = vst [vmem:[#allocation2 + $0xc8] sm:$0xff] %v1017
          %1050 = vst [vmem:[#allocation2 + $0xd0] sm:$0xff] %v1018
          %1051 = vst [vmem:[#allocation2 + $0xd8] sm:$0xff] %v1019
          %1052 = vst [vmem:[#allocation2 + $0xe0] sm:$0xff] %v1020
          %1053 = vst [vmem:[#allocation2 + $0xe8] sm:$0xff] %v1021
          %1054 = vst [vmem:[#allocation2 + $0xf0] sm:$0xff] %v1022
          %1055 = vst [vmem:[#allocation2 + $0xf8] sm:$0xff] %v1023
        $region56: #{tpu_custom_call.1} parent=31 // pred_fallthru
          _
        %s1056 = sld [smem:[#allocation7 + $0x4]]
        %p1057 = scmp.ne.s32.totalorder %s1056, 0
        // Predicated region
        $region57: #{tpu_custom_call.1} parent=31 // pred_check
          %p1058 = pneg %p1057
        $region58: #{tpu_custom_call.1} parent=31 // pred_check_branch
          %1060 = sbr.rel (%p1058) target = $region60
        $region59: #{tpu_custom_call.1} parent=31 // pred_region
          %vm1061 = vcmp.eq.s32.totalorder %v261, 4
          %vm1062 = vcmp.eq.s32.totalorder %v262, 4
          %vm1063 = vcmp.eq.s32.totalorder %v263, 4
          %vm1064 = vcmp.eq.s32.totalorder %v264, 4
          %vm1065 = vcmp.eq.s32.totalorder %v265, 4
          %vm1066 = vcmp.eq.s32.totalorder %v266, 4
          %vm1067 = vcmp.eq.s32.totalorder %v267, 4
          %vm1068 = vcmp.eq.s32.totalorder %v268, 4
          %vm1069 = vcmp.eq.s32.totalorder %v269, 4
          %vm1070 = vcmp.eq.s32.totalorder %v270, 4
          %vm1071 = vcmp.eq.s32.totalorder %v271, 4
          %vm1072 = vcmp.eq.s32.totalorder %v272, 4
          %vm1073 = vcmp.eq.s32.totalorder %v273, 4
          %vm1074 = vcmp.eq.s32.totalorder %v274, 4
          %vm1075 = vcmp.eq.s32.totalorder %v275, 4
          %vm1076 = vcmp.eq.s32.totalorder %v276, 4
          %vm1077 = vcmp.eq.s32.totalorder %v277, 4
          %vm1078 = vcmp.eq.s32.totalorder %v278, 4
          %vm1079 = vcmp.eq.s32.totalorder %v279, 4
          %vm1080 = vcmp.eq.s32.totalorder %v280, 4
          %vm1081 = vcmp.eq.s32.totalorder %v281, 4
          %vm1082 = vcmp.eq.s32.totalorder %v282, 4
          %vm1083 = vcmp.eq.s32.totalorder %v283, 4
          %vm1084 = vcmp.eq.s32.totalorder %v284, 4
          %vm1085 = vcmp.eq.s32.totalorder %v285, 4
          %vm1086 = vcmp.eq.s32.totalorder %v286, 4
          %vm1087 = vcmp.eq.s32.totalorder %v287, 4
          %vm1088 = vcmp.eq.s32.totalorder %v288, 4
          %vm1089 = vcmp.eq.s32.totalorder %v289, 4
          %vm1090 = vcmp.eq.s32.totalorder %v290, 4
          %vm1091 = vcmp.eq.s32.totalorder %v291, 4
          %vm1092 = vcmp.eq.s32.totalorder %v292, 4
          %s1093 = sld [smem:[#allocation3 + $0x4]]
          %v1094 = vld [vmem:[%s242] sm:$0xff]
          %v1095 = vld [vmem:[%s242 + $0x8] sm:$0xff]
          %v1096 = vld [vmem:[%s242 + $0x10] sm:$0xff]
          %v1097 = vld [vmem:[%s242 + $0x18] sm:$0xff]
          %v1098 = vld [vmem:[%s242 + $0x20] sm:$0xff]
          %v1099 = vld [vmem:[%s242 + $0x28] sm:$0xff]
          %v1100 = vld [vmem:[%s242 + $0x30] sm:$0xff]
          %v1101 = vld [vmem:[%s242 + $0x38] sm:$0xff]
          %v1102 = vld [vmem:[%s242 + $0x40] sm:$0xff]
          %v1103 = vld [vmem:[%s242 + $0x48] sm:$0xff]
          %v1104 = vld [vmem:[%s242 + $0x50] sm:$0xff]
          %v1105 = vld [vmem:[%s242 + $0x58] sm:$0xff]
          %v1106 = vld [vmem:[%s242 + $0x60] sm:$0xff]
          %v1107 = vld [vmem:[%s242 + $0x68] sm:$0xff]
          %v1108 = vld [vmem:[%s242 + $0x70] sm:$0xff]
          %v1109 = vld [vmem:[%s242 + $0x78] sm:$0xff]
          %v1110 = vld [vmem:[%s242 + $0x80] sm:$0xff]
          %v1111 = vld [vmem:[%s242 + $0x88] sm:$0xff]
          %v1112 = vld [vmem:[%s242 + $0x90] sm:$0xff]
          %v1113 = vld [vmem:[%s242 + $0x98] sm:$0xff]
          %v1114 = vld [vmem:[%s242 + $0xa0] sm:$0xff]
          %v1115 = vld [vmem:[%s242 + $0xa8] sm:$0xff]
          %v1116 = vld [vmem:[%s242 + $0xb0] sm:$0xff]
          %v1117 = vld [vmem:[%s242 + $0xb8] sm:$0xff]
          %v1118 = vld [vmem:[%s242 + $0xc0] sm:$0xff]
          %v1119 = vld [vmem:[%s242 + $0xc8] sm:$0xff]
          %v1120 = vld [vmem:[%s242 + $0xd0] sm:$0xff]
          %v1121 = vld [vmem:[%s242 + $0xd8] sm:$0xff]
          %v1122 = vld [vmem:[%s242 + $0xe0] sm:$0xff]
          %v1123 = vld [vmem:[%s242 + $0xe8] sm:$0xff]
          %v1124 = vld [vmem:[%s242 + $0xf0] sm:$0xff]
          %v1125 = vld [vmem:[%s242 + $0xf8] sm:$0xff]
          %v1126 = vstv %s1093
          %v1127 = vsel %vm1061, %v1126, %v1094
          %v1128 = vsel %vm1062, %v1126, %v1095
          %v1129 = vsel %vm1063, %v1126, %v1096
          %v1130 = vsel %vm1064, %v1126, %v1097
          %v1131 = vsel %vm1065, %v1126, %v1098
          %v1132 = vsel %vm1066, %v1126, %v1099
          %v1133 = vsel %vm1067, %v1126, %v1100
          %v1134 = vsel %vm1068, %v1126, %v1101
          %v1135 = vsel %vm1069, %v1126, %v1102
          %v1136 = vsel %vm1070, %v1126, %v1103
          %v1137 = vsel %vm1071, %v1126, %v1104
          %v1138 = vsel %vm1072, %v1126, %v1105
          %v1139 = vsel %vm1073, %v1126, %v1106
          %v1140 = vsel %vm1074, %v1126, %v1107
          %v1141 = vsel %vm1075, %v1126, %v1108
          %v1142 = vsel %vm1076, %v1126, %v1109
          %v1143 = vsel %vm1077, %v1126, %v1110
          %v1144 = vsel %vm1078, %v1126, %v1111
          %v1145 = vsel %vm1079, %v1126, %v1112
          %v1146 = vsel %vm1080, %v1126, %v1113
          %v1147 = vsel %vm1081, %v1126, %v1114
          %v1148 = vsel %vm1082, %v1126, %v1115
          %v1149 = vsel %vm1083, %v1126, %v1116
          %v1150 = vsel %vm1084, %v1126, %v1117
          %v1151 = vsel %vm1085, %v1126, %v1118
          %v1152 = vsel %vm1086, %v1126, %v1119
          %v1153 = vsel %vm1087, %v1126, %v1120
          %v1154 = vsel %vm1088, %v1126, %v1121
          %v1155 = vsel %vm1089, %v1126, %v1122
          %v1156 = vsel %vm1090, %v1126, %v1123
          %v1157 = vsel %vm1091, %v1126, %v1124
          %v1158 = vsel %vm1092, %v1126, %v1125
          %1159 = vst [vmem:[%s242] sm:$0xff] %v1127
          %1160 = vst [vmem:[%s242 + $0x8] sm:$0xff] %v1128
          %1161 = vst [vmem:[%s242 + $0x10] sm:$0xff] %v1129
          %1162 = vst [vmem:[%s242 + $0x18] sm:$0xff] %v1130
          %1163 = vst [vmem:[%s242 + $0x20] sm:$0xff] %v1131
          %1164 = vst [vmem:[%s242 + $0x28] sm:$0xff] %v1132
          %1165 = vst [vmem:[%s242 + $0x30] sm:$0xff] %v1133
          %1166 = vst [vmem:[%s242 + $0x38] sm:$0xff] %v1134
          %1167 = vst [vmem:[%s242 + $0x40] sm:$0xff] %v1135
          %1168 = vst [vmem:[%s242 + $0x48] sm:$0xff] %v1136
          %1169 = vst [vmem:[%s242 + $0x50] sm:$0xff] %v1137
          %1170 = vst [vmem:[%s242 + $0x58] sm:$0xff] %v1138
          %1171 = vst [vmem:[%s242 + $0x60] sm:$0xff] %v1139
          %1172 = vst [vmem:[%s242 + $0x68] sm:$0xff] %v1140
          %1173 = vst [vmem:[%s242 + $0x70] sm:$0xff] %v1141
          %1174 = vst [vmem:[%s242 + $0x78] sm:$0xff] %v1142
          %1175 = vst [vmem:[%s242 + $0x80] sm:$0xff] %v1143
          %1176 = vst [vmem:[%s242 + $0x88] sm:$0xff] %v1144
          %1177 = vst [vmem:[%s242 + $0x90] sm:$0xff] %v1145
          %1178 = vst [vmem:[%s242 + $0x98] sm:$0xff] %v1146
          %1179 = vst [vmem:[%s242 + $0xa0] sm:$0xff] %v1147
          %1180 = vst [vmem:[%s242 + $0xa8] sm:$0xff] %v1148
          %1181 = vst [vmem:[%s242 + $0xb0] sm:$0xff] %v1149
          %1182 = vst [vmem:[%s242 + $0xb8] sm:$0xff] %v1150
          %1183 = vst [vmem:[%s242 + $0xc0] sm:$0xff] %v1151
          %1184 = vst [vmem:[%s242 + $0xc8] sm:$0xff] %v1152
          %1185 = vst [vmem:[%s242 + $0xd0] sm:$0xff] %v1153
          %1186 = vst [vmem:[%s242 + $0xd8] sm:$0xff] %v1154
          %1187 = vst [vmem:[%s242 + $0xe0] sm:$0xff] %v1155
          %1188 = vst [vmem:[%s242 + $0xe8] sm:$0xff] %v1156
          %1189 = vst [vmem:[%s242 + $0xf0] sm:$0xff] %v1157
          %1190 = vst [vmem:[%s242 + $0xf8] sm:$0xff] %v1158
          %s1191 = sld [smem:[#allocation7 + $0x4]]
          %v1192 = vld [vmem:[#allocation2] sm:$0xff]
          %v1193 = vld [vmem:[#allocation2 + $0x8] sm:$0xff]
          %v1194 = vld [vmem:[#allocation2 + $0x10] sm:$0xff]
          %v1195 = vld [vmem:[#allocation2 + $0x18] sm:$0xff]
          %v1196 = vld [vmem:[#allocation2 + $0x20] sm:$0xff]
          %v1197 = vld [vmem:[#allocation2 + $0x28] sm:$0xff]
          %v1198 = vld [vmem:[#allocation2 + $0x30] sm:$0xff]
          %v1199 = vld [vmem:[#allocation2 + $0x38] sm:$0xff]
          %v1200 = vld [vmem:[#allocation2 + $0x40] sm:$0xff]
          %v1201 = vld [vmem:[#allocation2 + $0x48] sm:$0xff]
          %v1202 = vld [vmem:[#allocation2 + $0x50] sm:$0xff]
          %v1203 = vld [vmem:[#allocation2 + $0x58] sm:$0xff]
          %v1204 = vld [vmem:[#allocation2 + $0x60] sm:$0xff]
          %v1205 = vld [vmem:[#allocation2 + $0x68] sm:$0xff]
          %v1206 = vld [vmem:[#allocation2 + $0x70] sm:$0xff]
          %v1207 = vld [vmem:[#allocation2 + $0x78] sm:$0xff]
          %v1208 = vld [vmem:[#allocation2 + $0x80] sm:$0xff]
          %v1209 = vld [vmem:[#allocation2 + $0x88] sm:$0xff]
          %v1210 = vld [vmem:[#allocation2 + $0x90] sm:$0xff]
          %v1211 = vld [vmem:[#allocation2 + $0x98] sm:$0xff]
          %v1212 = vld [vmem:[#allocation2 + $0xa0] sm:$0xff]
          %v1213 = vld [vmem:[#allocation2 + $0xa8] sm:$0xff]
          %v1214 = vld [vmem:[#allocation2 + $0xb0] sm:$0xff]
          %v1215 = vld [vmem:[#allocation2 + $0xb8] sm:$0xff]
          %v1216 = vld [vmem:[#allocation2 + $0xc0] sm:$0xff]
          %v1217 = vld [vmem:[#allocation2 + $0xc8] sm:$0xff]
          %v1218 = vld [vmem:[#allocation2 + $0xd0] sm:$0xff]
          %v1219 = vld [vmem:[#allocation2 + $0xd8] sm:$0xff]
          %v1220 = vld [vmem:[#allocation2 + $0xe0] sm:$0xff]
          %v1221 = vld [vmem:[#allocation2 + $0xe8] sm:$0xff]
          %v1222 = vld [vmem:[#allocation2 + $0xf0] sm:$0xff]
          %v1223 = vld [vmem:[#allocation2 + $0xf8] sm:$0xff]
          %v1224 = vstv %s1191
          %v1225 = vsel %vm1061, %v1224, %v1192
          %v1226 = vsel %vm1062, %v1224, %v1193
          %v1227 = vsel %vm1063, %v1224, %v1194
          %v1228 = vsel %vm1064, %v1224, %v1195
          %v1229 = vsel %vm1065, %v1224, %v1196
          %v1230 = vsel %vm1066, %v1224, %v1197
          %v1231 = vsel %vm1067, %v1224, %v1198
          %v1232 = vsel %vm1068, %v1224, %v1199
          %v1233 = vsel %vm1069, %v1224, %v1200
          %v1234 = vsel %vm1070, %v1224, %v1201
          %v1235 = vsel %vm1071, %v1224, %v1202
          %v1236 = vsel %vm1072, %v1224, %v1203
          %v1237 = vsel %vm1073, %v1224, %v1204
          %v1238 = vsel %vm1074, %v1224, %v1205
          %v1239 = vsel %vm1075, %v1224, %v1206
          %v1240 = vsel %vm1076, %v1224, %v1207
          %v1241 = vsel %vm1077, %v1224, %v1208
          %v1242 = vsel %vm1078, %v1224, %v1209
          %v1243 = vsel %vm1079, %v1224, %v1210
          %v1244 = vsel %vm1080, %v1224, %v1211
          %v1245 = vsel %vm1081, %v1224, %v1212
          %v1246 = vsel %vm1082, %v1224, %v1213
          %v1247 = vsel %vm1083, %v1224, %v1214
          %v1248 = vsel %vm1084, %v1224, %v1215
          %v1249 = vsel %vm1085, %v1224, %v1216
          %v1250 = vsel %vm1086, %v1224, %v1217
          %v1251 = vsel %vm1087, %v1224, %v1218
          %v1252 = vsel %vm1088, %v1224, %v1219
          %v1253 = vsel %vm1089, %v1224, %v1220
          %v1254 = vsel %vm1090, %v1224, %v1221
          %v1255 = vsel %vm1091, %v1224, %v1222
          %v1256 = vsel %vm1092, %v1224, %v1223
          %1257 = vst [vmem:[#allocation2] sm:$0xff] %v1225
          %1258 = vst [vmem:[#allocation2 + $0x8] sm:$0xff] %v1226
          %1259 = vst [vmem:[#allocation2 + $0x10] sm:$0xff] %v1227
          %1260 = vst [vmem:[#allocation2 + $0x18] sm:$0xff] %v1228
          %1261 = vst [vmem:[#allocation2 + $0x20] sm:$0xff] %v1229
          %1262 = vst [vmem:[#allocation2 + $0x28] sm:$0xff] %v1230
          %1263 = vst [vmem:[#allocation2 + $0x30] sm:$0xff] %v1231
          %1264 = vst [vmem:[#allocation2 + $0x38] sm:$0xff] %v1232
          %1265 = vst [vmem:[#allocation2 + $0x40] sm:$0xff] %v1233
          %1266 = vst [vmem:[#allocation2 + $0x48] sm:$0xff] %v1234
          %1267 = vst [vmem:[#allocation2 + $0x50] sm:$0xff] %v1235
          %1268 = vst [vmem:[#allocation2 + $0x58] sm:$0xff] %v1236
          %1269 = vst [vmem:[#allocation2 + $0x60] sm:$0xff] %v1237
          %1270 = vst [vmem:[#allocation2 + $0x68] sm:$0xff] %v1238
          %1271 = vst [vmem:[#allocation2 + $0x70] sm:$0xff] %v1239
          %1272 = vst [vmem:[#allocation2 + $0x78] sm:$0xff] %v1240
          %1273 = vst [vmem:[#allocation2 + $0x80] sm:$0xff] %v1241
          %1274 = vst [vmem:[#allocation2 + $0x88] sm:$0xff] %v1242
          %1275 = vst [vmem:[#allocation2 + $0x90] sm:$0xff] %v1243
          %1276 = vst [vmem:[#allocation2 + $0x98] sm:$0xff] %v1244
          %1277 = vst [vmem:[#allocation2 + $0xa0] sm:$0xff] %v1245
          %1278 = vst [vmem:[#allocation2 + $0xa8] sm:$0xff] %v1246
          %1279 = vst [vmem:[#allocation2 + $0xb0] sm:$0xff] %v1247
          %1280 = vst [vmem:[#allocation2 + $0xb8] sm:$0xff] %v1248
          %1281 = vst [vmem:[#allocation2 + $0xc0] sm:$0xff] %v1249
          %1282 = vst [vmem:[#allocation2 + $0xc8] sm:$0xff] %v1250
          %1283 = vst [vmem:[#allocation2 + $0xd0] sm:$0xff] %v1251
          %1284 = vst [vmem:[#allocation2 + $0xd8] sm:$0xff] %v1252
          %1285 = vst [vmem:[#allocation2 + $0xe0] sm:$0xff] %v1253
          %1286 = vst [vmem:[#allocation2 + $0xe8] sm:$0xff] %v1254
          %1287 = vst [vmem:[#allocation2 + $0xf0] sm:$0xff] %v1255
          %1288 = vst [vmem:[#allocation2 + $0xf8] sm:$0xff] %v1256
        $region60: #{tpu_custom_call.1} parent=31 // pred_fallthru
          _
        %s1289 = sld [smem:[#allocation7 + $0x5]]
        %p1290 = scmp.ne.s32.totalorder %s1289, 0
        // Predicated region
        $region61: #{tpu_custom_call.1} parent=31 // pred_check
          %p1291 = pneg %p1290
        $region62: #{tpu_custom_call.1} parent=31 // pred_check_branch
          %1293 = sbr.rel (%p1291) target = $region64
        $region63: #{tpu_custom_call.1} parent=31 // pred_region
          %vm1294 = vcmp.eq.s32.totalorder %v261, 5
          %vm1295 = vcmp.eq.s32.totalorder %v262, 5
          %vm1296 = vcmp.eq.s32.totalorder %v263, 5
          %vm1297 = vcmp.eq.s32.totalorder %v264, 5
          %vm1298 = vcmp.eq.s32.totalorder %v265, 5
          %vm1299 = vcmp.eq.s32.totalorder %v266, 5
          %vm1300 = vcmp.eq.s32.totalorder %v267, 5
          %vm1301 = vcmp.eq.s32.totalorder %v268, 5
          %vm1302 = vcmp.eq.s32.totalorder %v269, 5
          %vm1303 = vcmp.eq.s32.totalorder %v270, 5
          %vm1304 = vcmp.eq.s32.totalorder %v271, 5
          %vm1305 = vcmp.eq.s32.totalorder %v272, 5
          %vm1306 = vcmp.eq.s32.totalorder %v273, 5
          %vm1307 = vcmp.eq.s32.totalorder %v274, 5
          %vm1308 = vcmp.eq.s32.totalorder %v275, 5
          %vm1309 = vcmp.eq.s32.totalorder %v276, 5
          %vm1310 = vcmp.eq.s32.totalorder %v277, 5
          %vm1311 = vcmp.eq.s32.totalorder %v278, 5
          %vm1312 = vcmp.eq.s32.totalorder %v279, 5
          %vm1313 = vcmp.eq.s32.totalorder %v280, 5
          %vm1314 = vcmp.eq.s32.totalorder %v281, 5
          %vm1315 = vcmp.eq.s32.totalorder %v282, 5
          %vm1316 = vcmp.eq.s32.totalorder %v283, 5
          %vm1317 = vcmp.eq.s32.totalorder %v284, 5
          %vm1318 = vcmp.eq.s32.totalorder %v285, 5
          %vm1319 = vcmp.eq.s32.totalorder %v286, 5
          %vm1320 = vcmp.eq.s32.totalorder %v287, 5
          %vm1321 = vcmp.eq.s32.totalorder %v288, 5
          %vm1322 = vcmp.eq.s32.totalorder %v289, 5
          %vm1323 = vcmp.eq.s32.totalorder %v290, 5
          %vm1324 = vcmp.eq.s32.totalorder %v291, 5
          %vm1325 = vcmp.eq.s32.totalorder %v292, 5
          %s1326 = sld [smem:[#allocation3 + $0x5]]
          %v1327 = vld [vmem:[%s242] sm:$0xff]
          %v1328 = vld [vmem:[%s242 + $0x8] sm:$0xff]
          %v1329 = vld [vmem:[%s242 + $0x10] sm:$0xff]
          %v1330 = vld [vmem:[%s242 + $0x18] sm:$0xff]
          %v1331 = vld [vmem:[%s242 + $0x20] sm:$0xff]
          %v1332 = vld [vmem:[%s242 + $0x28] sm:$0xff]
          %v1333 = vld [vmem:[%s242 + $0x30] sm:$0xff]
          %v1334 = vld [vmem:[%s242 + $0x38] sm:$0xff]
          %v1335 = vld [vmem:[%s242 + $0x40] sm:$0xff]
          %v1336 = vld [vmem:[%s242 + $0x48] sm:$0xff]
          %v1337 = vld [vmem:[%s242 + $0x50] sm:$0xff]
          %v1338 = vld [vmem:[%s242 + $0x58] sm:$0xff]
          %v1339 = vld [vmem:[%s242 + $0x60] sm:$0xff]
          %v1340 = vld [vmem:[%s242 + $0x68] sm:$0xff]
          %v1341 = vld [vmem:[%s242 + $0x70] sm:$0xff]
          %v1342 = vld [vmem:[%s242 + $0x78] sm:$0xff]
          %v1343 = vld [vmem:[%s242 + $0x80] sm:$0xff]
          %v1344 = vld [vmem:[%s242 + $0x88] sm:$0xff]
          %v1345 = vld [vmem:[%s242 + $0x90] sm:$0xff]
          %v1346 = vld [vmem:[%s242 + $0x98] sm:$0xff]
          %v1347 = vld [vmem:[%s242 + $0xa0] sm:$0xff]
          %v1348 = vld [vmem:[%s242 + $0xa8] sm:$0xff]
          %v1349 = vld [vmem:[%s242 + $0xb0] sm:$0xff]
          %v1350 = vld [vmem:[%s242 + $0xb8] sm:$0xff]
          %v1351 = vld [vmem:[%s242 + $0xc0] sm:$0xff]
          %v1352 = vld [vmem:[%s242 + $0xc8] sm:$0xff]
          %v1353 = vld [vmem:[%s242 + $0xd0] sm:$0xff]
          %v1354 = vld [vmem:[%s242 + $0xd8] sm:$0xff]
          %v1355 = vld [vmem:[%s242 + $0xe0] sm:$0xff]
          %v1356 = vld [vmem:[%s242 + $0xe8] sm:$0xff]
          %v1357 = vld [vmem:[%s242 + $0xf0] sm:$0xff]
          %v1358 = vld [vmem:[%s242 + $0xf8] sm:$0xff]
          %v1359 = vstv %s1326
          %v1360 = vsel %vm1294, %v1359, %v1327
          %v1361 = vsel %vm1295, %v1359, %v1328
          %v1362 = vsel %vm1296, %v1359, %v1329
          %v1363 = vsel %vm1297, %v1359, %v1330
          %v1364 = vsel %vm1298, %v1359, %v1331
          %v1365 = vsel %vm1299, %v1359, %v1332
          %v1366 = vsel %vm1300, %v1359, %v1333
          %v1367 = vsel %vm1301, %v1359, %v1334
          %v1368 = vsel %vm1302, %v1359, %v1335
          %v1369 = vsel %vm1303, %v1359, %v1336
          %v1370 = vsel %vm1304, %v1359, %v1337
          %v1371 = vsel %vm1305, %v1359, %v1338
          %v1372 = vsel %vm1306, %v1359, %v1339
          %v1373 = vsel %vm1307, %v1359, %v1340
          %v1374 = vsel %vm1308, %v1359, %v1341
          %v1375 = vsel %vm1309, %v1359, %v1342
          %v1376 = vsel %vm1310, %v1359, %v1343
          %v1377 = vsel %vm1311, %v1359, %v1344
          %v1378 = vsel %vm1312, %v1359, %v1345
          %v1379 = vsel %vm1313, %v1359, %v1346
          %v1380 = vsel %vm1314, %v1359, %v1347
          %v1381 = vsel %vm1315, %v1359, %v1348
          %v1382 = vsel %vm1316, %v1359, %v1349
          %v1383 = vsel %vm1317, %v1359, %v1350
          %v1384 = vsel %vm1318, %v1359, %v1351
          %v1385 = vsel %vm1319, %v1359, %v1352
          %v1386 = vsel %vm1320, %v1359, %v1353
          %v1387 = vsel %vm1321, %v1359, %v1354
          %v1388 = vsel %vm1322, %v1359, %v1355
          %v1389 = vsel %vm1323, %v1359, %v1356
          %v1390 = vsel %vm1324, %v1359, %v1357
          %v1391 = vsel %vm1325, %v1359, %v1358
          %1392 = vst [vmem:[%s242] sm:$0xff] %v1360
          %1393 = vst [vmem:[%s242 + $0x8] sm:$0xff] %v1361
          %1394 = vst [vmem:[%s242 + $0x10] sm:$0xff] %v1362
          %1395 = vst [vmem:[%s242 + $0x18] sm:$0xff] %v1363
          %1396 = vst [vmem:[%s242 + $0x20] sm:$0xff] %v1364
          %1397 = vst [vmem:[%s242 + $0x28] sm:$0xff] %v1365
          %1398 = vst [vmem:[%s242 + $0x30] sm:$0xff] %v1366
          %1399 = vst [vmem:[%s242 + $0x38] sm:$0xff] %v1367
          %1400 = vst [vmem:[%s242 + $0x40] sm:$0xff] %v1368
          %1401 = vst [vmem:[%s242 + $0x48] sm:$0xff] %v1369
          %1402 = vst [vmem:[%s242 + $0x50] sm:$0xff] %v1370
          %1403 = vst [vmem:[%s242 + $0x58] sm:$0xff] %v1371
          %1404 = vst [vmem:[%s242 + $0x60] sm:$0xff] %v1372
          %1405 = vst [vmem:[%s242 + $0x68] sm:$0xff] %v1373
          %1406 = vst [vmem:[%s242 + $0x70] sm:$0xff] %v1374
          %1407 = vst [vmem:[%s242 + $0x78] sm:$0xff] %v1375
          %1408 = vst [vmem:[%s242 + $0x80] sm:$0xff] %v1376
          %1409 = vst [vmem:[%s242 + $0x88] sm:$0xff] %v1377
          %1410 = vst [vmem:[%s242 + $0x90] sm:$0xff] %v1378
          %1411 = vst [vmem:[%s242 + $0x98] sm:$0xff] %v1379
          %1412 = vst [vmem:[%s242 + $0xa0] sm:$0xff] %v1380
          %1413 = vst [vmem:[%s242 + $0xa8] sm:$0xff] %v1381
          %1414 = vst [vmem:[%s242 + $0xb0] sm:$0xff] %v1382
          %1415 = vst [vmem:[%s242 + $0xb8] sm:$0xff] %v1383
          %1416 = vst [vmem:[%s242 + $0xc0] sm:$0xff] %v1384
          %1417 = vst [vmem:[%s242 + $0xc8] sm:$0xff] %v1385
          %1418 = vst [vmem:[%s242 + $0xd0] sm:$0xff] %v1386
          %1419 = vst [vmem:[%s242 + $0xd8] sm:$0xff] %v1387
          %1420 = vst [vmem:[%s242 + $0xe0] sm:$0xff] %v1388
          %1421 = vst [vmem:[%s242 + $0xe8] sm:$0xff] %v1389
          %1422 = vst [vmem:[%s242 + $0xf0] sm:$0xff] %v1390
          %1423 = vst [vmem:[%s242 + $0xf8] sm:$0xff] %v1391
          %s1424 = sld [smem:[#allocation7 + $0x5]]
          %v1425 = vld [vmem:[#allocation2] sm:$0xff]
          %v1426 = vld [vmem:[#allocation2 + $0x8] sm:$0xff]
          %v1427 = vld [vmem:[#allocation2 + $0x10] sm:$0xff]
          %v1428 = vld [vmem:[#allocation2 + $0x18] sm:$0xff]
          %v1429 = vld [vmem:[#allocation2 + $0x20] sm:$0xff]
          %v1430 = vld [vmem:[#allocation2 + $0x28] sm:$0xff]
          %v1431 = vld [vmem:[#allocation2 + $0x30] sm:$0xff]
          %v1432 = vld [vmem:[#allocation2 + $0x38] sm:$0xff]
          %v1433 = vld [vmem:[#allocation2 + $0x40] sm:$0xff]
          %v1434 = vld [vmem:[#allocation2 + $0x48] sm:$0xff]
          %v1435 = vld [vmem:[#allocation2 + $0x50] sm:$0xff]
          %v1436 = vld [vmem:[#allocation2 + $0x58] sm:$0xff]
          %v1437 = vld [vmem:[#allocation2 + $0x60] sm:$0xff]
          %v1438 = vld [vmem:[#allocation2 + $0x68] sm:$0xff]
          %v1439 = vld [vmem:[#allocation2 + $0x70] sm:$0xff]
          %v1440 = vld [vmem:[#allocation2 + $0x78] sm:$0xff]
          %v1441 = vld [vmem:[#allocation2 + $0x80] sm:$0xff]
          %v1442 = vld [vmem:[#allocation2 + $0x88] sm:$0xff]
          %v1443 = vld [vmem:[#allocation2 + $0x90] sm:$0xff]
          %v1444 = vld [vmem:[#allocation2 + $0x98] sm:$0xff]
          %v1445 = vld [vmem:[#allocation2 + $0xa0] sm:$0xff]
          %v1446 = vld [vmem:[#allocation2 + $0xa8] sm:$0xff]
          %v1447 = vld [vmem:[#allocation2 + $0xb0] sm:$0xff]
          %v1448 = vld [vmem:[#allocation2 + $0xb8] sm:$0xff]
          %v1449 = vld [vmem:[#allocation2 + $0xc0] sm:$0xff]
          %v1450 = vld [vmem:[#allocation2 + $0xc8] sm:$0xff]
          %v1451 = vld [vmem:[#allocation2 + $0xd0] sm:$0xff]
          %v1452 = vld [vmem:[#allocation2 + $0xd8] sm:$0xff]
          %v1453 = vld [vmem:[#allocation2 + $0xe0] sm:$0xff]
          %v1454 = vld [vmem:[#allocation2 + $0xe8] sm:$0xff]
          %v1455 = vld [vmem:[#allocation2 + $0xf0] sm:$0xff]
          %v1456 = vld [vmem:[#allocation2 + $0xf8] sm:$0xff]
          %v1457 = vstv %s1424
          %v1458 = vsel %vm1294, %v1457, %v1425
          %v1459 = vsel %vm1295, %v1457, %v1426
          %v1460 = vsel %vm1296, %v1457, %v1427
          %v1461 = vsel %vm1297, %v1457, %v1428
          %v1462 = vsel %vm1298, %v1457, %v1429
          %v1463 = vsel %vm1299, %v1457, %v1430
          %v1464 = vsel %vm1300, %v1457, %v1431
          %v1465 = vsel %vm1301, %v1457, %v1432
          %v1466 = vsel %vm1302, %v1457, %v1433
          %v1467 = vsel %vm1303, %v1457, %v1434
          %v1468 = vsel %vm1304, %v1457, %v1435
          %v1469 = vsel %vm1305, %v1457, %v1436
          %v1470 = vsel %vm1306, %v1457, %v1437
          %v1471 = vsel %vm1307, %v1457, %v1438
          %v1472 = vsel %vm1308, %v1457, %v1439
          %v1473 = vsel %vm1309, %v1457, %v1440
          %v1474 = vsel %vm1310, %v1457, %v1441
          %v1475 = vsel %vm1311, %v1457, %v1442
          %v1476 = vsel %vm1312, %v1457, %v1443
          %v1477 = vsel %vm1313, %v1457, %v1444
          %v1478 = vsel %vm1314, %v1457, %v1445
          %v1479 = vsel %vm1315, %v1457, %v1446
          %v1480 = vsel %vm1316, %v1457, %v1447
          %v1481 = vsel %vm1317, %v1457, %v1448
          %v1482 = vsel %vm1318, %v1457, %v1449
          %v1483 = vsel %vm1319, %v1457, %v1450
          %v1484 = vsel %vm1320, %v1457, %v1451
          %v1485 = vsel %vm1321, %v1457, %v1452
          %v1486 = vsel %vm1322, %v1457, %v1453
          %v1487 = vsel %vm1323, %v1457, %v1454
          %v1488 = vsel %vm1324, %v1457, %v1455
          %v1489 = vsel %vm1325, %v1457, %v1456
          %1490 = vst [vmem:[#allocation2] sm:$0xff] %v1458
          %1491 = vst [vmem:[#allocation2 + $0x8] sm:$0xff] %v1459
          %1492 = vst [vmem:[#allocation2 + $0x10] sm:$0xff] %v1460
          %1493 = vst [vmem:[#allocation2 + $0x18] sm:$0xff] %v1461
          %1494 = vst [vmem:[#allocation2 + $0x20] sm:$0xff] %v1462
          %1495 = vst [vmem:[#allocation2 + $0x28] sm:$0xff] %v1463
          %1496 = vst [vmem:[#allocation2 + $0x30] sm:$0xff] %v1464
          %1497 = vst [vmem:[#allocation2 + $0x38] sm:$0xff] %v1465
          %1498 = vst [vmem:[#allocation2 + $0x40] sm:$0xff] %v1466
          %1499 = vst [vmem:[#allocation2 + $0x48] sm:$0xff] %v1467
          %1500 = vst [vmem:[#allocation2 + $0x50] sm:$0xff] %v1468
          %1501 = vst [vmem:[#allocation2 + $0x58] sm:$0xff] %v1469
          %1502 = vst [vmem:[#allocation2 + $0x60] sm:$0xff] %v1470
          %1503 = vst [vmem:[#allocation2 + $0x68] sm:$0xff] %v1471
          %1504 = vst [vmem:[#allocation2 + $0x70] sm:$0xff] %v1472
          %1505 = vst [vmem:[#allocation2 + $0x78] sm:$0xff] %v1473
          %1506 = vst [vmem:[#allocation2 + $0x80] sm:$0xff] %v1474
          %1507 = vst [vmem:[#allocation2 + $0x88] sm:$0xff] %v1475
          %1508 = vst [vmem:[#allocation2 + $0x90] sm:$0xff] %v1476
          %1509 = vst [vmem:[#allocation2 + $0x98] sm:$0xff] %v1477
          %1510 = vst [vmem:[#allocation2 + $0xa0] sm:$0xff] %v1478
          %1511 = vst [vmem:[#allocation2 + $0xa8] sm:$0xff] %v1479
          %1512 = vst [vmem:[#allocation2 + $0xb0] sm:$0xff] %v1480
          %1513 = vst [vmem:[#allocation2 + $0xb8] sm:$0xff] %v1481
          %1514 = vst [vmem:[#allocation2 + $0xc0] sm:$0xff] %v1482
          %1515 = vst [vmem:[#allocation2 + $0xc8] sm:$0xff] %v1483
          %1516 = vst [vmem:[#allocation2 + $0xd0] sm:$0xff] %v1484
          %1517 = vst [vmem:[#allocation2 + $0xd8] sm:$0xff] %v1485
          %1518 = vst [vmem:[#allocation2 + $0xe0] sm:$0xff] %v1486
          %1519 = vst [vmem:[#allocation2 + $0xe8] sm:$0xff] %v1487
          %1520 = vst [vmem:[#allocation2 + $0xf0] sm:$0xff] %v1488
          %1521 = vst [vmem:[#allocation2 + $0xf8] sm:$0xff] %v1489
        $region64: #{tpu_custom_call.1} parent=31 // pred_fallthru
          _
        %s1522 = sld [smem:[#allocation7 + $0x6]]
        %p1523 = scmp.ne.s32.totalorder %s1522, 0
        // Predicated region
        $region65: #{tpu_custom_call.1} parent=31 // pred_check
          %p1524 = pneg %p1523
        $region66: #{tpu_custom_call.1} parent=31 // pred_check_branch
          %1526 = sbr.rel (%p1524) target = $region68
        $region67: #{tpu_custom_call.1} parent=31 // pred_region
          %vm1527 = vcmp.eq.s32.totalorder %v261, 6
          %vm1528 = vcmp.eq.s32.totalorder %v262, 6
          %vm1529 = vcmp.eq.s32.totalorder %v263, 6
          %vm1530 = vcmp.eq.s32.totalorder %v264, 6
          %vm1531 = vcmp.eq.s32.totalorder %v265, 6
          %vm1532 = vcmp.eq.s32.totalorder %v266, 6
          %vm1533 = vcmp.eq.s32.totalorder %v267, 6
          %vm1534 = vcmp.eq.s32.totalorder %v268, 6
          %vm1535 = vcmp.eq.s32.totalorder %v269, 6
          %vm1536 = vcmp.eq.s32.totalorder %v270, 6
          %vm1537 = vcmp.eq.s32.totalorder %v271, 6
          %vm1538 = vcmp.eq.s32.totalorder %v272, 6
          %vm1539 = vcmp.eq.s32.totalorder %v273, 6
          %vm1540 = vcmp.eq.s32.totalorder %v274, 6
          %vm1541 = vcmp.eq.s32.totalorder %v275, 6
          %vm1542 = vcmp.eq.s32.totalorder %v276, 6
          %vm1543 = vcmp.eq.s32.totalorder %v277, 6
          %vm1544 = vcmp.eq.s32.totalorder %v278, 6
          %vm1545 = vcmp.eq.s32.totalorder %v279, 6
          %vm1546 = vcmp.eq.s32.totalorder %v280, 6
          %vm1547 = vcmp.eq.s32.totalorder %v281, 6
          %vm1548 = vcmp.eq.s32.totalorder %v282, 6
          %vm1549 = vcmp.eq.s32.totalorder %v283, 6
          %vm1550 = vcmp.eq.s32.totalorder %v284, 6
          %vm1551 = vcmp.eq.s32.totalorder %v285, 6
          %vm1552 = vcmp.eq.s32.totalorder %v286, 6
          %vm1553 = vcmp.eq.s32.totalorder %v287, 6
          %vm1554 = vcmp.eq.s32.totalorder %v288, 6
          %vm1555 = vcmp.eq.s32.totalorder %v289, 6
          %vm1556 = vcmp.eq.s32.totalorder %v290, 6
          %vm1557 = vcmp.eq.s32.totalorder %v291, 6
          %vm1558 = vcmp.eq.s32.totalorder %v292, 6
          %s1559 = sld [smem:[#allocation3 + $0x6]]
          %v1560 = vld [vmem:[%s242] sm:$0xff]
          %v1561 = vld [vmem:[%s242 + $0x8] sm:$0xff]
          %v1562 = vld [vmem:[%s242 + $0x10] sm:$0xff]
          %v1563 = vld [vmem:[%s242 + $0x18] sm:$0xff]
          %v1564 = vld [vmem:[%s242 + $0x20] sm:$0xff]
          %v1565 = vld [vmem:[%s242 + $0x28] sm:$0xff]
          %v1566 = vld [vmem:[%s242 + $0x30] sm:$0xff]
          %v1567 = vld [vmem:[%s242 + $0x38] sm:$0xff]
          %v1568 = vld [vmem:[%s242 + $0x40] sm:$0xff]
          %v1569 = vld [vmem:[%s242 + $0x48] sm:$0xff]
          %v1570 = vld [vmem:[%s242 + $0x50] sm:$0xff]
          %v1571 = vld [vmem:[%s242 + $0x58] sm:$0xff]
          %v1572 = vld [vmem:[%s242 + $0x60] sm:$0xff]
          %v1573 = vld [vmem:[%s242 + $0x68] sm:$0xff]
          %v1574 = vld [vmem:[%s242 + $0x70] sm:$0xff]
          %v1575 = vld [vmem:[%s242 + $0x78] sm:$0xff]
          %v1576 = vld [vmem:[%s242 + $0x80] sm:$0xff]
          %v1577 = vld [vmem:[%s242 + $0x88] sm:$0xff]
          %v1578 = vld [vmem:[%s242 + $0x90] sm:$0xff]
          %v1579 = vld [vmem:[%s242 + $0x98] sm:$0xff]
          %v1580 = vld [vmem:[%s242 + $0xa0] sm:$0xff]
          %v1581 = vld [vmem:[%s242 + $0xa8] sm:$0xff]
          %v1582 = vld [vmem:[%s242 + $0xb0] sm:$0xff]
          %v1583 = vld [vmem:[%s242 + $0xb8] sm:$0xff]
          %v1584 = vld [vmem:[%s242 + $0xc0] sm:$0xff]
          %v1585 = vld [vmem:[%s242 + $0xc8] sm:$0xff]
          %v1586 = vld [vmem:[%s242 + $0xd0] sm:$0xff]
          %v1587 = vld [vmem:[%s242 + $0xd8] sm:$0xff]
          %v1588 = vld [vmem:[%s242 + $0xe0] sm:$0xff]
          %v1589 = vld [vmem:[%s242 + $0xe8] sm:$0xff]
          %v1590 = vld [vmem:[%s242 + $0xf0] sm:$0xff]
          %v1591 = vld [vmem:[%s242 + $0xf8] sm:$0xff]
          %v1592 = vstv %s1559
          %v1593 = vsel %vm1527, %v1592, %v1560
          %v1594 = vsel %vm1528, %v1592, %v1561
          %v1595 = vsel %vm1529, %v1592, %v1562
          %v1596 = vsel %vm1530, %v1592, %v1563
          %v1597 = vsel %vm1531, %v1592, %v1564
          %v1598 = vsel %vm1532, %v1592, %v1565
          %v1599 = vsel %vm1533, %v1592, %v1566
          %v1600 = vsel %vm1534, %v1592, %v1567
          %v1601 = vsel %vm1535, %v1592, %v1568
          %v1602 = vsel %vm1536, %v1592, %v1569
          %v1603 = vsel %vm1537, %v1592, %v1570
          %v1604 = vsel %vm1538, %v1592, %v1571
          %v1605 = vsel %vm1539, %v1592, %v1572
          %v1606 = vsel %vm1540, %v1592, %v1573
          %v1607 = vsel %vm1541, %v1592, %v1574
          %v1608 = vsel %vm1542, %v1592, %v1575
          %v1609 = vsel %vm1543, %v1592, %v1576
          %v1610 = vsel %vm1544, %v1592, %v1577
          %v1611 = vsel %vm1545, %v1592, %v1578
          %v1612 = vsel %vm1546, %v1592, %v1579
          %v1613 = vsel %vm1547, %v1592, %v1580
          %v1614 = vsel %vm1548, %v1592, %v1581
          %v1615 = vsel %vm1549, %v1592, %v1582
          %v1616 = vsel %vm1550, %v1592, %v1583
          %v1617 = vsel %vm1551, %v1592, %v1584
          %v1618 = vsel %vm1552, %v1592, %v1585
          %v1619 = vsel %vm1553, %v1592, %v1586
          %v1620 = vsel %vm1554, %v1592, %v1587
          %v1621 = vsel %vm1555, %v1592, %v1588
          %v1622 = vsel %vm1556, %v1592, %v1589
          %v1623 = vsel %vm1557, %v1592, %v1590
          %v1624 = vsel %vm1558, %v1592, %v1591
          %1625 = vst [vmem:[%s242] sm:$0xff] %v1593
          %1626 = vst [vmem:[%s242 + $0x8] sm:$0xff] %v1594
          %1627 = vst [vmem:[%s242 + $0x10] sm:$0xff] %v1595
          %1628 = vst [vmem:[%s242 + $0x18] sm:$0xff] %v1596
          %1629 = vst [vmem:[%s242 + $0x20] sm:$0xff] %v1597
          %1630 = vst [vmem:[%s242 + $0x28] sm:$0xff] %v1598
          %1631 = vst [vmem:[%s242 + $0x30] sm:$0xff] %v1599
          %1632 = vst [vmem:[%s242 + $0x38] sm:$0xff] %v1600
          %1633 = vst [vmem:[%s242 + $0x40] sm:$0xff] %v1601
          %1634 = vst [vmem:[%s242 + $0x48] sm:$0xff] %v1602
          %1635 = vst [vmem:[%s242 + $0x50] sm:$0xff] %v1603
          %1636 = vst [vmem:[%s242 + $0x58] sm:$0xff] %v1604
          %1637 = vst [vmem:[%s242 + $0x60] sm:$0xff] %v1605
          %1638 = vst [vmem:[%s242 + $0x68] sm:$0xff] %v1606
          %1639 = vst [vmem:[%s242 + $0x70] sm:$0xff] %v1607
          %1640 = vst [vmem:[%s242 + $0x78] sm:$0xff] %v1608
          %1641 = vst [vmem:[%s242 + $0x80] sm:$0xff] %v1609
          %1642 = vst [vmem:[%s242 + $0x88] sm:$0xff] %v1610
          %1643 = vst [vmem:[%s242 + $0x90] sm:$0xff] %v1611
          %1644 = vst [vmem:[%s242 + $0x98] sm:$0xff] %v1612
          %1645 = vst [vmem:[%s242 + $0xa0] sm:$0xff] %v1613
          %1646 = vst [vmem:[%s242 + $0xa8] sm:$0xff] %v1614
          %1647 = vst [vmem:[%s242 + $0xb0] sm:$0xff] %v1615
          %1648 = vst [vmem:[%s242 + $0xb8] sm:$0xff] %v1616
          %1649 = vst [vmem:[%s242 + $0xc0] sm:$0xff] %v1617
          %1650 = vst [vmem:[%s242 + $0xc8] sm:$0xff] %v1618
          %1651 = vst [vmem:[%s242 + $0xd0] sm:$0xff] %v1619
          %1652 = vst [vmem:[%s242 + $0xd8] sm:$0xff] %v1620
          %1653 = vst [vmem:[%s242 + $0xe0] sm:$0xff] %v1621
          %1654 = vst [vmem:[%s242 + $0xe8] sm:$0xff] %v1622
          %1655 = vst [vmem:[%s242 + $0xf0] sm:$0xff] %v1623
          %1656 = vst [vmem:[%s242 + $0xf8] sm:$0xff] %v1624
          %s1657 = sld [smem:[#allocation7 + $0x6]]
          %v1658 = vld [vmem:[#allocation2] sm:$0xff]
          %v1659 = vld [vmem:[#allocation2 + $0x8] sm:$0xff]
          %v1660 = vld [vmem:[#allocation2 + $0x10] sm:$0xff]
          %v1661 = vld [vmem:[#allocation2 + $0x18] sm:$0xff]
          %v1662 = vld [vmem:[#allocation2 + $0x20] sm:$0xff]
          %v1663 = vld [vmem:[#allocation2 + $0x28] sm:$0xff]
          %v1664 = vld [vmem:[#allocation2 + $0x30] sm:$0xff]
          %v1665 = vld [vmem:[#allocation2 + $0x38] sm:$0xff]
          %v1666 = vld [vmem:[#allocation2 + $0x40] sm:$0xff]
          %v1667 = vld [vmem:[#allocation2 + $0x48] sm:$0xff]
          %v1668 = vld [vmem:[#allocation2 + $0x50] sm:$0xff]
          %v1669 = vld [vmem:[#allocation2 + $0x58] sm:$0xff]
          %v1670 = vld [vmem:[#allocation2 + $0x60] sm:$0xff]
          %v1671 = vld [vmem:[#allocation2 + $0x68] sm:$0xff]
          %v1672 = vld [vmem:[#allocation2 + $0x70] sm:$0xff]
          %v1673 = vld [vmem:[#allocation2 + $0x78] sm:$0xff]
          %v1674 = vld [vmem:[#allocation2 + $0x80] sm:$0xff]
          %v1675 = vld [vmem:[#allocation2 + $0x88] sm:$0xff]
          %v1676 = vld [vmem:[#allocation2 + $0x90] sm:$0xff]
          %v1677 = vld [vmem:[#allocation2 + $0x98] sm:$0xff]
          %v1678 = vld [vmem:[#allocation2 + $0xa0] sm:$0xff]
          %v1679 = vld [vmem:[#allocation2 + $0xa8] sm:$0xff]
          %v1680 = vld [vmem:[#allocation2 + $0xb0] sm:$0xff]
          %v1681 = vld [vmem:[#allocation2 + $0xb8] sm:$0xff]
          %v1682 = vld [vmem:[#allocation2 + $0xc0] sm:$0xff]
          %v1683 = vld [vmem:[#allocation2 + $0xc8] sm:$0xff]
          %v1684 = vld [vmem:[#allocation2 + $0xd0] sm:$0xff]
          %v1685 = vld [vmem:[#allocation2 + $0xd8] sm:$0xff]
          %v1686 = vld [vmem:[#allocation2 + $0xe0] sm:$0xff]
          %v1687 = vld [vmem:[#allocation2 + $0xe8] sm:$0xff]
          %v1688 = vld [vmem:[#allocation2 + $0xf0] sm:$0xff]
          %v1689 = vld [vmem:[#allocation2 + $0xf8] sm:$0xff]
          %v1690 = vstv %s1657
          %v1691 = vsel %vm1527, %v1690, %v1658
          %v1692 = vsel %vm1528, %v1690, %v1659
          %v1693 = vsel %vm1529, %v1690, %v1660
          %v1694 = vsel %vm1530, %v1690, %v1661
          %v1695 = vsel %vm1531, %v1690, %v1662
          %v1696 = vsel %vm1532, %v1690, %v1663
          %v1697 = vsel %vm1533, %v1690, %v1664
          %v1698 = vsel %vm1534, %v1690, %v1665
          %v1699 = vsel %vm1535, %v1690, %v1666
          %v1700 = vsel %vm1536, %v1690, %v1667
          %v1701 = vsel %vm1537, %v1690, %v1668
          %v1702 = vsel %vm1538, %v1690, %v1669
          %v1703 = vsel %vm1539, %v1690, %v1670
          %v1704 = vsel %vm1540, %v1690, %v1671
          %v1705 = vsel %vm1541, %v1690, %v1672
          %v1706 = vsel %vm1542, %v1690, %v1673
          %v1707 = vsel %vm1543, %v1690, %v1674
          %v1708 = vsel %vm1544, %v1690, %v1675
          %v1709 = vsel %vm1545, %v1690, %v1676
          %v1710 = vsel %vm1546, %v1690, %v1677
          %v1711 = vsel %vm1547, %v1690, %v1678
          %v1712 = vsel %vm1548, %v1690, %v1679
          %v1713 = vsel %vm1549, %v1690, %v1680
          %v1714 = vsel %vm1550, %v1690, %v1681
          %v1715 = vsel %vm1551, %v1690, %v1682
          %v1716 = vsel %vm1552, %v1690, %v1683
          %v1717 = vsel %vm1553, %v1690, %v1684
          %v1718 = vsel %vm1554, %v1690, %v1685
          %v1719 = vsel %vm1555, %v1690, %v1686
          %v1720 = vsel %vm1556, %v1690, %v1687
          %v1721 = vsel %vm1557, %v1690, %v1688
          %v1722 = vsel %vm1558, %v1690, %v1689
          %1723 = vst [vmem:[#allocation2] sm:$0xff] %v1691
          %1724 = vst [vmem:[#allocation2 + $0x8] sm:$0xff] %v1692
          %1725 = vst [vmem:[#allocation2 + $0x10] sm:$0xff] %v1693
          %1726 = vst [vmem:[#allocation2 + $0x18] sm:$0xff] %v1694
          %1727 = vst [vmem:[#allocation2 + $0x20] sm:$0xff] %v1695
          %1728 = vst [vmem:[#allocation2 + $0x28] sm:$0xff] %v1696
          %1729 = vst [vmem:[#allocation2 + $0x30] sm:$0xff] %v1697
          %1730 = vst [vmem:[#allocation2 + $0x38] sm:$0xff] %v1698
          %1731 = vst [vmem:[#allocation2 + $0x40] sm:$0xff] %v1699
          %1732 = vst [vmem:[#allocation2 + $0x48] sm:$0xff] %v1700
          %1733 = vst [vmem:[#allocation2 + $0x50] sm:$0xff] %v1701
          %1734 = vst [vmem:[#allocation2 + $0x58] sm:$0xff] %v1702
          %1735 = vst [vmem:[#allocation2 + $0x60] sm:$0xff] %v1703
          %1736 = vst [vmem:[#allocation2 + $0x68] sm:$0xff] %v1704
          %1737 = vst [vmem:[#allocation2 + $0x70] sm:$0xff] %v1705
          %1738 = vst [vmem:[#allocation2 + $0x78] sm:$0xff] %v1706
          %1739 = vst [vmem:[#allocation2 + $0x80] sm:$0xff] %v1707
          %1740 = vst [vmem:[#allocation2 + $0x88] sm:$0xff] %v1708
          %1741 = vst [vmem:[#allocation2 + $0x90] sm:$0xff] %v1709
          %1742 = vst [vmem:[#allocation2 + $0x98] sm:$0xff] %v1710
          %1743 = vst [vmem:[#allocation2 + $0xa0] sm:$0xff] %v1711
          %1744 = vst [vmem:[#allocation2 + $0xa8] sm:$0xff] %v1712
          %1745 = vst [vmem:[#allocation2 + $0xb0] sm:$0xff] %v1713
          %1746 = vst [vmem:[#allocation2 + $0xb8] sm:$0xff] %v1714
          %1747 = vst [vmem:[#allocation2 + $0xc0] sm:$0xff] %v1715
          %1748 = vst [vmem:[#allocation2 + $0xc8] sm:$0xff] %v1716
          %1749 = vst [vmem:[#allocation2 + $0xd0] sm:$0xff] %v1717
          %1750 = vst [vmem:[#allocation2 + $0xd8] sm:$0xff] %v1718
          %1751 = vst [vmem:[#allocation2 + $0xe0] sm:$0xff] %v1719
          %1752 = vst [vmem:[#allocation2 + $0xe8] sm:$0xff] %v1720
          %1753 = vst [vmem:[#allocation2 + $0xf0] sm:$0xff] %v1721
          %1754 = vst [vmem:[#allocation2 + $0xf8] sm:$0xff] %v1722
        $region68: #{tpu_custom_call.1} parent=31 // pred_fallthru
          _
        %s1755 = sld [smem:[#allocation7 + $0x7]]
        %p1756 = scmp.ne.s32.totalorder %s1755, 0
        // Predicated region
        $region69: #{tpu_custom_call.1} parent=31 // pred_check
          %p1757 = pneg %p1756
        $region70: #{tpu_custom_call.1} parent=31 // pred_check_branch
          %1759 = sbr.rel (%p1757) target = $region72
        $region71: #{tpu_custom_call.1} parent=31 // pred_region
          %vm1760 = vcmp.eq.s32.totalorder %v261, 7
          %vm1761 = vcmp.eq.s32.totalorder %v262, 7
          %vm1762 = vcmp.eq.s32.totalorder %v263, 7
          %vm1763 = vcmp.eq.s32.totalorder %v264, 7
          %vm1764 = vcmp.eq.s32.totalorder %v265, 7
          %vm1765 = vcmp.eq.s32.totalorder %v266, 7
          %vm1766 = vcmp.eq.s32.totalorder %v267, 7
          %vm1767 = vcmp.eq.s32.totalorder %v268, 7
          %vm1768 = vcmp.eq.s32.totalorder %v269, 7
          %vm1769 = vcmp.eq.s32.totalorder %v270, 7
          %vm1770 = vcmp.eq.s32.totalorder %v271, 7
          %vm1771 = vcmp.eq.s32.totalorder %v272, 7
          %vm1772 = vcmp.eq.s32.totalorder %v273, 7
          %vm1773 = vcmp.eq.s32.totalorder %v274, 7
          %vm1774 = vcmp.eq.s32.totalorder %v275, 7
          %vm1775 = vcmp.eq.s32.totalorder %v276, 7
          %vm1776 = vcmp.eq.s32.totalorder %v277, 7
          %vm1777 = vcmp.eq.s32.totalorder %v278, 7
          %vm1778 = vcmp.eq.s32.totalorder %v279, 7
          %vm1779 = vcmp.eq.s32.totalorder %v280, 7
          %vm1780 = vcmp.eq.s32.totalorder %v281, 7
          %vm1781 = vcmp.eq.s32.totalorder %v282, 7
          %vm1782 = vcmp.eq.s32.totalorder %v283, 7
          %vm1783 = vcmp.eq.s32.totalorder %v284, 7
          %vm1784 = vcmp.eq.s32.totalorder %v285, 7
          %vm1785 = vcmp.eq.s32.totalorder %v286, 7
          %vm1786 = vcmp.eq.s32.totalorder %v287, 7
          %vm1787 = vcmp.eq.s32.totalorder %v288, 7
          %vm1788 = vcmp.eq.s32.totalorder %v289, 7
          %vm1789 = vcmp.eq.s32.totalorder %v290, 7
          %vm1790 = vcmp.eq.s32.totalorder %v291, 7
          %vm1791 = vcmp.eq.s32.totalorder %v292, 7
          %s1792 = sld [smem:[#allocation3 + $0x7]]
          %v1793 = vld [vmem:[%s242] sm:$0xff]
          %v1794 = vld [vmem:[%s242 + $0x8] sm:$0xff]
          %v1795 = vld [vmem:[%s242 + $0x10] sm:$0xff]
          %v1796 = vld [vmem:[%s242 + $0x18] sm:$0xff]
          %v1797 = vld [vmem:[%s242 + $0x20] sm:$0xff]
          %v1798 = vld [vmem:[%s242 + $0x28] sm:$0xff]
          %v1799 = vld [vmem:[%s242 + $0x30] sm:$0xff]
          %v1800 = vld [vmem:[%s242 + $0x38] sm:$0xff]
          %v1801 = vld [vmem:[%s242 + $0x40] sm:$0xff]
          %v1802 = vld [vmem:[%s242 + $0x48] sm:$0xff]
          %v1803 = vld [vmem:[%s242 + $0x50] sm:$0xff]
          %v1804 = vld [vmem:[%s242 + $0x58] sm:$0xff]
          %v1805 = vld [vmem:[%s242 + $0x60] sm:$0xff]
          %v1806 = vld [vmem:[%s242 + $0x68] sm:$0xff]
          %v1807 = vld [vmem:[%s242 + $0x70] sm:$0xff]
          %v1808 = vld [vmem:[%s242 + $0x78] sm:$0xff]
          %v1809 = vld [vmem:[%s242 + $0x80] sm:$0xff]
          %v1810 = vld [vmem:[%s242 + $0x88] sm:$0xff]
          %v1811 = vld [vmem:[%s242 + $0x90] sm:$0xff]
          %v1812 = vld [vmem:[%s242 + $0x98] sm:$0xff]
          %v1813 = vld [vmem:[%s242 + $0xa0] sm:$0xff]
          %v1814 = vld [vmem:[%s242 + $0xa8] sm:$0xff]
          %v1815 = vld [vmem:[%s242 + $0xb0] sm:$0xff]
          %v1816 = vld [vmem:[%s242 + $0xb8] sm:$0xff]
          %v1817 = vld [vmem:[%s242 + $0xc0] sm:$0xff]
          %v1818 = vld [vmem:[%s242 + $0xc8] sm:$0xff]
          %v1819 = vld [vmem:[%s242 + $0xd0] sm:$0xff]
          %v1820 = vld [vmem:[%s242 + $0xd8] sm:$0xff]
          %v1821 = vld [vmem:[%s242 + $0xe0] sm:$0xff]
          %v1822 = vld [vmem:[%s242 + $0xe8] sm:$0xff]
          %v1823 = vld [vmem:[%s242 + $0xf0] sm:$0xff]
          %v1824 = vld [vmem:[%s242 + $0xf8] sm:$0xff]
          %v1825 = vstv %s1792
          %v1826 = vsel %vm1760, %v1825, %v1793
          %v1827 = vsel %vm1761, %v1825, %v1794
          %v1828 = vsel %vm1762, %v1825, %v1795
          %v1829 = vsel %vm1763, %v1825, %v1796
          %v1830 = vsel %vm1764, %v1825, %v1797
          %v1831 = vsel %vm1765, %v1825, %v1798
          %v1832 = vsel %vm1766, %v1825, %v1799
          %v1833 = vsel %vm1767, %v1825, %v1800
          %v1834 = vsel %vm1768, %v1825, %v1801
          %v1835 = vsel %vm1769, %v1825, %v1802
          %v1836 = vsel %vm1770, %v1825, %v1803
          %v1837 = vsel %vm1771, %v1825, %v1804
          %v1838 = vsel %vm1772, %v1825, %v1805
          %v1839 = vsel %vm1773, %v1825, %v1806
          %v1840 = vsel %vm1774, %v1825, %v1807
          %v1841 = vsel %vm1775, %v1825, %v1808
          %v1842 = vsel %vm1776, %v1825, %v1809
          %v1843 = vsel %vm1777, %v1825, %v1810
          %v1844 = vsel %vm1778, %v1825, %v1811
          %v1845 = vsel %vm1779, %v1825, %v1812
          %v1846 = vsel %vm1780, %v1825, %v1813
          %v1847 = vsel %vm1781, %v1825, %v1814
          %v1848 = vsel %vm1782, %v1825, %v1815
          %v1849 = vsel %vm1783, %v1825, %v1816
          %v1850 = vsel %vm1784, %v1825, %v1817
          %v1851 = vsel %vm1785, %v1825, %v1818
          %v1852 = vsel %vm1786, %v1825, %v1819
          %v1853 = vsel %vm1787, %v1825, %v1820
          %v1854 = vsel %vm1788, %v1825, %v1821
          %v1855 = vsel %vm1789, %v1825, %v1822
          %v1856 = vsel %vm1790, %v1825, %v1823
          %v1857 = vsel %vm1791, %v1825, %v1824
          %1858 = vst [vmem:[%s242] sm:$0xff] %v1826
          %1859 = vst [vmem:[%s242 + $0x8] sm:$0xff] %v1827
          %1860 = vst [vmem:[%s242 + $0x10] sm:$0xff] %v1828
          %1861 = vst [vmem:[%s242 + $0x18] sm:$0xff] %v1829
          %1862 = vst [vmem:[%s242 + $0x20] sm:$0xff] %v1830
          %1863 = vst [vmem:[%s242 + $0x28] sm:$0xff] %v1831
          %1864 = vst [vmem:[%s242 + $0x30] sm:$0xff] %v1832
          %1865 = vst [vmem:[%s242 + $0x38] sm:$0xff] %v1833
          %1866 = vst [vmem:[%s242 + $0x40] sm:$0xff] %v1834
          %1867 = vst [vmem:[%s242 + $0x48] sm:$0xff] %v1835
          %1868 = vst [vmem:[%s242 + $0x50] sm:$0xff] %v1836
          %1869 = vst [vmem:[%s242 + $0x58] sm:$0xff] %v1837
          %1870 = vst [vmem:[%s242 + $0x60] sm:$0xff] %v1838
          %1871 = vst [vmem:[%s242 + $0x68] sm:$0xff] %v1839
          %1872 = vst [vmem:[%s242 + $0x70] sm:$0xff] %v1840
          %1873 = vst [vmem:[%s242 + $0x78] sm:$0xff] %v1841
          %1874 = vst [vmem:[%s242 + $0x80] sm:$0xff] %v1842
          %1875 = vst [vmem:[%s242 + $0x88] sm:$0xff] %v1843
          %1876 = vst [vmem:[%s242 + $0x90] sm:$0xff] %v1844
          %1877 = vst [vmem:[%s242 + $0x98] sm:$0xff] %v1845
          %1878 = vst [vmem:[%s242 + $0xa0] sm:$0xff] %v1846
          %1879 = vst [vmem:[%s242 + $0xa8] sm:$0xff] %v1847
          %1880 = vst [vmem:[%s242 + $0xb0] sm:$0xff] %v1848
          %1881 = vst [vmem:[%s242 + $0xb8] sm:$0xff] %v1849
          %1882 = vst [vmem:[%s242 + $0xc0] sm:$0xff] %v1850
          %1883 = vst [vmem:[%s242 + $0xc8] sm:$0xff] %v1851
          %1884 = vst [vmem:[%s242 + $0xd0] sm:$0xff] %v1852
          %1885 = vst [vmem:[%s242 + $0xd8] sm:$0xff] %v1853
          %1886 = vst [vmem:[%s242 + $0xe0] sm:$0xff] %v1854
          %1887 = vst [vmem:[%s242 + $0xe8] sm:$0xff] %v1855
          %1888 = vst [vmem:[%s242 + $0xf0] sm:$0xff] %v1856
          %1889 = vst [vmem:[%s242 + $0xf8] sm:$0xff] %v1857
          %s1890 = sld [smem:[#allocation7 + $0x7]]
          %v1891 = vld [vmem:[#allocation2] sm:$0xff]
          %v1892 = vld [vmem:[#allocation2 + $0x8] sm:$0xff]
          %v1893 = vld [vmem:[#allocation2 + $0x10] sm:$0xff]
          %v1894 = vld [vmem:[#allocation2 + $0x18] sm:$0xff]
          %v1895 = vld [vmem:[#allocation2 + $0x20] sm:$0xff]
          %v1896 = vld [vmem:[#allocation2 + $0x28] sm:$0xff]
          %v1897 = vld [vmem:[#allocation2 + $0x30] sm:$0xff]
          %v1898 = vld [vmem:[#allocation2 + $0x38] sm:$0xff]
          %v1899 = vld [vmem:[#allocation2 + $0x40] sm:$0xff]
          %v1900 = vld [vmem:[#allocation2 + $0x48] sm:$0xff]
          %v1901 = vld [vmem:[#allocation2 + $0x50] sm:$0xff]
          %v1902 = vld [vmem:[#allocation2 + $0x58] sm:$0xff]
          %v1903 = vld [vmem:[#allocation2 + $0x60] sm:$0xff]
          %v1904 = vld [vmem:[#allocation2 + $0x68] sm:$0xff]
          %v1905 = vld [vmem:[#allocation2 + $0x70] sm:$0xff]
          %v1906 = vld [vmem:[#allocation2 + $0x78] sm:$0xff]
          %v1907 = vld [vmem:[#allocation2 + $0x80] sm:$0xff]
          %v1908 = vld [vmem:[#allocation2 + $0x88] sm:$0xff]
          %v1909 = vld [vmem:[#allocation2 + $0x90] sm:$0xff]
          %v1910 = vld [vmem:[#allocation2 + $0x98] sm:$0xff]
          %v1911 = vld [vmem:[#allocation2 + $0xa0] sm:$0xff]
          %v1912 = vld [vmem:[#allocation2 + $0xa8] sm:$0xff]
          %v1913 = vld [vmem:[#allocation2 + $0xb0] sm:$0xff]
          %v1914 = vld [vmem:[#allocation2 + $0xb8] sm:$0xff]
          %v1915 = vld [vmem:[#allocation2 + $0xc0] sm:$0xff]
          %v1916 = vld [vmem:[#allocation2 + $0xc8] sm:$0xff]
          %v1917 = vld [vmem:[#allocation2 + $0xd0] sm:$0xff]
          %v1918 = vld [vmem:[#allocation2 + $0xd8] sm:$0xff]
          %v1919 = vld [vmem:[#allocation2 + $0xe0] sm:$0xff]
          %v1920 = vld [vmem:[#allocation2 + $0xe8] sm:$0xff]
          %v1921 = vld [vmem:[#allocation2 + $0xf0] sm:$0xff]
          %v1922 = vld [vmem:[#allocation2 + $0xf8] sm:$0xff]
          %v1923 = vstv %s1890
          %v1924 = vsel %vm1760, %v1923, %v1891
          %v1925 = vsel %vm1761, %v1923, %v1892
          %v1926 = vsel %vm1762, %v1923, %v1893
          %v1927 = vsel %vm1763, %v1923, %v1894
          %v1928 = vsel %vm1764, %v1923, %v1895
          %v1929 = vsel %vm1765, %v1923, %v1896
          %v1930 = vsel %vm1766, %v1923, %v1897
          %v1931 = vsel %vm1767, %v1923, %v1898
          %v1932 = vsel %vm1768, %v1923, %v1899
          %v1933 = vsel %vm1769, %v1923, %v1900
          %v1934 = vsel %vm1770, %v1923, %v1901
          %v1935 = vsel %vm1771, %v1923, %v1902
          %v1936 = vsel %vm1772, %v1923, %v1903
          %v1937 = vsel %vm1773, %v1923, %v1904
          %v1938 = vsel %vm1774, %v1923, %v1905
          %v1939 = vsel %vm1775, %v1923, %v1906
          %v1940 = vsel %vm1776, %v1923, %v1907
          %v1941 = vsel %vm1777, %v1923, %v1908
          %v1942 = vsel %vm1778, %v1923, %v1909
          %v1943 = vsel %vm1779, %v1923, %v1910
          %v1944 = vsel %vm1780, %v1923, %v1911
          %v1945 = vsel %vm1781, %v1923, %v1912
          %v1946 = vsel %vm1782, %v1923, %v1913
          %v1947 = vsel %vm1783, %v1923, %v1914
          %v1948 = vsel %vm1784, %v1923, %v1915
          %v1949 = vsel %vm1785, %v1923, %v1916
          %v1950 = vsel %vm1786, %v1923, %v1917
          %v1951 = vsel %vm1787, %v1923, %v1918
          %v1952 = vsel %vm1788, %v1923, %v1919
          %v1953 = vsel %vm1789, %v1923, %v1920
          %v1954 = vsel %vm1790, %v1923, %v1921
          %v1955 = vsel %vm1791, %v1923, %v1922
          %1956 = vst [vmem:[#allocation2] sm:$0xff] %v1924
          %1957 = vst [vmem:[#allocation2 + $0x8] sm:$0xff] %v1925
          %1958 = vst [vmem:[#allocation2 + $0x10] sm:$0xff] %v1926
          %1959 = vst [vmem:[#allocation2 + $0x18] sm:$0xff] %v1927
          %1960 = vst [vmem:[#allocation2 + $0x20] sm:$0xff] %v1928
          %1961 = vst [vmem:[#allocation2 + $0x28] sm:$0xff] %v1929
          %1962 = vst [vmem:[#allocation2 + $0x30] sm:$0xff] %v1930
          %1963 = vst [vmem:[#allocation2 + $0x38] sm:$0xff] %v1931
          %1964 = vst [vmem:[#allocation2 + $0x40] sm:$0xff] %v1932
          %1965 = vst [vmem:[#allocation2 + $0x48] sm:$0xff] %v1933
          %1966 = vst [vmem:[#allocation2 + $0x50] sm:$0xff] %v1934
          %1967 = vst [vmem:[#allocation2 + $0x58] sm:$0xff] %v1935
          %1968 = vst [vmem:[#allocation2 + $0x60] sm:$0xff] %v1936
          %1969 = vst [vmem:[#allocation2 + $0x68] sm:$0xff] %v1937
          %1970 = vst [vmem:[#allocation2 + $0x70] sm:$0xff] %v1938
          %1971 = vst [vmem:[#allocation2 + $0x78] sm:$0xff] %v1939
          %1972 = vst [vmem:[#allocation2 + $0x80] sm:$0xff] %v1940
          %1973 = vst [vmem:[#allocation2 + $0x88] sm:$0xff] %v1941
          %1974 = vst [vmem:[#allocation2 + $0x90] sm:$0xff] %v1942
          %1975 = vst [vmem:[#allocation2 + $0x98] sm:$0xff] %v1943
          %1976 = vst [vmem:[#allocation2 + $0xa0] sm:$0xff] %v1944
          %1977 = vst [vmem:[#allocation2 + $0xa8] sm:$0xff] %v1945
          %1978 = vst [vmem:[#allocation2 + $0xb0] sm:$0xff] %v1946
          %1979 = vst [vmem:[#allocation2 + $0xb8] sm:$0xff] %v1947
          %1980 = vst [vmem:[#allocation2 + $0xc0] sm:$0xff] %v1948
          %1981 = vst [vmem:[#allocation2 + $0xc8] sm:$0xff] %v1949
          %1982 = vst [vmem:[#allocation2 + $0xd0] sm:$0xff] %v1950
          %1983 = vst [vmem:[#allocation2 + $0xd8] sm:$0xff] %v1951
          %1984 = vst [vmem:[#allocation2 + $0xe0] sm:$0xff] %v1952
          %1985 = vst [vmem:[#allocation2 + $0xe8] sm:$0xff] %v1953
          %1986 = vst [vmem:[#allocation2 + $0xf0] sm:$0xff] %v1954
          %1987 = vst [vmem:[#allocation2 + $0xf8] sm:$0xff] %v1955
        $region72: #{tpu_custom_call.1} parent=31 // pred_fallthru
          _
        %v1988 = vld [vmem:[#allocation2] sm:$0xff]
        %v1989 = vld [vmem:[#allocation2 + $0x8] sm:$0xff]
        %v1990 = vld [vmem:[#allocation2 + $0x10] sm:$0xff]
        %v1991 = vld [vmem:[#allocation2 + $0x18] sm:$0xff]
        %v1992 = vld [vmem:[#allocation2 + $0x20] sm:$0xff]
        %v1993 = vld [vmem:[#allocation2 + $0x28] sm:$0xff]
        %v1994 = vld [vmem:[#allocation2 + $0x30] sm:$0xff]
        %v1995 = vld [vmem:[#allocation2 + $0x38] sm:$0xff]
        %v1996 = vld [vmem:[#allocation2 + $0x40] sm:$0xff]
        %v1997 = vld [vmem:[#allocation2 + $0x48] sm:$0xff]
        %v1998 = vld [vmem:[#allocation2 + $0x50] sm:$0xff]
        %v1999 = vld [vmem:[#allocation2 + $0x58] sm:$0xff]
        %v2000 = vld [vmem:[#allocation2 + $0x60] sm:$0xff]
        %v2001 = vld [vmem:[#allocation2 + $0x68] sm:$0xff]
        %v2002 = vld [vmem:[#allocation2 + $0x70] sm:$0xff]
        %v2003 = vld [vmem:[#allocation2 + $0x78] sm:$0xff]
        %v2004 = vld [vmem:[#allocation2 + $0x80] sm:$0xff]
        %v2005 = vld [vmem:[#allocation2 + $0x88] sm:$0xff]
        %v2006 = vld [vmem:[#allocation2 + $0x90] sm:$0xff]
        %v2007 = vld [vmem:[#allocation2 + $0x98] sm:$0xff]
        %v2008 = vld [vmem:[#allocation2 + $0xa0] sm:$0xff]
        %v2009 = vld [vmem:[#allocation2 + $0xa8] sm:$0xff]
        %v2010 = vld [vmem:[#allocation2 + $0xb0] sm:$0xff]
        %v2011 = vld [vmem:[#allocation2 + $0xb8] sm:$0xff]
        %v2012 = vld [vmem:[#allocation2 + $0xc0] sm:$0xff]
        %v2013 = vld [vmem:[#allocation2 + $0xc8] sm:$0xff]
        %v2014 = vld [vmem:[#allocation2 + $0xd0] sm:$0xff]
        %v2015 = vld [vmem:[#allocation2 + $0xd8] sm:$0xff]
        %v2016 = vld [vmem:[#allocation2 + $0xe0] sm:$0xff]
        %v2017 = vld [vmem:[#allocation2 + $0xe8] sm:$0xff]
        %v2018 = vld [vmem:[#allocation2 + $0xf0] sm:$0xff]
        %v2019 = vld [vmem:[#allocation2 + $0xf8] sm:$0xff]
        %vm2020 = vcmp.eq.s32.totalorder %v1988, 0
        %vm2021 = vcmp.eq.s32.totalorder %v1989, 0
        %vm2022 = vcmp.eq.s32.totalorder %v1990, 0
        %vm2023 = vcmp.eq.s32.totalorder %v1991, 0
        %vm2024 = vcmp.eq.s32.totalorder %v1992, 0
        %vm2025 = vcmp.eq.s32.totalorder %v1993, 0
        %vm2026 = vcmp.eq.s32.totalorder %v1994, 0
        %vm2027 = vcmp.eq.s32.totalorder %v1995, 0
        %vm2028 = vcmp.eq.s32.totalorder %v1996, 0
        %vm2029 = vcmp.eq.s32.totalorder %v1997, 0
        %vm2030 = vcmp.eq.s32.totalorder %v1998, 0
        %vm2031 = vcmp.eq.s32.totalorder %v1999, 0
        %vm2032 = vcmp.eq.s32.totalorder %v2000, 0
        %vm2033 = vcmp.eq.s32.totalorder %v2001, 0
        %vm2034 = vcmp.eq.s32.totalorder %v2002, 0
        %vm2035 = vcmp.eq.s32.totalorder %v2003, 0
        %vm2036 = vcmp.eq.s32.totalorder %v2004, 0
        %vm2037 = vcmp.eq.s32.totalorder %v2005, 0
        %vm2038 = vcmp.eq.s32.totalorder %v2006, 0
        %vm2039 = vcmp.eq.s32.totalorder %v2007, 0
        %vm2040 = vcmp.eq.s32.totalorder %v2008, 0
        %vm2041 = vcmp.eq.s32.totalorder %v2009, 0
        %vm2042 = vcmp.eq.s32.totalorder %v2010, 0
        %vm2043 = vcmp.eq.s32.totalorder %v2011, 0
        %vm2044 = vcmp.eq.s32.totalorder %v2012, 0
        %vm2045 = vcmp.eq.s32.totalorder %v2013, 0
        %vm2046 = vcmp.eq.s32.totalorder %v2014, 0
        %vm2047 = vcmp.eq.s32.totalorder %v2015, 0
        %vm2048 = vcmp.eq.s32.totalorder %v2016, 0
        %vm2049 = vcmp.eq.s32.totalorder %v2017, 0
        %vm2050 = vcmp.eq.s32.totalorder %v2018, 0
        %vm2051 = vcmp.eq.s32.totalorder %v2019, 0
        %v2052 = vsel %vm2020, 1, 0
        %v2053 = vsel %vm2021, 1, 0
        %v2054 = vsel %vm2022, 1, 0
        %v2055 = vsel %vm2023, 1, 0
        %v2056 = vsel %vm2024, 1, 0
        %v2057 = vsel %vm2025, 1, 0
        %v2058 = vsel %vm2026, 1, 0
        %v2059 = vsel %vm2027, 1, 0
        %v2060 = vsel %vm2028, 1, 0
        %v2061 = vsel %vm2029, 1, 0
        %v2062 = vsel %vm2030, 1, 0
        %v2063 = vsel %vm2031, 1, 0
        %v2064 = vsel %vm2032, 1, 0
        %v2065 = vsel %vm2033, 1, 0
        %v2066 = vsel %vm2034, 1, 0
        %v2067 = vsel %vm2035, 1, 0
        %v2068 = vsel %vm2036, 1, 0
        %v2069 = vsel %vm2037, 1, 0
        %v2070 = vsel %vm2038, 1, 0
        %v2071 = vsel %vm2039, 1, 0
        %v2072 = vsel %vm2040, 1, 0
        %v2073 = vsel %vm2041, 1, 0
        %v2074 = vsel %vm2042, 1, 0
        %v2075 = vsel %vm2043, 1, 0
        %v2076 = vsel %vm2044, 1, 0
        %v2077 = vsel %vm2045, 1, 0
        %v2078 = vsel %vm2046, 1, 0
        %v2079 = vsel %vm2047, 1, 0
        %v2080 = vsel %vm2048, 1, 0
        %v2081 = vsel %vm2049, 1, 0
        %v2082 = vsel %vm2050, 1, 0
        %v2083 = vsel %vm2051, 1, 0
        %v2084 = vcvt.s32.f32 %v2052
        %v2085 = vcvt.s32.f32 %v2053
        %v2086 = vcvt.s32.f32 %v2054
        %v2087 = vcvt.s32.f32 %v2055
        %v2088 = vcvt.s32.f32 %v2056
        %v2089 = vcvt.s32.f32 %v2057
        %v2090 = vcvt.s32.f32 %v2058
        %v2091 = vcvt.s32.f32 %v2059
        %v2092 = vcvt.s32.f32 %v2060
        %v2093 = vcvt.s32.f32 %v2061
        %v2094 = vcvt.s32.f32 %v2062
        %v2095 = vcvt.s32.f32 %v2063
        %v2096 = vcvt.s32.f32 %v2064
        %v2097 = vcvt.s32.f32 %v2065
        %v2098 = vcvt.s32.f32 %v2066
        %v2099 = vcvt.s32.f32 %v2067
        %v2100 = vcvt.s32.f32 %v2068
        %v2101 = vcvt.s32.f32 %v2069
        %v2102 = vcvt.s32.f32 %v2070
        %v2103 = vcvt.s32.f32 %v2071
        %v2104 = vcvt.s32.f32 %v2072
        %v2105 = vcvt.s32.f32 %v2073
        %v2106 = vcvt.s32.f32 %v2074
        %v2107 = vcvt.s32.f32 %v2075
        %v2108 = vcvt.s32.f32 %v2076
        %v2109 = vcvt.s32.f32 %v2077
        %v2110 = vcvt.s32.f32 %v2078
        %v2111 = vcvt.s32.f32 %v2079
        %v2112 = vcvt.s32.f32 %v2080
        %v2113 = vcvt.s32.f32 %v2081
        %v2114 = vcvt.s32.f32 %v2082
        %v2115 = vcvt.s32.f32 %v2083
        %v2116 = vpack.c.bf16 %v2085, %v2084
        %v2117 = vpack.c.bf16 %v2087, %v2086
        %v2118 = vpack.c.bf16 %v2089, %v2088
        %v2119 = vpack.c.bf16 %v2091, %v2090
        %v2120 = vpack.c.bf16 %v2093, %v2092
        %v2121 = vpack.c.bf16 %v2095, %v2094
        %v2122 = vpack.c.bf16 %v2097, %v2096
        %v2123 = vpack.c.bf16 %v2099, %v2098
        %v2124 = vpack.c.bf16 %v2101, %v2100
        %v2125 = vpack.c.bf16 %v2103, %v2102
        %v2126 = vpack.c.bf16 %v2105, %v2104
        %v2127 = vpack.c.bf16 %v2107, %v2106
        %v2128 = vpack.c.bf16 %v2109, %v2108
        %v2129 = vpack.c.bf16 %v2111, %v2110
        %v2130 = vpack.c.bf16 %v2113, %v2112
        %v2131 = vpack.c.bf16 %v2115, %v2114
        %v2148 = vunpack.c.l.b16 %v2116
        %v2149 = vunpack.c.h.b16 %v2116
        %v2150 = vunpack.c.l.b16 %v2117
        %v2151 = vunpack.c.h.b16 %v2117
        %v2152 = vunpack.c.l.b16 %v2118
        %v2153 = vunpack.c.h.b16 %v2118
        %v2154 = vunpack.c.l.b16 %v2119
        %v2155 = vunpack.c.h.b16 %v2119
        %v2156 = vunpack.c.l.b16 %v2120
        %v2157 = vunpack.c.h.b16 %v2120
        %v2158 = vunpack.c.l.b16 %v2121
        %v2159 = vunpack.c.h.b16 %v2121
        %v2160 = vunpack.c.l.b16 %v2122
        %v2161 = vunpack.c.h.b16 %v2122
        %v2162 = vunpack.c.l.b16 %v2123
        %v2163 = vunpack.c.h.b16 %v2123
        %v2164 = vunpack.c.l.b16 %v2124
        %v2165 = vunpack.c.h.b16 %v2124
        %v2166 = vunpack.c.l.b16 %v2125
        %v2167 = vunpack.c.h.b16 %v2125
        %v2168 = vunpack.c.l.b16 %v2126
        %v2169 = vunpack.c.h.b16 %v2126
        %v2170 = vunpack.c.l.b16 %v2127
        %v2171 = vunpack.c.h.b16 %v2127
        %v2172 = vunpack.c.l.b16 %v2128
        %v2173 = vunpack.c.h.b16 %v2128
        %v2174 = vunpack.c.l.b16 %v2129
        %v2175 = vunpack.c.h.b16 %v2129
        %v2176 = vunpack.c.l.b16 %v2130
        %v2177 = vunpack.c.h.b16 %v2130
        %v2178 = vunpack.c.l.b16 %v2131
        %v2179 = vunpack.c.h.b16 %v2131
        %v2180 = vpack.c.b16 %v2148, %v2148
        %v2181 = vpack.c.b16 %v2149, %v2149
        %v2182 = vpack.c.b16 %v2150, %v2150
        %v2183 = vpack.c.b16 %v2151, %v2151
        %v2184 = vpack.c.b16 %v2152, %v2152
        %v2185 = vpack.c.b16 %v2153, %v2153
        %v2186 = vpack.c.b16 %v2154, %v2154
        %v2187 = vpack.c.b16 %v2155, %v2155
        %v2188 = vpack.c.b16 %v2156, %v2156
        %v2189 = vpack.c.b16 %v2157, %v2157
        %v2190 = vpack.c.b16 %v2158, %v2158
        %v2191 = vpack.c.b16 %v2159, %v2159
        %v2192 = vpack.c.b16 %v2160, %v2160
        %v2193 = vpack.c.b16 %v2161, %v2161
        %v2194 = vpack.c.b16 %v2162, %v2162
        %v2195 = vpack.c.b16 %v2163, %v2163
        %v2196 = vpack.c.b16 %v2164, %v2164
        %v2197 = vpack.c.b16 %v2165, %v2165
        %v2198 = vpack.c.b16 %v2166, %v2166
        %v2199 = vpack.c.b16 %v2167, %v2167
        %v2200 = vpack.c.b16 %v2168, %v2168
        %v2201 = vpack.c.b16 %v2169, %v2169
        %v2202 = vpack.c.b16 %v2170, %v2170
        %v2203 = vpack.c.b16 %v2171, %v2171
        %v2204 = vpack.c.b16 %v2172, %v2172
        %v2205 = vpack.c.b16 %v2173, %v2173
        %v2206 = vpack.c.b16 %v2174, %v2174
        %v2207 = vpack.c.b16 %v2175, %v2175
        %v2208 = vpack.c.b16 %v2176, %v2176
        %v2209 = vpack.c.b16 %v2177, %v2177
        %v2210 = vpack.c.b16 %v2178, %v2178
        %v2211 = vpack.c.b16 %v2179, %v2179
        %2244 = vst [vmem:[%s249] sm:$0xf] %v2180
        %2245 = vst [vmem:[%s249 + $0x4] sm:$0xf] %v2181
        %2246 = vst [vmem:[%s249 + $0x8] sm:$0xf] %v2182
        %2247 = vst [vmem:[%s249 + $0xc] sm:$0xf] %v2183
        %2248 = vst [vmem:[%s249 + $0x10] sm:$0xf] %v2184
        %2249 = vst [vmem:[%s249 + $0x14] sm:$0xf] %v2185
        %2250 = vst [vmem:[%s249 + $0x18] sm:$0xf] %v2186
        %2251 = vst [vmem:[%s249 + $0x1c] sm:$0xf] %v2187
        %2252 = vst [vmem:[%s249 + $0x20] sm:$0xf] %v2188
        %2253 = vst [vmem:[%s249 + $0x24] sm:$0xf] %v2189
        %2254 = vst [vmem:[%s249 + $0x28] sm:$0xf] %v2190
        %2255 = vst [vmem:[%s249 + $0x2c] sm:$0xf] %v2191
        %2256 = vst [vmem:[%s249 + $0x30] sm:$0xf] %v2192
        %2257 = vst [vmem:[%s249 + $0x34] sm:$0xf] %v2193
        %2258 = vst [vmem:[%s249 + $0x38] sm:$0xf] %v2194
        %2259 = vst [vmem:[%s249 + $0x3c] sm:$0xf] %v2195
        %2260 = vst [vmem:[%s249 + $0x40] sm:$0xf] %v2196
        %2261 = vst [vmem:[%s249 + $0x44] sm:$0xf] %v2197
        %2262 = vst [vmem:[%s249 + $0x48] sm:$0xf] %v2198
        %2263 = vst [vmem:[%s249 + $0x4c] sm:$0xf] %v2199
        %2264 = vst [vmem:[%s249 + $0x50] sm:$0xf] %v2200
        %2265 = vst [vmem:[%s249 + $0x54] sm:$0xf] %v2201
        %2266 = vst [vmem:[%s249 + $0x58] sm:$0xf] %v2202
        %2267 = vst [vmem:[%s249 + $0x5c] sm:$0xf] %v2203
        %2268 = vst [vmem:[%s249 + $0x60] sm:$0xf] %v2204
        %2269 = vst [vmem:[%s249 + $0x64] sm:$0xf] %v2205
        %2270 = vst [vmem:[%s249 + $0x68] sm:$0xf] %v2206
        %2271 = vst [vmem:[%s249 + $0x6c] sm:$0xf] %v2207
        %2272 = vst [vmem:[%s249 + $0x70] sm:$0xf] %v2208
        %2273 = vst [vmem:[%s249 + $0x74] sm:$0xf] %v2209
        %2274 = vst [vmem:[%s249 + $0x78] sm:$0xf] %v2210
        %2275 = vst [vmem:[%s249 + $0x7c] sm:$0xf] %v2211
        %vm2276 = vcmp.eq.s32.totalorder %v1988, 1
        %vm2277 = vcmp.eq.s32.totalorder %v1989, 1
        %vm2278 = vcmp.eq.s32.totalorder %v1990, 1
        %vm2279 = vcmp.eq.s32.totalorder %v1991, 1
        %vm2280 = vcmp.eq.s32.totalorder %v1992, 1
        %vm2281 = vcmp.eq.s32.totalorder %v1993, 1
        %vm2282 = vcmp.eq.s32.totalorder %v1994, 1
        %vm2283 = vcmp.eq.s32.totalorder %v1995, 1
        %vm2284 = vcmp.eq.s32.totalorder %v1996, 1
        %vm2285 = vcmp.eq.s32.totalorder %v1997, 1
        %vm2286 = vcmp.eq.s32.totalorder %v1998, 1
        %vm2287 = vcmp.eq.s32.totalorder %v1999, 1
        %vm2288 = vcmp.eq.s32.totalorder %v2000, 1
        %vm2289 = vcmp.eq.s32.totalorder %v2001, 1
        %vm2290 = vcmp.eq.s32.totalorder %v2002, 1
        %vm2291 = vcmp.eq.s32.totalorder %v2003, 1
        %vm2292 = vcmp.eq.s32.totalorder %v2004, 1
        %vm2293 = vcmp.eq.s32.totalorder %v2005, 1
        %vm2294 = vcmp.eq.s32.totalorder %v2006, 1
        %vm2295 = vcmp.eq.s32.totalorder %v2007, 1
        %vm2296 = vcmp.eq.s32.totalorder %v2008, 1
        %vm2297 = vcmp.eq.s32.totalorder %v2009, 1
        %vm2298 = vcmp.eq.s32.totalorder %v2010, 1
        %vm2299 = vcmp.eq.s32.totalorder %v2011, 1
        %vm2300 = vcmp.eq.s32.totalorder %v2012, 1
        %vm2301 = vcmp.eq.s32.totalorder %v2013, 1
        %vm2302 = vcmp.eq.s32.totalorder %v2014, 1
        %vm2303 = vcmp.eq.s32.totalorder %v2015, 1
        %vm2304 = vcmp.eq.s32.totalorder %v2016, 1
        %vm2305 = vcmp.eq.s32.totalorder %v2017, 1
        %vm2306 = vcmp.eq.s32.totalorder %v2018, 1
        %vm2307 = vcmp.eq.s32.totalorder %v2019, 1
        %v2308 = vsel %vm2276, 1, 0
        %v2309 = vsel %vm2277, 1, 0
        %v2310 = vsel %vm2278, 1, 0
        %v2311 = vsel %vm2279, 1, 0
        %v2312 = vsel %vm2280, 1, 0
        %v2313 = vsel %vm2281, 1, 0
        %v2314 = vsel %vm2282, 1, 0
        %v2315 = vsel %vm2283, 1, 0
        %v2316 = vsel %vm2284, 1, 0
        %v2317 = vsel %vm2285, 1, 0
        %v2318 = vsel %vm2286, 1, 0
        %v2319 = vsel %vm2287, 1, 0
        %v2320 = vsel %vm2288, 1, 0
        %v2321 = vsel %vm2289, 1, 0
        %v2322 = vsel %vm2290, 1, 0
        %v2323 = vsel %vm2291, 1, 0
        %v2324 = vsel %vm2292, 1, 0
        %v2325 = vsel %vm2293, 1, 0
        %v2326 = vsel %vm2294, 1, 0
        %v2327 = vsel %vm2295, 1, 0
        %v2328 = vsel %vm2296, 1, 0
        %v2329 = vsel %vm2297, 1, 0
        %v2330 = vsel %vm2298, 1, 0
        %v2331 = vsel %vm2299, 1, 0
        %v2332 = vsel %vm2300, 1, 0
        %v2333 = vsel %vm2301, 1, 0
        %v2334 = vsel %vm2302, 1, 0
        %v2335 = vsel %vm2303, 1, 0
        %v2336 = vsel %vm2304, 1, 0
        %v2337 = vsel %vm2305, 1, 0
        %v2338 = vsel %vm2306, 1, 0
        %v2339 = vsel %vm2307, 1, 0
        %v2340 = vcvt.s32.f32 %v2308
        %v2341 = vcvt.s32.f32 %v2309
        %v2342 = vcvt.s32.f32 %v2310
        %v2343 = vcvt.s32.f32 %v2311
        %v2344 = vcvt.s32.f32 %v2312
        %v2345 = vcvt.s32.f32 %v2313
        %v2346 = vcvt.s32.f32 %v2314
        %v2347 = vcvt.s32.f32 %v2315
        %v2348 = vcvt.s32.f32 %v2316
        %v2349 = vcvt.s32.f32 %v2317
        %v2350 = vcvt.s32.f32 %v2318
        %v2351 = vcvt.s32.f32 %v2319
        %v2352 = vcvt.s32.f32 %v2320
        %v2353 = vcvt.s32.f32 %v2321
        %v2354 = vcvt.s32.f32 %v2322
        %v2355 = vcvt.s32.f32 %v2323
        %v2356 = vcvt.s32.f32 %v2324
        %v2357 = vcvt.s32.f32 %v2325
        %v2358 = vcvt.s32.f32 %v2326
        %v2359 = vcvt.s32.f32 %v2327
        %v2360 = vcvt.s32.f32 %v2328
        %v2361 = vcvt.s32.f32 %v2329
        %v2362 = vcvt.s32.f32 %v2330
        %v2363 = vcvt.s32.f32 %v2331
        %v2364 = vcvt.s32.f32 %v2332
        %v2365 = vcvt.s32.f32 %v2333
        %v2366 = vcvt.s32.f32 %v2334
        %v2367 = vcvt.s32.f32 %v2335
        %v2368 = vcvt.s32.f32 %v2336
        %v2369 = vcvt.s32.f32 %v2337
        %v2370 = vcvt.s32.f32 %v2338
        %v2371 = vcvt.s32.f32 %v2339
        %v2372 = vpack.c.bf16 %v2341, %v2340
        %v2373 = vpack.c.bf16 %v2343, %v2342
        %v2374 = vpack.c.bf16 %v2345, %v2344
        %v2375 = vpack.c.bf16 %v2347, %v2346
        %v2376 = vpack.c.bf16 %v2349, %v2348
        %v2377 = vpack.c.bf16 %v2351, %v2350
        %v2378 = vpack.c.bf16 %v2353, %v2352
        %v2379 = vpack.c.bf16 %v2355, %v2354
        %v2380 = vpack.c.bf16 %v2357, %v2356
        %v2381 = vpack.c.bf16 %v2359, %v2358
        %v2382 = vpack.c.bf16 %v2361, %v2360
        %v2383 = vpack.c.bf16 %v2363, %v2362
        %v2384 = vpack.c.bf16 %v2365, %v2364
        %v2385 = vpack.c.bf16 %v2367, %v2366
        %v2386 = vpack.c.bf16 %v2369, %v2368
        %v2387 = vpack.c.bf16 %v2371, %v2370
        %v2404 = vunpack.c.l.b16 %v2372
        %v2405 = vunpack.c.h.b16 %v2372
        %v2406 = vunpack.c.l.b16 %v2373
        %v2407 = vunpack.c.h.b16 %v2373
        %v2408 = vunpack.c.l.b16 %v2374
        %v2409 = vunpack.c.h.b16 %v2374
        %v2410 = vunpack.c.l.b16 %v2375
        %v2411 = vunpack.c.h.b16 %v2375
        %v2412 = vunpack.c.l.b16 %v2376
        %v2413 = vunpack.c.h.b16 %v2376
        %v2414 = vunpack.c.l.b16 %v2377
        %v2415 = vunpack.c.h.b16 %v2377
        %v2416 = vunpack.c.l.b16 %v2378
        %v2417 = vunpack.c.h.b16 %v2378
        %v2418 = vunpack.c.l.b16 %v2379
        %v2419 = vunpack.c.h.b16 %v2379
        %v2420 = vunpack.c.l.b16 %v2380
        %v2421 = vunpack.c.h.b16 %v2380
        %v2422 = vunpack.c.l.b16 %v2381
        %v2423 = vunpack.c.h.b16 %v2381
        %v2424 = vunpack.c.l.b16 %v2382
        %v2425 = vunpack.c.h.b16 %v2382
        %v2426 = vunpack.c.l.b16 %v2383
        %v2427 = vunpack.c.h.b16 %v2383
        %v2428 = vunpack.c.l.b16 %v2384
        %v2429 = vunpack.c.h.b16 %v2384
        %v2430 = vunpack.c.l.b16 %v2385
        %v2431 = vunpack.c.h.b16 %v2385
        %v2432 = vunpack.c.l.b16 %v2386
        %v2433 = vunpack.c.h.b16 %v2386
        %v2434 = vunpack.c.l.b16 %v2387
        %v2435 = vunpack.c.h.b16 %v2387
        %v2436 = vpack.c.b16 %v2404, %v2404
        %v2437 = vpack.c.b16 %v2405, %v2405
        %v2438 = vpack.c.b16 %v2406, %v2406
        %v2439 = vpack.c.b16 %v2407, %v2407
        %v2440 = vpack.c.b16 %v2408, %v2408
        %v2441 = vpack.c.b16 %v2409, %v2409
        %v2442 = vpack.c.b16 %v2410, %v2410
        %v2443 = vpack.c.b16 %v2411, %v2411
        %v2444 = vpack.c.b16 %v2412, %v2412
        %v2445 = vpack.c.b16 %v2413, %v2413
        %v2446 = vpack.c.b16 %v2414, %v2414
        %v2447 = vpack.c.b16 %v2415, %v2415
        %v2448 = vpack.c.b16 %v2416, %v2416
        %v2449 = vpack.c.b16 %v2417, %v2417
        %v2450 = vpack.c.b16 %v2418, %v2418
        %v2451 = vpack.c.b16 %v2419, %v2419
        %v2452 = vpack.c.b16 %v2420, %v2420
        %v2453 = vpack.c.b16 %v2421, %v2421
        %v2454 = vpack.c.b16 %v2422, %v2422
        %v2455 = vpack.c.b16 %v2423, %v2423
        %v2456 = vpack.c.b16 %v2424, %v2424
        %v2457 = vpack.c.b16 %v2425, %v2425
        %v2458 = vpack.c.b16 %v2426, %v2426
        %v2459 = vpack.c.b16 %v2427, %v2427
        %v2460 = vpack.c.b16 %v2428, %v2428
        %v2461 = vpack.c.b16 %v2429, %v2429
        %v2462 = vpack.c.b16 %v2430, %v2430
        %v2463 = vpack.c.b16 %v2431, %v2431
        %v2464 = vpack.c.b16 %v2432, %v2432
        %v2465 = vpack.c.b16 %v2433, %v2433
        %v2466 = vpack.c.b16 %v2434, %v2434
        %v2467 = vpack.c.b16 %v2435, %v2435
        %s2500 = scalar_lea.vmem %s249, 128 [#allocation11]
        %2501 = vst [vmem:[%s2500] sm:$0xf] %v2436
        %2502 = vst [vmem:[%s2500 + $0x4] sm:$0xf] %v2437
        %2503 = vst [vmem:[%s2500 + $0x8] sm:$0xf] %v2438
        %2504 = vst [vmem:[%s2500 + $0xc] sm:$0xf] %v2439
        %2505 = vst [vmem:[%s2500 + $0x10] sm:$0xf] %v2440
        %2506 = vst [vmem:[%s2500 + $0x14] sm:$0xf] %v2441
        %2507 = vst [vmem:[%s2500 + $0x18] sm:$0xf] %v2442
        %2508 = vst [vmem:[%s2500 + $0x1c] sm:$0xf] %v2443
        %2509 = vst [vmem:[%s2500 + $0x20] sm:$0xf] %v2444
        %2510 = vst [vmem:[%s2500 + $0x24] sm:$0xf] %v2445
        %2511 = vst [vmem:[%s2500 + $0x28] sm:$0xf] %v2446
        %2512 = vst [vmem:[%s2500 + $0x2c] sm:$0xf] %v2447
        %2513 = vst [vmem:[%s2500 + $0x30] sm:$0xf] %v2448
        %2514 = vst [vmem:[%s2500 + $0x34] sm:$0xf] %v2449
        %2515 = vst [vmem:[%s2500 + $0x38] sm:$0xf] %v2450
        %2516 = vst [vmem:[%s2500 + $0x3c] sm:$0xf] %v2451
        %2517 = vst [vmem:[%s2500 + $0x40] sm:$0xf] %v2452
        %2518 = vst [vmem:[%s2500 + $0x44] sm:$0xf] %v2453
        %2519 = vst [vmem:[%s2500 + $0x48] sm:$0xf] %v2454
        %2520 = vst [vmem:[%s2500 + $0x4c] sm:$0xf] %v2455
        %2521 = vst [vmem:[%s2500 + $0x50] sm:$0xf] %v2456
        %2522 = vst [vmem:[%s2500 + $0x54] sm:$0xf] %v2457
        %2523 = vst [vmem:[%s2500 + $0x58] sm:$0xf] %v2458
        %2524 = vst [vmem:[%s2500 + $0x5c] sm:$0xf] %v2459
        %2525 = vst [vmem:[%s2500 + $0x60] sm:$0xf] %v2460
        %2526 = vst [vmem:[%s2500 + $0x64] sm:$0xf] %v2461
        %2527 = vst [vmem:[%s2500 + $0x68] sm:$0xf] %v2462
        %2528 = vst [vmem:[%s2500 + $0x6c] sm:$0xf] %v2463
        %2529 = vst [vmem:[%s2500 + $0x70] sm:$0xf] %v2464
        %2530 = vst [vmem:[%s2500 + $0x74] sm:$0xf] %v2465
        %2531 = vst [vmem:[%s2500 + $0x78] sm:$0xf] %v2466
        %2532 = vst [vmem:[%s2500 + $0x7c] sm:$0xf] %v2467
        %vm2533 = vcmp.eq.s32.totalorder %v1988, 2
        %vm2534 = vcmp.eq.s32.totalorder %v1989, 2
        %vm2535 = vcmp.eq.s32.totalorder %v1990, 2
        %vm2536 = vcmp.eq.s32.totalorder %v1991, 2
        %vm2537 = vcmp.eq.s32.totalorder %v1992, 2
        %vm2538 = vcmp.eq.s32.totalorder %v1993, 2
        %vm2539 = vcmp.eq.s32.totalorder %v1994, 2
        %vm2540 = vcmp.eq.s32.totalorder %v1995, 2
        %vm2541 = vcmp.eq.s32.totalorder %v1996, 2
        %vm2542 = vcmp.eq.s32.totalorder %v1997, 2
        %vm2543 = vcmp.eq.s32.totalorder %v1998, 2
        %vm2544 = vcmp.eq.s32.totalorder %v1999, 2
        %vm2545 = vcmp.eq.s32.totalorder %v2000, 2
        %vm2546 = vcmp.eq.s32.totalorder %v2001, 2
        %vm2547 = vcmp.eq.s32.totalorder %v2002, 2
        %vm2548 = vcmp.eq.s32.totalorder %v2003, 2
        %vm2549 = vcmp.eq.s32.totalorder %v2004, 2
        %vm2550 = vcmp.eq.s32.totalorder %v2005, 2
        %vm2551 = vcmp.eq.s32.totalorder %v2006, 2
        %vm2552 = vcmp.eq.s32.totalorder %v2007, 2
        %vm2553 = vcmp.eq.s32.totalorder %v2008, 2
        %vm2554 = vcmp.eq.s32.totalorder %v2009, 2
        %vm2555 = vcmp.eq.s32.totalorder %v2010, 2
        %vm2556 = vcmp.eq.s32.totalorder %v2011, 2
        %vm2557 = vcmp.eq.s32.totalorder %v2012, 2
        %vm2558 = vcmp.eq.s32.totalorder %v2013, 2
        %vm2559 = vcmp.eq.s32.totalorder %v2014, 2
        %vm2560 = vcmp.eq.s32.totalorder %v2015, 2
        %vm2561 = vcmp.eq.s32.totalorder %v2016, 2
        %vm2562 = vcmp.eq.s32.totalorder %v2017, 2
        %vm2563 = vcmp.eq.s32.totalorder %v2018, 2
        %vm2564 = vcmp.eq.s32.totalorder %v2019, 2
        %v2565 = vsel %vm2533, 1, 0
        %v2566 = vsel %vm2534, 1, 0
        %v2567 = vsel %vm2535, 1, 0
        %v2568 = vsel %vm2536, 1, 0
        %v2569 = vsel %vm2537, 1, 0
        %v2570 = vsel %vm2538, 1, 0
        %v2571 = vsel %vm2539, 1, 0
        %v2572 = vsel %vm2540, 1, 0
        %v2573 = vsel %vm2541, 1, 0
        %v2574 = vsel %vm2542, 1, 0
        %v2575 = vsel %vm2543, 1, 0
        %v2576 = vsel %vm2544, 1, 0
        %v2577 = vsel %vm2545, 1, 0
        %v2578 = vsel %vm2546, 1, 0
        %v2579 = vsel %vm2547, 1, 0
        %v2580 = vsel %vm2548, 1, 0
        %v2581 = vsel %vm2549, 1, 0
        %v2582 = vsel %vm2550, 1, 0
        %v2583 = vsel %vm2551, 1, 0
        %v2584 = vsel %vm2552, 1, 0
        %v2585 = vsel %vm2553, 1, 0
        %v2586 = vsel %vm2554, 1, 0
        %v2587 = vsel %vm2555, 1, 0
        %v2588 = vsel %vm2556, 1, 0
        %v2589 = vsel %vm2557, 1, 0
        %v2590 = vsel %vm2558, 1, 0
        %v2591 = vsel %vm2559, 1, 0
        %v2592 = vsel %vm2560, 1, 0
        %v2593 = vsel %vm2561, 1, 0
        %v2594 = vsel %vm2562, 1, 0
        %v2595 = vsel %vm2563, 1, 0
        %v2596 = vsel %vm2564, 1, 0
        %v2597 = vcvt.s32.f32 %v2565
        %v2598 = vcvt.s32.f32 %v2566
        %v2599 = vcvt.s32.f32 %v2567
        %v2600 = vcvt.s32.f32 %v2568
        %v2601 = vcvt.s32.f32 %v2569
        %v2602 = vcvt.s32.f32 %v2570
        %v2603 = vcvt.s32.f32 %v2571
        %v2604 = vcvt.s32.f32 %v2572
        %v2605 = vcvt.s32.f32 %v2573
        %v2606 = vcvt.s32.f32 %v2574
        %v2607 = vcvt.s32.f32 %v2575
        %v2608 = vcvt.s32.f32 %v2576
        %v2609 = vcvt.s32.f32 %v2577
        %v2610 = vcvt.s32.f32 %v2578
        %v2611 = vcvt.s32.f32 %v2579
        %v2612 = vcvt.s32.f32 %v2580
        %v2613 = vcvt.s32.f32 %v2581
        %v2614 = vcvt.s32.f32 %v2582
        %v2615 = vcvt.s32.f32 %v2583
        %v2616 = vcvt.s32.f32 %v2584
        %v2617 = vcvt.s32.f32 %v2585
        %v2618 = vcvt.s32.f32 %v2586
        %v2619 = vcvt.s32.f32 %v2587
        %v2620 = vcvt.s32.f32 %v2588
        %v2621 = vcvt.s32.f32 %v2589
        %v2622 = vcvt.s32.f32 %v2590
        %v2623 = vcvt.s32.f32 %v2591
        %v2624 = vcvt.s32.f32 %v2592
        %v2625 = vcvt.s32.f32 %v2593
        %v2626 = vcvt.s32.f32 %v2594
        %v2627 = vcvt.s32.f32 %v2595
        %v2628 = vcvt.s32.f32 %v2596
        %v2629 = vpack.c.bf16 %v2598, %v2597
        %v2630 = vpack.c.bf16 %v2600, %v2599
        %v2631 = vpack.c.bf16 %v2602, %v2601
        %v2632 = vpack.c.bf16 %v2604, %v2603
        %v2633 = vpack.c.bf16 %v2606, %v2605
        %v2634 = vpack.c.bf16 %v2608, %v2607
        %v2635 = vpack.c.bf16 %v2610, %v2609
        %v2636 = vpack.c.bf16 %v2612, %v2611
        %v2637 = vpack.c.bf16 %v2614, %v2613
        %v2638 = vpack.c.bf16 %v2616, %v2615
        %v2639 = vpack.c.bf16 %v2618, %v2617
        %v2640 = vpack.c.bf16 %v2620, %v2619
        %v2641 = vpack.c.bf16 %v2622, %v2621
        %v2642 = vpack.c.bf16 %v2624, %v2623
        %v2643 = vpack.c.bf16 %v2626, %v2625
        %v2644 = vpack.c.bf16 %v2628, %v2627
        %v2661 = vunpack.c.l.b16 %v2629
        %v2662 = vunpack.c.h.b16 %v2629
        %v2663 = vunpack.c.l.b16 %v2630
        %v2664 = vunpack.c.h.b16 %v2630
        %v2665 = vunpack.c.l.b16 %v2631
        %v2666 = vunpack.c.h.b16 %v2631
        %v2667 = vunpack.c.l.b16 %v2632
        %v2668 = vunpack.c.h.b16 %v2632
        %v2669 = vunpack.c.l.b16 %v2633
        %v2670 = vunpack.c.h.b16 %v2633
        %v2671 = vunpack.c.l.b16 %v2634
        %v2672 = vunpack.c.h.b16 %v2634
        %v2673 = vunpack.c.l.b16 %v2635
        %v2674 = vunpack.c.h.b16 %v2635
        %v2675 = vunpack.c.l.b16 %v2636
        %v2676 = vunpack.c.h.b16 %v2636
        %v2677 = vunpack.c.l.b16 %v2637
        %v2678 = vunpack.c.h.b16 %v2637
        %v2679 = vunpack.c.l.b16 %v2638
        %v2680 = vunpack.c.h.b16 %v2638
        %v2681 = vunpack.c.l.b16 %v2639
        %v2682 = vunpack.c.h.b16 %v2639
        %v2683 = vunpack.c.l.b16 %v2640
        %v2684 = vunpack.c.h.b16 %v2640
        %v2685 = vunpack.c.l.b16 %v2641
        %v2686 = vunpack.c.h.b16 %v2641
        %v2687 = vunpack.c.l.b16 %v2642
        %v2688 = vunpack.c.h.b16 %v2642
        %v2689 = vunpack.c.l.b16 %v2643
        %v2690 = vunpack.c.h.b16 %v2643
        %v2691 = vunpack.c.l.b16 %v2644
        %v2692 = vunpack.c.h.b16 %v2644
        %v2693 = vpack.c.b16 %v2661, %v2661
        %v2694 = vpack.c.b16 %v2662, %v2662
        %v2695 = vpack.c.b16 %v2663, %v2663
        %v2696 = vpack.c.b16 %v2664, %v2664
        %v2697 = vpack.c.b16 %v2665, %v2665
        %v2698 = vpack.c.b16 %v2666, %v2666
        %v2699 = vpack.c.b16 %v2667, %v2667
        %v2700 = vpack.c.b16 %v2668, %v2668
        %v2701 = vpack.c.b16 %v2669, %v2669
        %v2702 = vpack.c.b16 %v2670, %v2670
        %v2703 = vpack.c.b16 %v2671, %v2671
        %v2704 = vpack.c.b16 %v2672, %v2672
        %v2705 = vpack.c.b16 %v2673, %v2673
        %v2706 = vpack.c.b16 %v2674, %v2674
        %v2707 = vpack.c.b16 %v2675, %v2675
        %v2708 = vpack.c.b16 %v2676, %v2676
        %v2709 = vpack.c.b16 %v2677, %v2677
        %v2710 = vpack.c.b16 %v2678, %v2678
        %v2711 = vpack.c.b16 %v2679, %v2679
        %v2712 = vpack.c.b16 %v2680, %v2680
        %v2713 = vpack.c.b16 %v2681, %v2681
        %v2714 = vpack.c.b16 %v2682, %v2682
        %v2715 = vpack.c.b16 %v2683, %v2683
        %v2716 = vpack.c.b16 %v2684, %v2684
        %v2717 = vpack.c.b16 %v2685, %v2685
        %v2718 = vpack.c.b16 %v2686, %v2686
        %v2719 = vpack.c.b16 %v2687, %v2687
        %v2720 = vpack.c.b16 %v2688, %v2688
        %v2721 = vpack.c.b16 %v2689, %v2689
        %v2722 = vpack.c.b16 %v2690, %v2690
        %v2723 = vpack.c.b16 %v2691, %v2691
        %v2724 = vpack.c.b16 %v2692, %v2692
        %s2757 = scalar_lea.vmem %s249, 256 [#allocation11]
        %2758 = vst [vmem:[%s2757] sm:$0xf] %v2693
        %2759 = vst [vmem:[%s2757 + $0x4] sm:$0xf] %v2694
        %2760 = vst [vmem:[%s2757 + $0x8] sm:$0xf] %v2695
        %2761 = vst [vmem:[%s2757 + $0xc] sm:$0xf] %v2696
        %2762 = vst [vmem:[%s2757 + $0x10] sm:$0xf] %v2697
        %2763 = vst [vmem:[%s2757 + $0x14] sm:$0xf] %v2698
        %2764 = vst [vmem:[%s2757 + $0x18] sm:$0xf] %v2699
        %2765 = vst [vmem:[%s2757 + $0x1c] sm:$0xf] %v2700
        %2766 = vst [vmem:[%s2757 + $0x20] sm:$0xf] %v2701
        %2767 = vst [vmem:[%s2757 + $0x24] sm:$0xf] %v2702
        %2768 = vst [vmem:[%s2757 + $0x28] sm:$0xf] %v2703
        %2769 = vst [vmem:[%s2757 + $0x2c] sm:$0xf] %v2704
        %2770 = vst [vmem:[%s2757 + $0x30] sm:$0xf] %v2705
        %2771 = vst [vmem:[%s2757 + $0x34] sm:$0xf] %v2706
        %2772 = vst [vmem:[%s2757 + $0x38] sm:$0xf] %v2707
        %2773 = vst [vmem:[%s2757 + $0x3c] sm:$0xf] %v2708
        %2774 = vst [vmem:[%s2757 + $0x40] sm:$0xf] %v2709
        %2775 = vst [vmem:[%s2757 + $0x44] sm:$0xf] %v2710
        %2776 = vst [vmem:[%s2757 + $0x48] sm:$0xf] %v2711
        %2777 = vst [vmem:[%s2757 + $0x4c] sm:$0xf] %v2712
        %2778 = vst [vmem:[%s2757 + $0x50] sm:$0xf] %v2713
        %2779 = vst [vmem:[%s2757 + $0x54] sm:$0xf] %v2714
        %2780 = vst [vmem:[%s2757 + $0x58] sm:$0xf] %v2715
        %2781 = vst [vmem:[%s2757 + $0x5c] sm:$0xf] %v2716
        %2782 = vst [vmem:[%s2757 + $0x60] sm:$0xf] %v2717
        %2783 = vst [vmem:[%s2757 + $0x64] sm:$0xf] %v2718
        %2784 = vst [vmem:[%s2757 + $0x68] sm:$0xf] %v2719
        %2785 = vst [vmem:[%s2757 + $0x6c] sm:$0xf] %v2720
        %2786 = vst [vmem:[%s2757 + $0x70] sm:$0xf] %v2721
        %2787 = vst [vmem:[%s2757 + $0x74] sm:$0xf] %v2722
        %2788 = vst [vmem:[%s2757 + $0x78] sm:$0xf] %v2723
        %2789 = vst [vmem:[%s2757 + $0x7c] sm:$0xf] %v2724
        %s2790 = sand.u32 %s103, 1
        %s2791 = scalar_lea.sflag [#allocation5], %s2790
        %s2792 = sand.u32 %s103, 1
        %s2793 = smul.addr %s2792, 256
        %s2794 = scalar_lea.vmem [#allocation10], %s2793
        %s2795 = sand.u32 %s129, 1
        %s2796 = scalar_lea.sflag [#allocation12], %s2795
        %s2797 = sand.u32 %s129, 1
        %s2798 = smul.addr %s2797, 384
        %s2799 = scalar_lea.vmem [#allocation11], %s2798
        // Predicated region
        $region73: #{tpu_custom_call.1} parent=31 // pred_check
          %p2800 = pneg %p113
        $region74: #{tpu_custom_call.1} parent=31 // pred_check_branch
          %2802 = sbr.rel (%p2800) target = $region76
        $region75: #{tpu_custom_call.1} parent=31 // pred_region
          %s2803 = smul.u32 32, %s27
          %s2805 = ssub.s32 4096, 4096
          %2806 = vsyncadd %s2791, %s2805
          %s2807 = smul.addr %s2803, 128
          %s2808 = scalar_lea.hbm %s3, %s2807
          %s2809 = sshll.u32 %s2794, 4
          %s2810 = int_to_ptr.vmem [resolvable:$true] %s2809
          %2815 = dma.vmem_to_hbm [thread:$0]  %s2810, 4096, %s2808, %s2791, 128, 128, 8
        $region76: #{tpu_custom_call.1} parent=31 // pred_fallthru
          _
        // Predicated region
        $region77: #{tpu_custom_call.1} parent=31 // pred_check
          %p2816 = pneg %p139
        $region78: #{tpu_custom_call.1} parent=31 // pred_check_branch
          %2818 = sbr.rel (%p2816) target = $region80
        $region79: #{tpu_custom_call.1} parent=31 // pred_region
          #allocation14 [shape = 'u32[6]{0}', space=smem, size = 0x18, scoped, tag = 'DMA stride descriptor']
          %s2819 = smul.u32 32, %s27
          %s2821 = ssub.s32 6144, 6144
          %2822 = vsyncadd %s2796, %s2821
          %s2823 = smul.addr %s2819, 64
          %s2824 = scalar_lea.hbm %s4, %s2823
          %s2826 = sshll.u32 1, 14
          %s2827 = sxor.u32 4294967295, %s2826
          %s2830 = sshll.u32 7, 18
          %s2831 = sxor.u32 4294967295, %s2830
          %s2832 = sand.u32 0, %s2831
          %s2834 = sor.u32 %s2832, 0
          %s2836 = sshll.u32 3, 24
          %s2837 = sxor.u32 4294967295, %s2836
          %s2838 = sand.u32 %s2834, %s2837
          %s2840 = sor.u32 %s2838, 0
          %s2841 = sshll.u32 %s2799, 4
          %s2842 = int_to_ptr.vmem [resolvable:$true] %s2841
          %2848 = sst [smem:[#allocation14]] 2048
          %s2849 = scalar_lea.smem [#allocation14], 1
          %2850 = sst [smem:[%s2849]] 16384
          %s2851 = scalar_lea.smem [#allocation14], 2
          %2852 = sst [smem:[%s2851]] 32
          %s2853 = scalar_lea.smem [#allocation14], 3
          %2854 = sst [smem:[%s2853]] 64
          %s2855 = scalar_lea.smem [#allocation14], 4
          %2856 = sst [smem:[%s2855]] 64
          %s2857 = scalar_lea.smem [#allocation14], 5
          %2858 = sst [smem:[%s2857]] 4
          %2860 = dma.general %s2842, 6144, %s2824, %s2796, [#allocation13], [#allocation14], %s2840, 0
        $region80: #{tpu_custom_call.1} parent=31 // pred_fallthru
          _
      $region32: #{tpu_custom_call.1} parent=5 // pred_fallthru
        _
      %p2861 = scmp.le.s32.totalorder 2, %s22
      // Predicated region
      $region81: #{tpu_custom_call.1} parent=5 // pred_check
        %p2862 = pneg %p2861
      $region82: #{tpu_custom_call.1} parent=5 // pred_check_branch
        %2864 = sbr.rel (%p2862) target = $region84
      $region83: #{tpu_custom_call.1} parent=5 // pred_region
        %s2865 = ssub.s32 %s22, 2
        // Predicated region
        $region85: #{tpu_custom_call.1} parent=83 // pred_check
          %p2866 = pneg %p119
        $region86: #{tpu_custom_call.1} parent=83 // pred_check_branch
          %2868 = sbr.rel (%p2866) target = $region88
        $region87: #{tpu_custom_call.1} parent=83 // pred_region
          %s2869 = sand.u32 %s104, 1
          %s2870 = scalar_lea.sflag [#allocation5], %s2869
          %s2871 = sand.u32 %s104, 1
          %s2872 = smul.addr %s2871, 256
          %s2873 = scalar_lea.vmem [#allocation10], %s2872
          %2874 = dma.done %s2870, 4096
        $region88: #{tpu_custom_call.1} parent=83 // pred_fallthru
          _
        // Predicated region
        $region89: #{tpu_custom_call.1} parent=83 // pred_check
          %p2875 = pneg %p145
        $region90: #{tpu_custom_call.1} parent=83 // pred_check_branch
          %2877 = sbr.rel (%p2875) target = $region92
        $region91: #{tpu_custom_call.1} parent=83 // pred_region
          %s2878 = sand.u32 %s130, 1
          %s2879 = scalar_lea.sflag [#allocation12], %s2878
          %s2880 = sand.u32 %s130, 1
          %s2881 = smul.addr %s2880, 384
          %s2882 = scalar_lea.vmem [#allocation11], %s2881
          %2883 = dma.done %s2879, 6144
        $region92: #{tpu_custom_call.1} parent=83 // pred_fallthru
          _
      $region84: #{tpu_custom_call.1} parent=5 // pred_fallthru
        _
    $region6: #{tpu_custom_call.1} parent=1 // loop_footer
      %s26 = sadd.s32 1, %s22
    $region7: #{tpu_custom_call.1} parent=1 // loop_footer_branch
      %21 = sbr.rel target = $region3
    $region8: #{tpu_custom_call.1} parent=1 // loop_exit
      _
    %2884 = vsyncpa [#allocation4], 1
    %s2885 = scalar_lea.sflag [#allocation4], 1
    %2886 = vsyncpa %s2885, 1
    %2887 = vsyncpa [#allocation5], 1
    %s2888 = scalar_lea.sflag [#allocation5], 1
    %2889 = vsyncpa %s2888, 1
    %2890 = vsyncpa [#allocation12], 1
    %s2891 = scalar_lea.sflag [#allocation12], 1
    %2892 = vsyncpa %s2891, 1
    %2893 = vsyncpa [#allocation6], 1
    %s2894 = scalar_lea.sflag [#allocation6], 1
    %2895 = vsyncpa %s2894, 1
    %2896 = vsyncpa [#allocation8], 1

</llo_original>
